<compile_context>
chip_gen: v7x
topology: tpu7x:2x2x1
jax: 0.10.0
libtpu: 0.0.40
codegen_flags: <defaults>
</compile_context>

<pallas_src>
import functools

import jax
import jax.numpy as jnp
from jax.experimental import pallas as pl
from jax.experimental.pallas import tpu as pltpu


LANE = 128            # channel dims padded to multiples of the lane width
TM = 256              # node-row tile (fills 256x256 MXU on v6e/v7x)
TK = 256              # neighbor-column (reduction) tile
NODE_ALIGN = 2 * TM   # even number of row tiles -> balanced across v7x's 2 TCs

# Conservative VMEM budgets (v7x: 64 MiB physical per TensorCore).
SMALL_PATH_VMEM_BUDGET = 40 * 1024 * 1024
RESIDENT_XWL_BUDGET = 12 * 1024 * 1024    # x2 double-buffering ~= 24 MiB
VMEM_LIMIT_BYTES = 48 * 1024 * 1024


def _round_up(x, m):
    return ((x + m - 1) // m) * m


# ---------------------------------------------------------------------------
# Kernel 1: per-node linear precompute  XWl = X @ W_l ,  XWrb = X @ W_r + b
# ---------------------------------------------------------------------------
def _linear_pair_kernel(x_ref, wl_ref, wr_ref, b_ref, xwl_ref, xwrb_ref):
    x = x_ref[...]
    xwl_ref[...] = jnp.dot(
        x, wl_ref[...], preferred_element_type=jnp.float32
    ).astype(xwl_ref.dtype)
    xwrb_ref[...] = (
        jnp.dot(x, wr_ref[...], preferred_element_type=jnp.float32) + b_ref[...]
    ).astype(xwrb_ref.dtype)


def linear_pair(x, w_l, w_r, b_l, *, tm=TM):
    """x:[N,Cin] bf16, w_*:[Cin,Cout] bf16, b:[1,Cout] f32 -> (XWl bf16, XWrb f32)."""
    n, cin = x.shape
    cout = w_l.shape[1]
    tm = min(tm, n)
    assert n % tm == 0
    return pl.pallas_call(
        _linear_pair_kernel,
        out_shape=(
            jax.ShapeDtypeStruct((n, cout), jnp.bfloat16),
            jax.ShapeDtypeStruct((n, cout), jnp.float32),
        ),
        grid=(n // tm,),
        in_specs=[
            pl.BlockSpec((tm, cin), lambda i: (i, 0)),
            pl.BlockSpec((cin, cout), lambda i: (0, 0)),   # resident weights
            pl.BlockSpec((cin, cout), lambda i: (0, 0)),
            pl.BlockSpec((1, cout), lambda i: (0, 0)),
        ],
        out_specs=(
            pl.BlockSpec((tm, cout), lambda i: (i, 0)),
            pl.BlockSpec((tm, cout), lambda i: (i, 0)),
        ),
        compiler_params=pltpu.CompilerParams(
            dimension_semantics=("parallel",),
            vmem_limit_bytes=VMEM_LIMIT_BYTES,
        ),
    )(x, w_l, w_r, b_l)


# ---------------------------------------------------------------------------
# Kernel 2: tiled aggregation  out = inv_deg * (A @ XWl) + XWrb  (+ReLU)
# ---------------------------------------------------------------------------
def _sage_agg_tiled_kernel(a_ref, xwl_ref, xwrb_ref, invdeg_ref, o_ref, acc_ref,
                           *, apply_relu, tk, xwl_resident):
    k = pl.program_id(1)

    @pl.when(k == 0)
    def _():
        acc_ref[...] = jnp.zeros_like(acc_ref)

    if xwl_resident:
        # XWl lives fully in VMEM (constant block index); slice the k-chunk.
        start = pl.multiple_of(k * tk, tk)
        rhs = xwl_ref[pl.ds(start, tk), :]
    else:
        rhs = xwl_ref[...]

    # Inner loop is one MXU matmul per step: acc += A[i, k_tile] @ XWl[k_tile]
    acc_ref[...] += jnp.dot(a_ref[...], rhs, preferred_element_type=jnp.float32)

    # Lightweight epilogue (no matmuls): mean-normalize, add root term, ReLU.
    @pl.when(k == pl.num_programs(1) - 1)
    def _():
        out = invdeg_ref[...] * acc_ref[...] + xwrb_ref[...]
        if apply_relu:
            out = jnp.maximum(out, 0.0)
        o_ref[...] = out.astype(o_ref.dtype)


def sage_agg_tiled(adj, xwl, xwrb, inv_deg, *, apply_relu, out_dtype,
                   tm=TM, tk=TK, xwl_resident=None):
    """adj:[Np,Np] bf16 {0,1,..} counts, xwl:[Np,Cout] bf16, xwrb:[Np,Cout] f32,
    inv_deg:[Np,1] f32. Returns inv_deg*(adj@xwl)+xwrb (+ReLU)."""
    n = adj.shape[0]
    cout = xwl.shape[1]
    tm = min(tm, n)
    tk = min(tk, n)
    assert n % tm == 0 and n % tk == 0

    if xwl_resident is None:
        xwl_resident = (n * cout * xwl.dtype.itemsize) <= RESIDENT_XWL_BUDGET

    if xwl_resident:
        xwl_spec = pl.BlockSpec((n, cout), lambda i, k: (0, 0))     # fetched once
    else:
        xwl_spec = pl.BlockSpec((tk, cout), lambda i, k: (k, 0))    # restream <= cout/tm

    kernel = functools.partial(_sage_agg_tiled_kernel, apply_relu=apply_relu,
                               tk=tk, xwl_resident=xwl_resident)
    return pl.pallas_call(
        kernel,
        out_shape=jax.ShapeDtypeStruct((n, cout), out_dtype),
        grid=(n // tm, n // tk),
        in_specs=[
            pl.BlockSpec((tm, tk), lambda i, k: (i, k)),      # A: the big stream
            xwl_spec,                                         # X @ W_l
            pl.BlockSpec((tm, cout), lambda i, k: (i, 0)),    # X @ W_r + b (per i)
            pl.BlockSpec((tm, 1), lambda i, k: (i, 0)),       # 1/deg     (per i)
        ],
        out_specs=pl.BlockSpec((tm, cout), lambda i, k: (i, 0)),
        scratch_shapes=[pltpu.VMEM((tm, cout), jnp.float32)],
        compiler_params=pltpu.CompilerParams(
            dimension_semantics=("parallel", "arbitrary"),
            vmem_limit_bytes=VMEM_LIMIT_BYTES,
        ),
    )(adj, xwl, xwrb, inv_deg)


# ---------------------------------------------------------------------------
# Kernel 3: small-graph fast path -- BOTH layers fused in one grid=(1,) call
# ---------------------------------------------------------------------------
def _graphsage_fused_small_kernel(a_ref, x_ref, w1l_ref, w1r_ref, b1_ref,
                                  w2l_ref, w2r_ref, b2_ref, invdeg_ref, o_ref):
    a = a_ref[...]
    x = x_ref[...]
    inv = invdeg_ref[...]
    # ---- conv1 + ReLU ----
    xw1l = jnp.dot(x, w1l_ref[...],
                   preferred_element_type=jnp.float32).astype(jnp.bfloat16)
    h = inv * jnp.dot(a, xw1l, preferred_element_type=jnp.float32)
    h = h + jnp.dot(x, w1r_ref[...], preferred_element_type=jnp.float32) + b1_ref[...]
    h = jnp.maximum(h, 0.0).astype(jnp.bfloat16)
    # dropout(p=0.2) in eval mode == identity
    # ---- conv2 ----
    hw2l = jnp.dot(h, w2l_ref[...],
                   preferred_element_type=jnp.float32).astype(jnp.bfloat16)
    out = inv * jnp.dot(a, hw2l, preferred_element_type=jnp.float32)
    out = out + jnp.dot(h, w2r_ref[...], preferred_element_type=jnp.float32) + b2_ref[...]
    o_ref[...] = out.astype(o_ref.dtype)


def graphsage_fused_small(adj, x, w1l, w1r, b1, w2l, w2r, b2, inv_deg):
    n = adj.shape[0]
    cin = x.shape[1]
    hid = w1l.shape[1]
    cout = w2l.shape[1]

    def fullspec(shape):
        return pl.BlockSpec(shape, lambda i: (0, 0))

    return pl.pallas_call(
        _graphsage_fused_small_kernel,
        out_shape=jax.ShapeDtypeStruct((n, cout), jnp.float32),
        grid=(1,),
        in_specs=[
            fullspec((n, n)), fullspec((n, cin)),
            fullspec((cin, hid)), fullspec((cin, hid)), fullspec((1, hid)),
            fullspec((hid, cout)), fullspec((hid, cout)), fullspec((1, cout)),
            fullspec((n, 1)),
        ],
        out_specs=fullspec((n, cout)),
        compiler_params=pltpu.CompilerParams(
            dimension_semantics=("arbitrary",),
            vmem_limit_bytes=VMEM_LIMIT_BYTES,
        ),
    )(adj, x, w1l, w1r, b1, w2l, w2r, b2, inv_deg)


def _small_path_bytes(n, cin, hid, cout):
    c = max(cin, hid, cout)
    in_bytes = (n * n + n * cin + 2 * cin * hid + 2 * hid * cout) * 2 \
               + (hid + cout) * 4 + n * LANE * 4
    out_bytes = n * cout * 4
    scratch = 6 * n * c * 4   # headroom for in-kernel f32 intermediates
    return 2 * (in_bytes + out_bytes) + scratch


# ---------------------------------------------------------------------------
# Graph preprocessing: {0,1,..} adjacency counts + 1/deg column (mean agg)
# ---------------------------------------------------------------------------
def build_adjacency(edge_index, num_nodes):
    src = edge_index[0]   # messages flow src -> dst (PyG convention)
    dst = edge_index[1]
    adj = jnp.zeros((num_nodes, num_nodes), dtype=jnp.float32)
    adj = adj.at[dst, src].add(1.0)          # small integer counts: exact in bf16
    deg = jnp.sum(adj, axis=1, keepdims=True)
    inv_deg = jnp.where(deg > 0, 1.0 / jnp.maximum(deg, 1.0), 0.0)
    return adj, inv_deg


# ---------------------------------------------------------------------------
# Parameter init (shapes from GraphSAGE.__init__: SAGEConv(in,64), SAGEConv(64,out))
# ---------------------------------------------------------------------------
def init_params(key, in_channels, hidden, out_channels):
    k1, k2, k3, k4 = jax.random.split(key, 4)

    def glorot(k, fan_in, fan_out):
        lim = jnp.sqrt(6.0 / (fan_in + fan_out))
        return jax.random.uniform(
            k, (fan_in, fan_out), minval=-lim, maxval=lim, dtype=jnp.float32)

    return {
        "w1_l": glorot(k1, in_channels, hidden),
        "w1_r": glorot(k2, in_channels, hidden),
        "b1_l": jnp.zeros((1, hidden), dtype=jnp.float32),
        "w2_l": glorot(k3, hidden, out_channels),
        "w2_r": glorot(k4, hidden, out_channels),
        "b2_l": jnp.zeros((1, out_channels), dtype=jnp.float32),
    }


# ---------------------------------------------------------------------------
# Full GraphSAGE forward (eval mode)
# ---------------------------------------------------------------------------
@functools.partial(jax.jit, static_argnames=("path",))
def graphsage_forward(params, x, adj, inv_deg, *, path="auto"):
    """path: 'auto' | 'small' | 'tiled' | 'tiled_streamed'."""
    n, cin = x.shape
    hidden = params["w1_l"].shape[1]
    out_channels = params["w2_l"].shape[1]

    n_pad = _round_up(n, NODE_ALIGN)
    cin_p = _round_up(cin, LANE)
    hid_p = _round_up(hidden, LANE)
    cout_p = _round_up(out_channels, LANE)

    # Pad to tile/lane-friendly shapes; narrow MXU operands to bf16.
    a_p = jnp.pad(adj, ((0, n_pad - n), (0, n_pad - n))).astype(jnp.bfloat16)
    x_p = jnp.pad(x, ((0, n_pad - n), (0, cin_p - cin))).astype(jnp.bfloat16)
    inv_p = jnp.pad(inv_deg, ((0, n_pad - n), (0, 0)))          # f32

    w1l = jnp.pad(params["w1_l"],
                  ((0, cin_p - cin), (0, hid_p - hidden))).astype(jnp.bfloat16)
    w1r = jnp.pad(params["w1_r"],
                  ((0, cin_p - cin), (0, hid_p - hidden))).astype(jnp.bfloat16)
    b1 = jnp.pad(params["b1_l"], ((0, 0), (0, hid_p - hidden)))
    w2l = jnp.pad(params["w2_l"],
                  ((0, hid_p - hidden), (0, cout_p - out_channels))).astype(jnp.bfloat16)
    w2r = jnp.pad(params["w2_r"],
                  ((0, hid_p - hidden), (0, cout_p - out_channels))).astype(jnp.bfloat16)
    b2 = jnp.pad(params["b2_l"], ((0, 0), (0, cout_p - out_channels)))

    if path == "auto":
        fits = _small_path_bytes(n_pad, cin_p, hid_p, cout_p) <= SMALL_PATH_VMEM_BUDGET
        path = "small" if fits else "tiled"

    if path == "small":
        out = graphsage_fused_small(a_p, x_p, w1l, w1r, b1, w2l, w2r, b2, inv_p)
    else:
        xwl_res = None if path == "tiled" else False
        # conv1 (+ fused ReLU)
        xw1l, xw1rb = linear_pair(x_p, w1l, w1r, b1)
        h = sage_agg_tiled(a_p, xw1l, xw1rb, inv_p, apply_relu=True,
                           out_dtype=jnp.bfloat16, xwl_resident=xwl_res)
        # dropout(p=0.2) in eval mode == identity
        # conv2
        xw2l, xw2rb = linear_pair(h, w2l, w2r, b2)
        out = sage_agg_tiled(a_p, xw2l, xw2rb, inv_p, apply_relu=False,
                             out_dtype=jnp.float32, xwl_resident=xwl_res)

    return out[:n, :out_channels]


# ---------------------------------------------------------------------------
# Pure-JAX f32 reference
# ---------------------------------------------------------------------------
def graphsage_ref(params, x, adj, inv_deg):
    hp = jax.lax.Precision.HIGHEST
    dot = functools.partial(jnp.matmul, precision=hp)
    adj_norm = adj * inv_deg
    agg = dot(adj_norm, x)
    h = dot(agg, params["w1_l"]) + params["b1_l"] + dot(x, params["w1_r"])
    h = jnp.maximum(h, 0.0)
    agg2 = dot(adj_norm, h)
    out = dot(agg2, params["w2_l"]) + params["b2_l"] + dot(h, params["w2_r"])
    return out


if __name__ == "__main__":
    key = jax.random.PRNGKey(0)

    num_nodes = 300        # pads to 512 -> 2x2 grid of 256x256 A tiles
    in_channels = 16
    hidden = 64
    out_channels = 8
    num_edges = 1200

    k_feat, k_edge, k_param = jax.random.split(key, 3)

    # node features: [N, C]
    x = jax.random.normal(k_feat, (num_nodes, in_channels), dtype=jnp.float32)

    # edge_index: [2, E] (ring to guarantee connectivity + random edges)
    ring_src = jnp.arange(num_nodes, dtype=jnp.int32)
    ring_dst = (ring_src + 1) % num_nodes
    rnd = jax.random.randint(
        k_edge, (2, num_edges - num_nodes), 0, num_nodes, dtype=jnp.int32)
    edge_index = jnp.concatenate([jnp.stack([ring_src, ring_dst]), rnd], axis=1)

    params = init_params(k_param, in_channels, hidden, out_channels)
    adj, inv_deg = build_adjacency(edge_index, num_nodes)
    ref = graphsage_ref(params, x, adj, inv_deg)

    # Exercise all code paths: fused small-graph fast path (auto-selected),
    # the tiled path with resident XWl, and the tiled path with streamed XWl.
    for path in ("auto", "tiled", "tiled_streamed"):
        out = graphsage_forward(params, x, adj, inv_deg, path=path)
        out = jax.block_until_ready(out)
        assert out.shape == (num_nodes, out_channels)
        err = float(jnp.max(jnp.abs(out - ref)))
        # bf16 MXU inputs (f32 accumulation) -> loosened tolerance vs f32 reference
        assert jnp.allclose(out, ref, atol=5e-2, rtol=5e-2), (
            f"path={path}: mismatch vs reference; max abs err = {err}")

    print("KERNEL_OK")
</pallas_src>

<mosaic_0001>
module attributes {stable_mosaic.version = 11 : i64} {
  func.func @_graphsage_fused_small_kernel(%arg0: i32, %arg1: memref<512x512xbf16, #tpu.memory_space<vmem>>, %arg2: memref<512x128xbf16, #tpu.memory_space<vmem>>, %arg3: memref<128x128xbf16, #tpu.memory_space<vmem>>, %arg4: memref<128x128xbf16, #tpu.memory_space<vmem>>, %arg5: memref<1x128xf32, #tpu.memory_space<vmem>>, %arg6: memref<128x128xbf16, #tpu.memory_space<vmem>>, %arg7: memref<128x128xbf16, #tpu.memory_space<vmem>>, %arg8: memref<1x128xf32, #tpu.memory_space<vmem>>, %arg9: memref<512x1xf32, #tpu.memory_space<vmem>>, %arg10: memref<512x128xf32, #tpu.memory_space<vmem>>) attributes {dimension_semantics = [#tpu.dimension_semantics<arbitrary>], iteration_bounds = array<i64: 1>, scalar_prefetch = 0 : i64, scratch_operands = 0 : i64, tpu.core_type = #tpu.core_type<tc>, window_params = [{pipeline_mode = #tpu.pipeline_mode<synchronous>, transform_indices = @transform_0, window_bounds = array<i64: 512, 512>}, {pipeline_mode = #tpu.pipeline_mode<synchronous>, transform_indices = @transform_1, window_bounds = array<i64: 512, 128>}, {pipeline_mode = #tpu.pipeline_mode<synchronous>, transform_indices = @transform_2, window_bounds = array<i64: 128, 128>}, {pipeline_mode = #tpu.pipeline_mode<synchronous>, transform_indices = @transform_3, window_bounds = array<i64: 128, 128>}, {pipeline_mode = #tpu.pipeline_mode<synchronous>, transform_indices = @transform_4, window_bounds = array<i64: 1, 128>}, {pipeline_mode = #tpu.pipeline_mode<synchronous>, transform_indices = @transform_5, window_bounds = array<i64: 128, 128>}, {pipeline_mode = #tpu.pipeline_mode<synchronous>, transform_indices = @transform_6, window_bounds = array<i64: 128, 128>}, {pipeline_mode = #tpu.pipeline_mode<synchronous>, transform_indices = @transform_7, window_bounds = array<i64: 1, 128>}, {pipeline_mode = #tpu.pipeline_mode<synchronous>, transform_indices = @transform_8, window_bounds = array<i64: 512, 1>}, {pipeline_mode = #tpu.pipeline_mode<synchronous>, transform_indices = @transform_9, window_bounds = array<i64: 512, 128>}]} {
    %c0 = arith.constant 0 : index
    %c0_0 = arith.constant 0 : index
    %0 = vector.load %arg1[%c0, %c0_0] : memref<512x512xbf16, #tpu.memory_space<vmem>>, vector<512x512xbf16>
    %c0_1 = arith.constant 0 : index
    %c0_2 = arith.constant 0 : index
    %1 = vector.load %arg2[%c0_1, %c0_2] : memref<512x128xbf16, #tpu.memory_space<vmem>>, vector<512x128xbf16>
    %c0_3 = arith.constant 0 : index
    %c0_4 = arith.constant 0 : index
    %2 = vector.load %arg9[%c0_3, %c0_4] : memref<512x1xf32, #tpu.memory_space<vmem>>, vector<512x1xf32>
    %c0_5 = arith.constant 0 : index
    %c0_6 = arith.constant 0 : index
    %3 = vector.load %arg3[%c0_5, %c0_6] : memref<128x128xbf16, #tpu.memory_space<vmem>>, vector<128x128xbf16>
    %cst = arith.constant dense<0.000000e+00> : vector<512x128xf32>
    %4 = tpu.matmul %1, %3, %cst {dimension_numbers = #tpu.dot_dimension_numbers<[1], [0], [0], [1], [0, 0, 1, 1], [], []>} : vector<512x128xbf16>, vector<128x128xbf16>, vector<512x128xf32> -> vector<512x128xf32>
    %5 = arith.truncf %4 : vector<512x128xf32> to vector<512x128xbf16>
    %cst_7 = arith.constant dense<0.000000e+00> : vector<512x128xf32>
    %6 = tpu.matmul %0, %5, %cst_7 {dimension_numbers = #tpu.dot_dimension_numbers<[1], [0], [0], [1], [0, 0, 1, 1], [], []>} : vector<512x512xbf16>, vector<512x128xbf16>, vector<512x128xf32> -> vector<512x128xf32>
    %7 = vector.broadcast %2 : vector<512x1xf32> to vector<512x128xf32>
    %8 = arith.mulf %7, %6 : vector<512x128xf32>
    %c0_8 = arith.constant 0 : index
    %c0_9 = arith.constant 0 : index
    %9 = vector.load %arg4[%c0_8, %c0_9] : memref<128x128xbf16, #tpu.memory_space<vmem>>, vector<128x128xbf16>
    %cst_10 = arith.constant dense<0.000000e+00> : vector<512x128xf32>
    %10 = tpu.matmul %1, %9, %cst_10 {dimension_numbers = #tpu.dot_dimension_numbers<[1], [0], [0], [1], [0, 0, 1, 1], [], []>} : vector<512x128xbf16>, vector<128x128xbf16>, vector<512x128xf32> -> vector<512x128xf32>
    %11 = arith.addf %8, %10 : vector<512x128xf32>
    %c0_11 = arith.constant 0 : index
    %c0_12 = arith.constant 0 : index
    %12 = vector.load %arg5[%c0_11, %c0_12] : memref<1x128xf32, #tpu.memory_space<vmem>>, vector<1x128xf32>
    %13 = vector.broadcast %12 : vector<1x128xf32> to vector<512x128xf32>
    %14 = arith.addf %11, %13 : vector<512x128xf32>
    %cst_13 = arith.constant 0.000000e+00 : f32
    %15 = vector.broadcast %cst_13 : f32 to vector<512x128xf32>
    %16 = arith.maximumf %14, %15 : vector<512x128xf32>
    %17 = arith.truncf %16 : vector<512x128xf32> to vector<512x128xbf16>
    %c0_14 = arith.constant 0 : index
    %c0_15 = arith.constant 0 : index
    %18 = vector.load %arg6[%c0_14, %c0_15] : memref<128x128xbf16, #tpu.memory_space<vmem>>, vector<128x128xbf16>
    %cst_16 = arith.constant dense<0.000000e+00> : vector<512x128xf32>
    %19 = tpu.matmul %17, %18, %cst_16 {dimension_numbers = #tpu.dot_dimension_numbers<[1], [0], [0], [1], [0, 0, 1, 1], [], []>} : vector<512x128xbf16>, vector<128x128xbf16>, vector<512x128xf32> -> vector<512x128xf32>
    %20 = arith.truncf %19 : vector<512x128xf32> to vector<512x128xbf16>
    %cst_17 = arith.constant dense<0.000000e+00> : vector<512x128xf32>
    %21 = tpu.matmul %0, %20, %cst_17 {dimension_numbers = #tpu.dot_dimension_numbers<[1], [0], [0], [1], [0, 0, 1, 1], [], []>} : vector<512x512xbf16>, vector<512x128xbf16>, vector<512x128xf32> -> vector<512x128xf32>
    %22 = vector.broadcast %2 : vector<512x1xf32> to vector<512x128xf32>
    %23 = arith.mulf %22, %21 : vector<512x128xf32>
    %c0_18 = arith.constant 0 : index
    %c0_19 = arith.constant 0 : index
    %24 = vector.load %arg7[%c0_18, %c0_19] : memref<128x128xbf16, #tpu.memory_space<vmem>>, vector<128x128xbf16>
    %cst_20 = arith.constant dense<0.000000e+00> : vector<512x128xf32>
    %25 = tpu.matmul %17, %24, %cst_20 {dimension_numbers = #tpu.dot_dimension_numbers<[1], [0], [0], [1], [0, 0, 1, 1], [], []>} : vector<512x128xbf16>, vector<128x128xbf16>, vector<512x128xf32> -> vector<512x128xf32>
    %26 = arith.addf %23, %25 : vector<512x128xf32>
    %c0_21 = arith.constant 0 : index
    %c0_22 = arith.constant 0 : index
    %27 = vector.load %arg8[%c0_21, %c0_22] : memref<1x128xf32, #tpu.memory_space<vmem>>, vector<1x128xf32>
    %28 = vector.broadcast %27 : vector<1x128xf32> to vector<512x128xf32>
    %29 = arith.addf %26, %28 : vector<512x128xf32>
    %c0_23 = arith.constant 0 : index
    %c0_24 = arith.constant 0 : index
    %30 = vector.load %arg10[%c0_23, %c0_24] : memref<512x128xf32, #tpu.memory_space<vmem>>, vector<512x128xf32>
    tpu.vector_store %arg10[%c0_23, %c0_24], %29 {strides = array<i32>} : memref<512x128xf32, #tpu.memory_space<vmem>>, vector<512x128xf32>,
    return
  }
  func.func @transform_0(%arg0: i32) -> (i32, i32) {
    %c0_i32 = arith.constant 0 : i32
    %c0_i32_0 = arith.constant 0 : i32
    %c0_i32_1 = arith.constant 0 : i32
    return %c0_i32, %c0_i32_0 : i32, i32
  }
  func.func @transform_1(%arg0: i32) -> (i32, i32) {
    %c0_i32 = arith.constant 0 : i32
    %c0_i32_0 = arith.constant 0 : i32
    %c0_i32_1 = arith.constant 0 : i32
    return %c0_i32, %c0_i32_0 : i32, i32
  }
  func.func @transform_2(%arg0: i32) -> (i32, i32) {
    %c0_i32 = arith.constant 0 : i32
    %c0_i32_0 = arith.constant 0 : i32
    %c0_i32_1 = arith.constant 0 : i32
    return %c0_i32, %c0_i32_0 : i32, i32
  }
  func.func @transform_3(%arg0: i32) -> (i32, i32) {
    %c0_i32 = arith.constant 0 : i32
    %c0_i32_0 = arith.constant 0 : i32
    %c0_i32_1 = arith.constant 0 : i32
    return %c0_i32, %c0_i32_0 : i32, i32
  }
  func.func @transform_4(%arg0: i32) -> (i32, i32) {
    %c0_i32 = arith.constant 0 : i32
    %c0_i32_0 = arith.constant 0 : i32
    %c0_i32_1 = arith.constant 0 : i32
    return %c0_i32, %c0_i32_0 : i32, i32
  }
  func.func @transform_5(%arg0: i32) -> (i32, i32) {
    %c0_i32 = arith.constant 0 : i32
    %c0_i32_0 = arith.constant 0 : i32
    %c0_i32_1 = arith.constant 0 : i32
    return %c0_i32, %c0_i32_0 : i32, i32
  }
  func.func @transform_6(%arg0: i32) -> (i32, i32) {
    %c0_i32 = arith.constant 0 : i32
    %c0_i32_0 = arith.constant 0 : i32
    %c0_i32_1 = arith.constant 0 : i32
    return %c0_i32, %c0_i32_0 : i32, i32
  }
  func.func @transform_7(%arg0: i32) -> (i32, i32) {
    %c0_i32 = arith.constant 0 : i32
    %c0_i32_0 = arith.constant 0 : i32
    %c0_i32_1 = arith.constant 0 : i32
    return %c0_i32, %c0_i32_0 : i32, i32
  }
  func.func @transform_8(%arg0: i32) -> (i32, i32) {
    %c0_i32 = arith.constant 0 : i32
    %c0_i32_0 = arith.constant 0 : i32
    %c0_i32_1 = arith.constant 0 : i32
    return %c0_i32, %c0_i32_0 : i32, i32
  }
  func.func @transform_9(%arg0: i32) -> (i32, i32) {
    %c0_i32 = arith.constant 0 : i32
    %c0_i32_0 = arith.constant 0 : i32
    %c0_i32_1 = arith.constant 0 : i32
    return %c0_i32, %c0_i32_0 : i32, i32
  }
}

</mosaic_0001>

<llo_original>
// kernel: graphsage_forward.1
$region0: #{graphsage_forward.1}
  #allocation0 [shape = 'u32[]', space=smem, size = 0x4, offset = 0x4, fixed_abs, tag = 'smem constant byte address 0x4 - core index']
  #allocation1 [shape = 'u32[144,128]{1,0:T(1,128)}', space=vmem, size = 0x12000, scoped, tag = 'internal scratch']
  %s0 = inlined_call_operand.vmem [shape: bf16[512,512], index: 0, kind: input, shape index: {}]
  %s1 = inlined_call_operand.vmem [shape: bf16[512,128], index: 1, kind: input, shape index: {}]
  %s2 = inlined_call_operand.vmem [shape: bf16[128,128], index: 2, kind: input, shape index: {}]
  %s3 = inlined_call_operand.vmem [shape: bf16[128,128], index: 3, kind: input, shape index: {}]
  %s4 = inlined_call_operand.vmem [shape: f32[1,128], index: 4, kind: input, shape index: {}]
  %s5 = inlined_call_operand.vmem [shape: bf16[128,128], index: 5, kind: input, shape index: {}]
  %s6 = inlined_call_operand.vmem [shape: bf16[128,128], index: 6, kind: input, shape index: {}]
  %s7 = inlined_call_operand.vmem [shape: f32[1,128], index: 7, kind: input, shape index: {}]
  %s8 = inlined_call_operand.vmem [shape: f32[512,1], index: 8, kind: input, shape index: {}]
  %s9 = inlined_call_operand.vmem [shape: f32[512,128], index: 9, kind: output, shape index: {}]
  %s10 = sld [smem:[#allocation0]]
  $region46: #{graphsage_forward.1} parent=0
    _
  %s12 = ssub.s32 1, %s10
  %s13 = scalar_select 0, %s12, %s10
  // Predicated region
  $region2: #{graphsage_forward.1} parent=0 // pred_check
    _
  $region3: #{graphsage_forward.1} parent=0 // pred_check_branch
    %15 = sbr.rel (0) target = $region5
  $region4: #{graphsage_forward.1} parent=0 // pred_region
    _
  $region5: #{graphsage_forward.1} parent=0 // pred_fallthru
    _
  // Predicated region
  $region6: #{graphsage_forward.1} parent=0 // pred_check
    _
  $region7: #{graphsage_forward.1} parent=0 // pred_check_branch
    %17 = sbr.rel (0) target = $region9
  $region8: #{graphsage_forward.1} parent=0 // pred_region
    _
  $region9: #{graphsage_forward.1} parent=0 // pred_fallthru
    _
  // Predicated region
  $region10: #{graphsage_forward.1} parent=0 // pred_check
    _
  $region11: #{graphsage_forward.1} parent=0 // pred_check_branch
    %19 = sbr.rel (0) target = $region13
  $region12: #{graphsage_forward.1} parent=0 // pred_region
    _
  $region13: #{graphsage_forward.1} parent=0 // pred_fallthru
    _
  // Predicated region
  $region14: #{graphsage_forward.1} parent=0 // pred_check
    _
  $region15: #{graphsage_forward.1} parent=0 // pred_check_branch
    %21 = sbr.rel (0) target = $region17
  $region16: #{graphsage_forward.1} parent=0 // pred_region
    _
  $region17: #{graphsage_forward.1} parent=0 // pred_fallthru
    _
  // Predicated region
  $region18: #{graphsage_forward.1} parent=0 // pred_check
    _
  $region19: #{graphsage_forward.1} parent=0 // pred_check_branch
    %23 = sbr.rel (0) target = $region21
  $region20: #{graphsage_forward.1} parent=0 // pred_region
    _
  $region21: #{graphsage_forward.1} parent=0 // pred_fallthru
    _
  // Predicated region
  $region22: #{graphsage_forward.1} parent=0 // pred_check
    _
  $region23: #{graphsage_forward.1} parent=0 // pred_check_branch
    %25 = sbr.rel (0) target = $region25
  $region24: #{graphsage_forward.1} parent=0 // pred_region
    _
  $region25: #{graphsage_forward.1} parent=0 // pred_fallthru
    _
  // Predicated region
  $region26: #{graphsage_forward.1} parent=0 // pred_check
    _
  $region27: #{graphsage_forward.1} parent=0 // pred_check_branch
    %27 = sbr.rel (0) target = $region29
  $region28: #{graphsage_forward.1} parent=0 // pred_region
    _
  $region29: #{graphsage_forward.1} parent=0 // pred_fallthru
    _
  // Predicated region
  $region30: #{graphsage_forward.1} parent=0 // pred_check
    _
  $region31: #{graphsage_forward.1} parent=0 // pred_check_branch
    %29 = sbr.rel (0) target = $region33
  $region32: #{graphsage_forward.1} parent=0 // pred_region
    _
  $region33: #{graphsage_forward.1} parent=0 // pred_fallthru
    _
  // Predicated region
  $region34: #{graphsage_forward.1} parent=0 // pred_check
    _
  $region35: #{graphsage_forward.1} parent=0 // pred_check_branch
    %31 = sbr.rel (0) target = $region37
  $region36: #{graphsage_forward.1} parent=0 // pred_region
    _
  $region37: #{graphsage_forward.1} parent=0 // pred_fallthru
    _
  %v33 = vld [vmem:[%s0] sm:$0xff]
  %v34 = vld [vmem:[%s0 + $0x8] sm:$0xff]
  %v35 = vld [vmem:[%s0 + $0x10] sm:$0xff]
  %v36 = vld [vmem:[%s0 + $0x18] sm:$0xff]
  %v37 = vld [vmem:[%s0 + $0x20] sm:$0xff]
  %v38 = vld [vmem:[%s0 + $0x28] sm:$0xff]
  %v39 = vld [vmem:[%s0 + $0x30] sm:$0xff]
  %v40 = vld [vmem:[%s0 + $0x38] sm:$0xff]
  %v41 = vld [vmem:[%s0 + $0x40] sm:$0xff]
  %v42 = vld [vmem:[%s0 + $0x48] sm:$0xff]
  %v43 = vld [vmem:[%s0 + $0x50] sm:$0xff]
  %v44 = vld [vmem:[%s0 + $0x58] sm:$0xff]
  %v45 = vld [vmem:[%s0 + $0x60] sm:$0xff]
  %v46 = vld [vmem:[%s0 + $0x68] sm:$0xff]
  %v47 = vld [vmem:[%s0 + $0x70] sm:$0xff]
  %v48 = vld [vmem:[%s0 + $0x78] sm:$0xff]
  %v49 = vld [vmem:[%s0 + $0x80] sm:$0xff]
  %v50 = vld [vmem:[%s0 + $0x88] sm:$0xff]
  %v51 = vld [vmem:[%s0 + $0x90] sm:$0xff]
  %v52 = vld [vmem:[%s0 + $0x98] sm:$0xff]
  %v53 = vld [vmem:[%s0 + $0xa0] sm:$0xff]
  %v54 = vld [vmem:[%s0 + $0xa8] sm:$0xff]
  %v55 = vld [vmem:[%s0 + $0xb0] sm:$0xff]
  %v56 = vld [vmem:[%s0 + $0xb8] sm:$0xff]
  %v57 = vld [vmem:[%s0 + $0xc0] sm:$0xff]
  %v58 = vld [vmem:[%s0 + $0xc8] sm:$0xff]
  %v59 = vld [vmem:[%s0 + $0xd0] sm:$0xff]
  %v60 = vld [vmem:[%s0 + $0xd8] sm:$0xff]
  %v61 = vld [vmem:[%s0 + $0xe0] sm:$0xff]
  %v62 = vld [vmem:[%s0 + $0xe8] sm:$0xff]
  %v63 = vld [vmem:[%s0 + $0xf0] sm:$0xff]
  %v64 = vld [vmem:[%s0 + $0xf8] sm:$0xff]
  %v65 = vld [vmem:[%s0 + $0x100] sm:$0xff]
  %v66 = vld [vmem:[%s0 + $0x108] sm:$0xff]
  %v67 = vld [vmem:[%s0 + $0x110] sm:$0xff]
  %v68 = vld [vmem:[%s0 + $0x118] sm:$0xff]
  %v69 = vld [vmem:[%s0 + $0x120] sm:$0xff]
  %v70 = vld [vmem:[%s0 + $0x128] sm:$0xff]
  %v71 = vld [vmem:[%s0 + $0x130] sm:$0xff]
  %v72 = vld [vmem:[%s0 + $0x138] sm:$0xff]
  %v73 = vld [vmem:[%s0 + $0x140] sm:$0xff]
  %v74 = vld [vmem:[%s0 + $0x148] sm:$0xff]
  %v75 = vld [vmem:[%s0 + $0x150] sm:$0xff]
  %v76 = vld [vmem:[%s0 + $0x158] sm:$0xff]
  %v77 = vld [vmem:[%s0 + $0x160] sm:$0xff]
  %v78 = vld [vmem:[%s0 + $0x168] sm:$0xff]
  %v79 = vld [vmem:[%s0 + $0x170] sm:$0xff]
  %v80 = vld [vmem:[%s0 + $0x178] sm:$0xff]
  %v81 = vld [vmem:[%s0 + $0x180] sm:$0xff]
  %v82 = vld [vmem:[%s0 + $0x188] sm:$0xff]
  %v83 = vld [vmem:[%s0 + $0x190] sm:$0xff]
  %v84 = vld [vmem:[%s0 + $0x198] sm:$0xff]
  %v85 = vld [vmem:[%s0 + $0x1a0] sm:$0xff]
  %v86 = vld [vmem:[%s0 + $0x1a8] sm:$0xff]
  %v87 = vld [vmem:[%s0 + $0x1b0] sm:$0xff]
  %v88 = vld [vmem:[%s0 + $0x1b8] sm:$0xff]
  %v89 = vld [vmem:[%s0 + $0x1c0] sm:$0xff]
  %v90 = vld [vmem:[%s0 + $0x1c8] sm:$0xff]
  %v91 = vld [vmem:[%s0 + $0x1d0] sm:$0xff]
  %v92 = vld [vmem:[%s0 + $0x1d8] sm:$0xff]
  %v93 = vld [vmem:[%s0 + $0x1e0] sm:$0xff]
  %v94 = vld [vmem:[%s0 + $0x1e8] sm:$0xff]
  %v95 = vld [vmem:[%s0 + $0x1f0] sm:$0xff]
  %v96 = vld [vmem:[%s0 + $0x1f8] sm:$0xff]
  %v97 = vld [vmem:[%s0 + $0x200] sm:$0xff]
  %v98 = vld [vmem:[%s0 + $0x208] sm:$0xff]
  %v99 = vld [vmem:[%s0 + $0x210] sm:$0xff]
  %v100 = vld [vmem:[%s0 + $0x218] sm:$0xff]
  %v101 = vld [vmem:[%s0 + $0x220] sm:$0xff]
  %v102 = vld [vmem:[%s0 + $0x228] sm:$0xff]
  %v103 = vld [vmem:[%s0 + $0x230] sm:$0xff]
  %v104 = vld [vmem:[%s0 + $0x238] sm:$0xff]
  %v105 = vld [vmem:[%s0 + $0x240] sm:$0xff]
  %v106 = vld [vmem:[%s0 + $0x248] sm:$0xff]
  %v107 = vld [vmem:[%s0 + $0x250] sm:$0xff]
  %v108 = vld [vmem:[%s0 + $0x258] sm:$0xff]
  %v109 = vld [vmem:[%s0 + $0x260] sm:$0xff]
  %v110 = vld [vmem:[%s0 + $0x268] sm:$0xff]
  %v111 = vld [vmem:[%s0 + $0x270] sm:$0xff]
  %v112 = vld [vmem:[%s0 + $0x278] sm:$0xff]
  %v113 = vld [vmem:[%s0 + $0x280] sm:$0xff]
  %v114 = vld [vmem:[%s0 + $0x288] sm:$0xff]
  %v115 = vld [vmem:[%s0 + $0x290] sm:$0xff]
  %v116 = vld [vmem:[%s0 + $0x298] sm:$0xff]
  %v117 = vld [vmem:[%s0 + $0x2a0] sm:$0xff]
  %v118 = vld [vmem:[%s0 + $0x2a8] sm:$0xff]
  %v119 = vld [vmem:[%s0 + $0x2b0] sm:$0xff]
  %v120 = vld [vmem:[%s0 + $0x2b8] sm:$0xff]
  %v121 = vld [vmem:[%s0 + $0x2c0] sm:$0xff]
  %v122 = vld [vmem:[%s0 + $0x2c8] sm:$0xff]
  %v123 = vld [vmem:[%s0 + $0x2d0] sm:$0xff]
  %v124 = vld [vmem:[%s0 + $0x2d8] sm:$0xff]
  %v125 = vld [vmem:[%s0 + $0x2e0] sm:$0xff]
  %v126 = vld [vmem:[%s0 + $0x2e8] sm:$0xff]
  %v127 = vld [vmem:[%s0 + $0x2f0] sm:$0xff]
  %v128 = vld [vmem:[%s0 + $0x2f8] sm:$0xff]
  %v129 = vld [vmem:[%s0 + $0x300] sm:$0xff]
  %v130 = vld [vmem:[%s0 + $0x308] sm:$0xff]
  %v131 = vld [vmem:[%s0 + $0x310] sm:$0xff]
  %v132 = vld [vmem:[%s0 + $0x318] sm:$0xff]
  %v133 = vld [vmem:[%s0 + $0x320] sm:$0xff]
  %v134 = vld [vmem:[%s0 + $0x328] sm:$0xff]
  %v135 = vld [vmem:[%s0 + $0x330] sm:$0xff]
  %v136 = vld [vmem:[%s0 + $0x338] sm:$0xff]
  %v137 = vld [vmem:[%s0 + $0x340] sm:$0xff]
  %v138 = vld [vmem:[%s0 + $0x348] sm:$0xff]
  %v139 = vld [vmem:[%s0 + $0x350] sm:$0xff]
  %v140 = vld [vmem:[%s0 + $0x358] sm:$0xff]
  %v141 = vld [vmem:[%s0 + $0x360] sm:$0xff]
  %v142 = vld [vmem:[%s0 + $0x368] sm:$0xff]
  %v143 = vld [vmem:[%s0 + $0x370] sm:$0xff]
  %v144 = vld [vmem:[%s0 + $0x378] sm:$0xff]
  %v145 = vld [vmem:[%s0 + $0x380] sm:$0xff]
  %v146 = vld [vmem:[%s0 + $0x388] sm:$0xff]
  %v147 = vld [vmem:[%s0 + $0x390] sm:$0xff]
  %v148 = vld [vmem:[%s0 + $0x398] sm:$0xff]
  %v149 = vld [vmem:[%s0 + $0x3a0] sm:$0xff]
  %v150 = vld [vmem:[%s0 + $0x3a8] sm:$0xff]
  %v151 = vld [vmem:[%s0 + $0x3b0] sm:$0xff]
  %v152 = vld [vmem:[%s0 + $0x3b8] sm:$0xff]
  %v153 = vld [vmem:[%s0 + $0x3c0] sm:$0xff]
  %v154 = vld [vmem:[%s0 + $0x3c8] sm:$0xff]
  %v155 = vld [vmem:[%s0 + $0x3d0] sm:$0xff]
  %v156 = vld [vmem:[%s0 + $0x3d8] sm:$0xff]
  %v157 = vld [vmem:[%s0 + $0x3e0] sm:$0xff]
  %v158 = vld [vmem:[%s0 + $0x3e8] sm:$0xff]
  %v159 = vld [vmem:[%s0 + $0x3f0] sm:$0xff]
  %v160 = vld [vmem:[%s0 + $0x3f8] sm:$0xff]
  %v161 = vld [vmem:[%s1] sm:$0xf]
  %v162 = vld [vmem:[%s1 + $0x4] sm:$0xf]
  %v163 = vld [vmem:[%s1 + $0x8] sm:$0xf]
  %v164 = vld [vmem:[%s1 + $0xc] sm:$0xf]
  %v165 = vld [vmem:[%s1 + $0x10] sm:$0xf]
  %v166 = vld [vmem:[%s1 + $0x14] sm:$0xf]
  %v167 = vld [vmem:[%s1 + $0x18] sm:$0xf]
  %v168 = vld [vmem:[%s1 + $0x1c] sm:$0xf]
  %v169 = vld [vmem:[%s1 + $0x20] sm:$0xf]
  %v170 = vld [vmem:[%s1 + $0x24] sm:$0xf]
  %v171 = vld [vmem:[%s1 + $0x28] sm:$0xf]
  %v172 = vld [vmem:[%s1 + $0x2c] sm:$0xf]
  %v173 = vld [vmem:[%s1 + $0x30] sm:$0xf]
  %v174 = vld [vmem:[%s1 + $0x34] sm:$0xf]
  %v175 = vld [vmem:[%s1 + $0x38] sm:$0xf]
  %v176 = vld [vmem:[%s1 + $0x3c] sm:$0xf]
  %v177 = vld [vmem:[%s1 + $0x40] sm:$0xf]
  %v178 = vld [vmem:[%s1 + $0x44] sm:$0xf]
  %v179 = vld [vmem:[%s1 + $0x48] sm:$0xf]
  %v180 = vld [vmem:[%s1 + $0x4c] sm:$0xf]
  %v181 = vld [vmem:[%s1 + $0x50] sm:$0xf]
  %v182 = vld [vmem:[%s1 + $0x54] sm:$0xf]
  %v183 = vld [vmem:[%s1 + $0x58] sm:$0xf]
  %v184 = vld [vmem:[%s1 + $0x5c] sm:$0xf]
  %v185 = vld [vmem:[%s1 + $0x60] sm:$0xf]
  %v186 = vld [vmem:[%s1 + $0x64] sm:$0xf]
  %v187 = vld [vmem:[%s1 + $0x68] sm:$0xf]
  %v188 = vld [vmem:[%s1 + $0x6c] sm:$0xf]
  %v189 = vld [vmem:[%s1 + $0x70] sm:$0xf]
  %v190 = vld [vmem:[%s1 + $0x74] sm:$0xf]
  %v191 = vld [vmem:[%s1 + $0x78] sm:$0xf]
  %v192 = vld [vmem:[%s1 + $0x7c] sm:$0xf]
  %v193 = vld [vmem:[%s1 + $0x80] sm:$0xf]
  %v194 = vld [vmem:[%s1 + $0x84] sm:$0xf]
  %v195 = vld [vmem:[%s1 + $0x88] sm:$0xf]
  %v196 = vld [vmem:[%s1 + $0x8c] sm:$0xf]
  %v197 = vld [vmem:[%s1 + $0x90] sm:$0xf]
  %v198 = vld [vmem:[%s1 + $0x94] sm:$0xf]
  %v199 = vld [vmem:[%s1 + $0x98] sm:$0xf]
  %v200 = vld [vmem:[%s1 + $0x9c] sm:$0xf]
  %v201 = vld [vmem:[%s1 + $0xa0] sm:$0xf]
  %v202 = vld [vmem:[%s1 + $0xa4] sm:$0xf]
  %v203 = vld [vmem:[%s1 + $0xa8] sm:$0xf]
  %v204 = vld [vmem:[%s1 + $0xac] sm:$0xf]
  %v205 = vld [vmem:[%s1 + $0xb0] sm:$0xf]
  %v206 = vld [vmem:[%s1 + $0xb4] sm:$0xf]
  %v207 = vld [vmem:[%s1 + $0xb8] sm:$0xf]
  %v208 = vld [vmem:[%s1 + $0xbc] sm:$0xf]
  %v209 = vld [vmem:[%s1 + $0xc0] sm:$0xf]
  %v210 = vld [vmem:[%s1 + $0xc4] sm:$0xf]
  %v211 = vld [vmem:[%s1 + $0xc8] sm:$0xf]
  %v212 = vld [vmem:[%s1 + $0xcc] sm:$0xf]
  %v213 = vld [vmem:[%s1 + $0xd0] sm:$0xf]
  %v214 = vld [vmem:[%s1 + $0xd4] sm:$0xf]
  %v215 = vld [vmem:[%s1 + $0xd8] sm:$0xf]
  %v216 = vld [vmem:[%s1 + $0xdc] sm:$0xf]
  %v217 = vld [vmem:[%s1 + $0xe0] sm:$0xf]
  %v218 = vld [vmem:[%s1 + $0xe4] sm:$0xf]
  %v219 = vld [vmem:[%s1 + $0xe8] sm:$0xf]
  %v220 = vld [vmem:[%s1 + $0xec] sm:$0xf]
  %v221 = vld [vmem:[%s1 + $0xf0] sm:$0xf]
  %v222 = vld [vmem:[%s1 + $0xf4] sm:$0xf]
  %v223 = vld [vmem:[%s1 + $0xf8] sm:$0xf]
  %v224 = vld [vmem:[%s1 + $0xfc] sm:$0xf]
  %v225 = vld [vmem:[%s8] sm:$0xff]
  %v226 = vld [vmem:[%s8 + $0x8] sm:$0xff]
  %v227 = vld [vmem:[%s8 + $0x10] sm:$0xff]
  %v228 = vld [vmem:[%s8 + $0x18] sm:$0xff]
  %v229 = vld [vmem:[%s8 + $0x20] sm:$0xff]
  %v230 = vld [vmem:[%s8 + $0x28] sm:$0xff]
  %v231 = vld [vmem:[%s8 + $0x30] sm:$0xff]
  %v232 = vld [vmem:[%s8 + $0x38] sm:$0xff]
  %v233 = vld [vmem:[%s8 + $0x40] sm:$0xff]
  %v234 = vld [vmem:[%s8 + $0x48] sm:$0xff]
  %v235 = vld [vmem:[%s8 + $0x50] sm:$0xff]
  %v236 = vld [vmem:[%s8 + $0x58] sm:$0xff]
  %v237 = vld [vmem:[%s8 + $0x60] sm:$0xff]
  %v238 = vld [vmem:[%s8 + $0x68] sm:$0xff]
  %v239 = vld [vmem:[%s8 + $0x70] sm:$0xff]
  %v240 = vld [vmem:[%s8 + $0x78] sm:$0xff]
  %v241 = vld [vmem:[%s8 + $0x80] sm:$0xff]
  %v242 = vld [vmem:[%s8 + $0x88] sm:$0xff]
  %v243 = vld [vmem:[%s8 + $0x90] sm:$0xff]
  %v244 = vld [vmem:[%s8 + $0x98] sm:$0xff]
  %v245 = vld [vmem:[%s8 + $0xa0] sm:$0xff]
  %v246 = vld [vmem:[%s8 + $0xa8] sm:$0xff]
  %v247 = vld [vmem:[%s8 + $0xb0] sm:$0xff]
  %v248 = vld [vmem:[%s8 + $0xb8] sm:$0xff]
  %v249 = vld [vmem:[%s8 + $0xc0] sm:$0xff]
  %v250 = vld [vmem:[%s8 + $0xc8] sm:$0xff]
  %v251 = vld [vmem:[%s8 + $0xd0] sm:$0xff]
  %v252 = vld [vmem:[%s8 + $0xd8] sm:$0xff]
  %v253 = vld [vmem:[%s8 + $0xe0] sm:$0xff]
  %v254 = vld [vmem:[%s8 + $0xe8] sm:$0xff]
  %v255 = vld [vmem:[%s8 + $0xf0] sm:$0xff]
  %v256 = vld [vmem:[%s8 + $0xf8] sm:$0xff]
  %v257 = vld [vmem:[%s8 + $0x100] sm:$0xff]
  %v258 = vld [vmem:[%s8 + $0x108] sm:$0xff]
  %v259 = vld [vmem:[%s8 + $0x110] sm:$0xff]
  %v260 = vld [vmem:[%s8 + $0x118] sm:$0xff]
  %v261 = vld [vmem:[%s8 + $0x120] sm:$0xff]
  %v262 = vld [vmem:[%s8 + $0x128] sm:$0xff]
  %v263 = vld [vmem:[%s8 + $0x130] sm:$0xff]
  %v264 = vld [vmem:[%s8 + $0x138] sm:$0xff]
  %v265 = vld [vmem:[%s8 + $0x140] sm:$0xff]
  %v266 = vld [vmem:[%s8 + $0x148] sm:$0xff]
  %v267 = vld [vmem:[%s8 + $0x150] sm:$0xff]
  %v268 = vld [vmem:[%s8 + $0x158] sm:$0xff]
  %v269 = vld [vmem:[%s8 + $0x160] sm:$0xff]
  %v270 = vld [vmem:[%s8 + $0x168] sm:$0xff]
  %v271 = vld [vmem:[%s8 + $0x170] sm:$0xff]
  %v272 = vld [vmem:[%s8 + $0x178] sm:$0xff]
  %v273 = vld [vmem:[%s8 + $0x180] sm:$0xff]
  %v274 = vld [vmem:[%s8 + $0x188] sm:$0xff]
  %v275 = vld [vmem:[%s8 + $0x190] sm:$0xff]
  %v276 = vld [vmem:[%s8 + $0x198] sm:$0xff]
  %v277 = vld [vmem:[%s8 + $0x1a0] sm:$0xff]
  %v278 = vld [vmem:[%s8 + $0x1a8] sm:$0xff]
  %v279 = vld [vmem:[%s8 + $0x1b0] sm:$0xff]
  %v280 = vld [vmem:[%s8 + $0x1b8] sm:$0xff]
  %v281 = vld [vmem:[%s8 + $0x1c0] sm:$0xff]
  %v282 = vld [vmem:[%s8 + $0x1c8] sm:$0xff]
  %v283 = vld [vmem:[%s8 + $0x1d0] sm:$0xff]
  %v284 = vld [vmem:[%s8 + $0x1d8] sm:$0xff]
  %v285 = vld [vmem:[%s8 + $0x1e0] sm:$0xff]
  %v286 = vld [vmem:[%s8 + $0x1e8] sm:$0xff]
  %v287 = vld [vmem:[%s8 + $0x1f0] sm:$0xff]
  %v288 = vld [vmem:[%s8 + $0x1f8] sm:$0xff]
  %v289 = vld [vmem:[%s2] sm:$0xf]
  %v290 = vld [vmem:[%s2 + $0x4] sm:$0xf]
  %v291 = vld [vmem:[%s2 + $0x8] sm:$0xf]
  %v292 = vld [vmem:[%s2 + $0xc] sm:$0xf]
  %v293 = vld [vmem:[%s2 + $0x10] sm:$0xf]
  %v294 = vld [vmem:[%s2 + $0x14] sm:$0xf]
  %v295 = vld [vmem:[%s2 + $0x18] sm:$0xf]
  %v296 = vld [vmem:[%s2 + $0x1c] sm:$0xf]
  %v297 = vld [vmem:[%s2 + $0x20] sm:$0xf]
  %v298 = vld [vmem:[%s2 + $0x24] sm:$0xf]
  %v299 = vld [vmem:[%s2 + $0x28] sm:$0xf]
  %v300 = vld [vmem:[%s2 + $0x2c] sm:$0xf]
  %v301 = vld [vmem:[%s2 + $0x30] sm:$0xf]
  %v302 = vld [vmem:[%s2 + $0x34] sm:$0xf]
  %v303 = vld [vmem:[%s2 + $0x38] sm:$0xf]
  %v304 = vld [vmem:[%s2 + $0x3c] sm:$0xf]
  %v369 = vunpack.c.l.b16 %v161
  %v370 = vunpack.c.l.b16 %v162
  %v371 = vunpack.c.l.b16 %v163
  %v372 = vunpack.c.l.b16 %v164
  %v373 = vunpack.c.l.b16 %v165
  %v374 = vunpack.c.l.b16 %v166
  %v375 = vunpack.c.l.b16 %v167
  %v376 = vunpack.c.l.b16 %v168
  %v377 = vunpack.c.l.b16 %v169
  %v378 = vunpack.c.l.b16 %v170
  %v379 = vunpack.c.l.b16 %v171
  %v380 = vunpack.c.l.b16 %v172
  %v381 = vunpack.c.l.b16 %v173
  %v382 = vunpack.c.l.b16 %v174
  %v383 = vunpack.c.l.b16 %v175
  %v384 = vunpack.c.l.b16 %v176
  %v385 = vunpack.c.l.b16 %v177
  %v386 = vunpack.c.l.b16 %v178
  %v387 = vunpack.c.l.b16 %v179
  %v388 = vunpack.c.l.b16 %v180
  %v389 = vunpack.c.l.b16 %v181
  %v390 = vunpack.c.l.b16 %v182
  %v391 = vunpack.c.l.b16 %v183
  %v392 = vunpack.c.l.b16 %v184
  %v393 = vunpack.c.l.b16 %v185
  %v394 = vunpack.c.l.b16 %v186
  %v395 = vunpack.c.l.b16 %v187
  %v396 = vunpack.c.l.b16 %v188
  %v397 = vunpack.c.l.b16 %v189
  %v398 = vunpack.c.l.b16 %v190
  %v399 = vunpack.c.l.b16 %v191
  %v400 = vunpack.c.l.b16 %v192
  %v401 = vunpack.c.l.b16 %v193
  %v402 = vunpack.c.l.b16 %v194
  %v403 = vunpack.c.l.b16 %v195
  %v404 = vunpack.c.l.b16 %v196
  %v405 = vunpack.c.l.b16 %v197
  %v406 = vunpack.c.l.b16 %v198
  %v407 = vunpack.c.l.b16 %v199
  %v408 = vunpack.c.l.b16 %v200
  %v409 = vunpack.c.l.b16 %v201
  %v410 = vunpack.c.l.b16 %v202
  %v411 = vunpack.c.l.b16 %v203
  %v412 = vunpack.c.l.b16 %v204
  %v413 = vunpack.c.l.b16 %v205
  %v414 = vunpack.c.l.b16 %v206
  %v415 = vunpack.c.l.b16 %v207
  %v416 = vunpack.c.l.b16 %v208
  %v417 = vunpack.c.l.b16 %v209
  %v418 = vunpack.c.l.b16 %v210
  %v419 = vunpack.c.l.b16 %v211
  %v420 = vunpack.c.l.b16 %v212
  %v421 = vunpack.c.l.b16 %v213
  %v422 = vunpack.c.l.b16 %v214
  %v423 = vunpack.c.l.b16 %v215
  %v424 = vunpack.c.l.b16 %v216
  %v425 = vunpack.c.l.b16 %v217
  %v426 = vunpack.c.l.b16 %v218
  %v427 = vunpack.c.l.b16 %v219
  %v428 = vunpack.c.l.b16 %v220
  %v429 = vunpack.c.l.b16 %v221
  %v430 = vunpack.c.l.b16 %v222
  %v431 = vunpack.c.l.b16 %v223
  %v432 = vunpack.c.l.b16 %v224
  %v433 = vpack.c.b16 %v370, %v369
  %v434 = vpack.c.b16 %v372, %v371
  %v435 = vpack.c.b16 %v374, %v373
  %v436 = vpack.c.b16 %v376, %v375
  %v437 = vpack.c.b16 %v378, %v377
  %v438 = vpack.c.b16 %v380, %v379
  %v439 = vpack.c.b16 %v382, %v381
  %v440 = vpack.c.b16 %v384, %v383
  %v441 = vpack.c.b16 %v386, %v385
  %v442 = vpack.c.b16 %v388, %v387
  %v443 = vpack.c.b16 %v390, %v389
  %v444 = vpack.c.b16 %v392, %v391
  %v445 = vpack.c.b16 %v394, %v393
  %v446 = vpack.c.b16 %v396, %v395
  %v447 = vpack.c.b16 %v398, %v397
  %v448 = vpack.c.b16 %v400, %v399
  %v449 = vpack.c.b16 %v402, %v401
  %v450 = vpack.c.b16 %v404, %v403
  %v451 = vpack.c.b16 %v406, %v405
  %v452 = vpack.c.b16 %v408, %v407
  %v453 = vpack.c.b16 %v410, %v409
  %v454 = vpack.c.b16 %v412, %v411
  %v455 = vpack.c.b16 %v414, %v413
  %v456 = vpack.c.b16 %v416, %v415
  %v457 = vpack.c.b16 %v418, %v417
  %v458 = vpack.c.b16 %v420, %v419
  %v459 = vpack.c.b16 %v422, %v421
  %v460 = vpack.c.b16 %v424, %v423
  %v461 = vpack.c.b16 %v426, %v425
  %v462 = vpack.c.b16 %v428, %v427
  %v463 = vpack.c.b16 %v430, %v429
  %v464 = vpack.c.b16 %v432, %v431
  %v513 = vunpack.c.l.b16 %v289
  %v514 = vunpack.c.l.b16 %v290
  %v515 = vunpack.c.l.b16 %v291
  %v516 = vunpack.c.l.b16 %v292
  %v517 = vunpack.c.l.b16 %v293
  %v518 = vunpack.c.l.b16 %v294
  %v519 = vunpack.c.l.b16 %v295
  %v520 = vunpack.c.l.b16 %v296
  %v521 = vunpack.c.l.b16 %v297
  %v522 = vunpack.c.l.b16 %v298
  %v523 = vunpack.c.l.b16 %v299
  %v524 = vunpack.c.l.b16 %v300
  %v525 = vunpack.c.l.b16 %v301
  %v526 = vunpack.c.l.b16 %v302
  %v527 = vunpack.c.l.b16 %v303
  %v528 = vunpack.c.l.b16 %v304
  %v529 = vpack.c.b16 %v514, %v513
  %v530 = vpack.c.b16 %v516, %v515
  %v531 = vpack.c.b16 %v518, %v517
  %v532 = vpack.c.b16 %v520, %v519
  %v533 = vpack.c.b16 %v522, %v521
  %v534 = vpack.c.b16 %v524, %v523
  %v535 = vpack.c.b16 %v526, %v525
  %v536 = vpack.c.b16 %v528, %v527
  %545 = vmatprep.subr.bf16.mxu0 0
  %546 = vmatpush1.bf16.msra.mxu0 %v529
  %547 = vmatprep.subr.bf16.mxu0 0
  %548 = vmatpush1.bf16.msra.mxu0 %v530
  %549 = vmatprep.subr.bf16.mxu0 0
  %550 = vmatpush1.bf16.msra.mxu0 %v531
  %551 = vmatprep.subr.bf16.mxu0 0
  %552 = vmatpush1.bf16.msra.mxu0 %v532
  %553 = vmatprep.subr.bf16.mxu0 0
  %554 = vmatpush1.bf16.msra.mxu0 %v533
  %555 = vmatprep.subr.bf16.mxu0 0
  %556 = vmatpush1.bf16.msra.mxu0 %v534
  %557 = vmatprep.subr.bf16.mxu0 0
  %558 = vmatpush1.bf16.msra.mxu0 %v535
  %559 = vmatprep.subr.bf16.mxu0 0
  %560 = vmatpush1.bf16.msra.mxu0 %v536
  %561 = vmatprep.subr.bf16.mxu0 0
  %562 = vmatpush1.bf16.msra.mxu0 0
  %563 = vmatprep.subr.bf16.mxu0 0
  %564 = vmatpush1.bf16.msra.mxu0 0
  %565 = vmatprep.subr.bf16.mxu0 0
  %566 = vmatpush1.bf16.msra.mxu0 0
  %567 = vmatprep.subr.bf16.mxu0 0
  %568 = vmatpush1.bf16.msra.mxu0 0
  %569 = vmatprep.subr.bf16.mxu0 0
  %570 = vmatpush1.bf16.msra.mxu0 0
  %571 = vmatprep.subr.bf16.mxu0 0
  %572 = vmatpush1.bf16.msra.mxu0 0
  %573 = vmatprep.subr.bf16.mxu0 0
  %574 = vmatpush1.bf16.msra.mxu0 0
  %575 = vmatprep.subr.bf16.mxu0 0
  %576 = vmatpush1.bf16.msra.mxu0 0
  %577 = vmatprep.mubr.bf16.mxu0 0
  %578 = vmatmul.mubr.bf16.gmra.mrb[0].mxu0 %v433
  %v579 = vpop.f32.mrb[0].mxu0
  %v580 = vadd.f32 0.0, %v579
  %v581 = vpop.f32.mrb[0].mxu0
  %v582 = vpop.f32.mrb[0].mxu0
  %v583 = vadd.f32 0.0, %v582
  %v584 = vpop.f32.mrb[0].mxu0
  %585 = vmatprep.mubr.bf16.mxu0 0
  %586 = vmatmul.mubr.bf16.gmra.mrb[0].mxu0 %v434
  %v587 = vpop.f32.mrb[0].mxu0
  %v588 = vadd.f32 0.0, %v587
  %v589 = vpop.f32.mrb[0].mxu0
  %v590 = vpop.f32.mrb[0].mxu0
  %v591 = vadd.f32 0.0, %v590
  %v592 = vpop.f32.mrb[0].mxu0
  %593 = vmatprep.mubr.bf16.mxu0 0
  %594 = vmatmul.mubr.bf16.gmra.mrb[0].mxu0 %v435
  %v595 = vpop.f32.mrb[0].mxu0
  %v596 = vadd.f32 0.0, %v595
  %v597 = vpop.f32.mrb[0].mxu0
  %v598 = vpop.f32.mrb[0].mxu0
  %v599 = vadd.f32 0.0, %v598
  %v600 = vpop.f32.mrb[0].mxu0
  %601 = vmatprep.mubr.bf16.mxu0 0
  %602 = vmatmul.mubr.bf16.gmra.mrb[0].mxu0 %v436
  %v603 = vpop.f32.mrb[0].mxu0
  %v604 = vadd.f32 0.0, %v603
  %v605 = vpop.f32.mrb[0].mxu0
  %v606 = vpop.f32.mrb[0].mxu0
  %v607 = vadd.f32 0.0, %v606
  %v608 = vpop.f32.mrb[0].mxu0
  %609 = vmatprep.mubr.bf16.mxu0 0
  %610 = vmatmul.mubr.bf16.gmra.mrb[0].mxu0 %v437
  %v611 = vpop.f32.mrb[0].mxu0
  %v612 = vadd.f32 0.0, %v611
  %v613 = vpop.f32.mrb[0].mxu0
  %v614 = vpop.f32.mrb[0].mxu0
  %v615 = vadd.f32 0.0, %v614
  %v616 = vpop.f32.mrb[0].mxu0
  %617 = vmatprep.mubr.bf16.mxu0 0
  %618 = vmatmul.mubr.bf16.gmra.mrb[0].mxu0 %v438
  %v619 = vpop.f32.mrb[0].mxu0
  %v620 = vadd.f32 0.0, %v619
  %v621 = vpop.f32.mrb[0].mxu0
  %v622 = vpop.f32.mrb[0].mxu0
  %v623 = vadd.f32 0.0, %v622
  %v624 = vpop.f32.mrb[0].mxu0
  %625 = vmatprep.mubr.bf16.mxu0 0
  %626 = vmatmul.mubr.bf16.gmra.mrb[0].mxu0 %v439
  %v627 = vpop.f32.mrb[0].mxu0
  %v628 = vadd.f32 0.0, %v627
  %v629 = vpop.f32.mrb[0].mxu0
  %v630 = vpop.f32.mrb[0].mxu0
  %v631 = vadd.f32 0.0, %v630
  %v632 = vpop.f32.mrb[0].mxu0
  %633 = vmatprep.mubr.bf16.mxu0 0
  %634 = vmatmul.mubr.bf16.gmra.mrb[0].mxu0 %v440
  %v635 = vpop.f32.mrb[0].mxu0
  %v636 = vadd.f32 0.0, %v635
  %v637 = vpop.f32.mrb[0].mxu0
  %v638 = vpop.f32.mrb[0].mxu0
  %v639 = vadd.f32 0.0, %v638
  %v640 = vpop.f32.mrb[0].mxu0
  %641 = vmatprep.mubr.bf16.mxu0 0
  %642 = vmatmul.mubr.bf16.gmra.mrb[0].mxu0 %v441
  %v643 = vpop.f32.mrb[0].mxu0
  %v644 = vadd.f32 0.0, %v643
  %v645 = vpop.f32.mrb[0].mxu0
  %v646 = vpop.f32.mrb[0].mxu0
  %v647 = vadd.f32 0.0, %v646
  %v648 = vpop.f32.mrb[0].mxu0
  %649 = vmatprep.mubr.bf16.mxu0 0
  %650 = vmatmul.mubr.bf16.gmra.mrb[0].mxu0 %v442
  %v651 = vpop.f32.mrb[0].mxu0
  %v652 = vadd.f32 0.0, %v651
  %v653 = vpop.f32.mrb[0].mxu0
  %v654 = vpop.f32.mrb[0].mxu0
  %v655 = vadd.f32 0.0, %v654
  %v656 = vpop.f32.mrb[0].mxu0
  %657 = vmatprep.mubr.bf16.mxu0 0
  %658 = vmatmul.mubr.bf16.gmra.mrb[0].mxu0 %v443
  %v659 = vpop.f32.mrb[0].mxu0
  %v660 = vadd.f32 0.0, %v659
  %v661 = vpop.f32.mrb[0].mxu0
  %v662 = vpop.f32.mrb[0].mxu0
  %v663 = vadd.f32 0.0, %v662
  %v664 = vpop.f32.mrb[0].mxu0
  %665 = vmatprep.mubr.bf16.mxu0 0
  %666 = vmatmul.mubr.bf16.gmra.mrb[0].mxu0 %v444
  %v667 = vpop.f32.mrb[0].mxu0
  %v668 = vadd.f32 0.0, %v667
  %v669 = vpop.f32.mrb[0].mxu0
  %v670 = vpop.f32.mrb[0].mxu0
  %v671 = vadd.f32 0.0, %v670
  %v672 = vpop.f32.mrb[0].mxu0
  %673 = vmatprep.mubr.bf16.mxu0 0
  %674 = vmatmul.mubr.bf16.gmra.mrb[0].mxu0 %v445
  %v675 = vpop.f32.mrb[0].mxu0
  %v676 = vadd.f32 0.0, %v675
  %v677 = vpop.f32.mrb[0].mxu0
  %v678 = vpop.f32.mrb[0].mxu0
  %v679 = vadd.f32 0.0, %v678
  %v680 = vpop.f32.mrb[0].mxu0
  %681 = vmatprep.mubr.bf16.mxu0 0
  %682 = vmatmul.mubr.bf16.gmra.mrb[0].mxu0 %v446
  %v683 = vpop.f32.mrb[0].mxu0
  %v684 = vadd.f32 0.0, %v683
  %v685 = vpop.f32.mrb[0].mxu0
  %v686 = vpop.f32.mrb[0].mxu0
  %v687 = vadd.f32 0.0, %v686
  %v688 = vpop.f32.mrb[0].mxu0
  %689 = vmatprep.mubr.bf16.mxu0 0
  %690 = vmatmul.mubr.bf16.gmra.mrb[0].mxu0 %v447
  %v691 = vpop.f32.mrb[0].mxu0
  %v692 = vadd.f32 0.0, %v691
  %v693 = vpop.f32.mrb[0].mxu0
  %v694 = vpop.f32.mrb[0].mxu0
  %v695 = vadd.f32 0.0, %v694
  %v696 = vpop.f32.mrb[0].mxu0
  %697 = vmatprep.mubr.bf16.mxu0 0
  %698 = vmatmul.mubr.bf16.gmra.mrb[0].mxu0 %v448
  %v699 = vpop.f32.mrb[0].mxu0
  %v700 = vadd.f32 0.0, %v699
  %v701 = vpop.f32.mrb[0].mxu0
  %v702 = vpop.f32.mrb[0].mxu0
  %v703 = vadd.f32 0.0, %v702
  %v704 = vpop.f32.mrb[0].mxu0
  %705 = vmatprep.mubr.bf16.mxu0 0
  %706 = vmatmul.mubr.bf16.gmra.mrb[0].mxu0 %v449
  %v707 = vpop.f32.mrb[0].mxu0
  %v708 = vadd.f32 0.0, %v707
  %v709 = vpop.f32.mrb[0].mxu0
  %v710 = vpop.f32.mrb[0].mxu0
  %v711 = vadd.f32 0.0, %v710
  %v712 = vpop.f32.mrb[0].mxu0
  %713 = vmatprep.mubr.bf16.mxu0 0
  %714 = vmatmul.mubr.bf16.gmra.mrb[0].mxu0 %v450
  %v715 = vpop.f32.mrb[0].mxu0
  %v716 = vadd.f32 0.0, %v715
  %v717 = vpop.f32.mrb[0].mxu0
  %v718 = vpop.f32.mrb[0].mxu0
  %v719 = vadd.f32 0.0, %v718
  %v720 = vpop.f32.mrb[0].mxu0
  %721 = vmatprep.mubr.bf16.mxu0 0
  %722 = vmatmul.mubr.bf16.gmra.mrb[0].mxu0 %v451
  %v723 = vpop.f32.mrb[0].mxu0
  %v724 = vadd.f32 0.0, %v723
  %v725 = vpop.f32.mrb[0].mxu0
  %v726 = vpop.f32.mrb[0].mxu0
  %v727 = vadd.f32 0.0, %v726
  %v728 = vpop.f32.mrb[0].mxu0
  %729 = vmatprep.mubr.bf16.mxu0 0
  %730 = vmatmul.mubr.bf16.gmra.mrb[0].mxu0 %v452
  %v731 = vpop.f32.mrb[0].mxu0
  %v732 = vadd.f32 0.0, %v731
  %v733 = vpop.f32.mrb[0].mxu0
  %v734 = vpop.f32.mrb[0].mxu0
  %v735 = vadd.f32 0.0, %v734
  %v736 = vpop.f32.mrb[0].mxu0
  %737 = vmatprep.mubr.bf16.mxu0 0
  %738 = vmatmul.mubr.bf16.gmra.mrb[0].mxu0 %v453
  %v739 = vpop.f32.mrb[0].mxu0
  %v740 = vadd.f32 0.0, %v739
  %v741 = vpop.f32.mrb[0].mxu0
  %v742 = vpop.f32.mrb[0].mxu0
  %v743 = vadd.f32 0.0, %v742
  %v744 = vpop.f32.mrb[0].mxu0
  %745 = vmatprep.mubr.bf16.mxu0 0
  %746 = vmatmul.mubr.bf16.gmra.mrb[0].mxu0 %v454
  %v747 = vpop.f32.mrb[0].mxu0
  %v748 = vadd.f32 0.0, %v747
  %v749 = vpop.f32.mrb[0].mxu0
  %v750 = vpop.f32.mrb[0].mxu0
  %v751 = vadd.f32 0.0, %v750
  %v752 = vpop.f32.mrb[0].mxu0
  %753 = vmatprep.mubr.bf16.mxu0 0
  %754 = vmatmul.mubr.bf16.gmra.mrb[0].mxu0 %v455
  %v755 = vpop.f32.mrb[0].mxu0
  %v756 = vadd.f32 0.0, %v755
  %v757 = vpop.f32.mrb[0].mxu0
  %v758 = vpop.f32.mrb[0].mxu0
  %v759 = vadd.f32 0.0, %v758
  %v760 = vpop.f32.mrb[0].mxu0
  %761 = vmatprep.mubr.bf16.mxu0 0
  %762 = vmatmul.mubr.bf16.gmra.mrb[0].mxu0 %v456
  %v763 = vpop.f32.mrb[0].mxu0
  %v764 = vadd.f32 0.0, %v763
  %v765 = vpop.f32.mrb[0].mxu0
  %v766 = vpop.f32.mrb[0].mxu0
  %v767 = vadd.f32 0.0, %v766
  %v768 = vpop.f32.mrb[0].mxu0
  %769 = vmatprep.mubr.bf16.mxu0 0
  %770 = vmatmul.mubr.bf16.gmra.mrb[0].mxu0 %v457
  %v771 = vpop.f32.mrb[0].mxu0
  %v772 = vadd.f32 0.0, %v771
  %v773 = vpop.f32.mrb[0].mxu0
  %v774 = vpop.f32.mrb[0].mxu0
  %v775 = vadd.f32 0.0, %v774
  %v776 = vpop.f32.mrb[0].mxu0
  %777 = vmatprep.mubr.bf16.mxu0 0
  %778 = vmatmul.mubr.bf16.gmra.mrb[0].mxu0 %v458
  %v779 = vpop.f32.mrb[0].mxu0
  %v780 = vadd.f32 0.0, %v779
  %v781 = vpop.f32.mrb[0].mxu0
  %v782 = vpop.f32.mrb[0].mxu0
  %v783 = vadd.f32 0.0, %v782
  %v784 = vpop.f32.mrb[0].mxu0
  %785 = vmatprep.mubr.bf16.mxu0 0
  %786 = vmatmul.mubr.bf16.gmra.mrb[0].mxu0 %v459
  %v787 = vpop.f32.mrb[0].mxu0
  %v788 = vadd.f32 0.0, %v787
  %v789 = vpop.f32.mrb[0].mxu0
  %v790 = vpop.f32.mrb[0].mxu0
  %v791 = vadd.f32 0.0, %v790
  %v792 = vpop.f32.mrb[0].mxu0
  %793 = vmatprep.mubr.bf16.mxu0 0
  %794 = vmatmul.mubr.bf16.gmra.mrb[0].mxu0 %v460
  %v795 = vpop.f32.mrb[0].mxu0
  %v796 = vadd.f32 0.0, %v795
  %v797 = vpop.f32.mrb[0].mxu0
  %v798 = vpop.f32.mrb[0].mxu0
  %v799 = vadd.f32 0.0, %v798
  %v800 = vpop.f32.mrb[0].mxu0
  %801 = vmatprep.mubr.bf16.mxu0 0
  %802 = vmatmul.mubr.bf16.gmra.mrb[0].mxu0 %v461
  %v803 = vpop.f32.mrb[0].mxu0
  %v804 = vadd.f32 0.0, %v803
  %v805 = vpop.f32.mrb[0].mxu0
  %v806 = vpop.f32.mrb[0].mxu0
  %v807 = vadd.f32 0.0, %v806
  %v808 = vpop.f32.mrb[0].mxu0
  %809 = vmatprep.mubr.bf16.mxu0 0
  %810 = vmatmul.mubr.bf16.gmra.mrb[0].mxu0 %v462
  %v811 = vpop.f32.mrb[0].mxu0
  %v812 = vadd.f32 0.0, %v811
  %v813 = vpop.f32.mrb[0].mxu0
  %v814 = vpop.f32.mrb[0].mxu0
  %v815 = vadd.f32 0.0, %v814
  %v816 = vpop.f32.mrb[0].mxu0
  %817 = vmatprep.mubr.bf16.mxu0 0
  %818 = vmatmul.mubr.bf16.gmra.mrb[0].mxu0 %v463
  %v819 = vpop.f32.mrb[0].mxu0
  %v820 = vadd.f32 0.0, %v819
  %v821 = vpop.f32.mrb[0].mxu0
  %v822 = vpop.f32.mrb[0].mxu0
  %v823 = vadd.f32 0.0, %v822
  %v824 = vpop.f32.mrb[0].mxu0
  %825 = vmatprep.mubr.bf16.mxu0 0
  %826 = vmatmul.mubr.bf16.gmra.mrb[0].mxu0 %v464
  %v827 = vpop.f32.mrb[0].mxu0
  %v828 = vadd.f32 0.0, %v827
  %v829 = vpop.f32.mrb[0].mxu0
  %v830 = vpop.f32.mrb[0].mxu0
  %v831 = vadd.f32 0.0, %v830
  %v832 = vpop.f32.mrb[0].mxu0
  %833 = vdwg.mxu0
  %v834 = vpack.c.bf16 %v583, %v580
  %v835 = vpack.c.bf16 %v591, %v588
  %v836 = vpack.c.bf16 %v599, %v596
  %v837 = vpack.c.bf16 %v607, %v604
  %v838 = vpack.c.bf16 %v615, %v612
  %v839 = vpack.c.bf16 %v623, %v620
  %v840 = vpack.c.bf16 %v631, %v628
  %v841 = vpack.c.bf16 %v639, %v636
  %v842 = vpack.c.bf16 %v647, %v644
  %v843 = vpack.c.bf16 %v655, %v652
  %v844 = vpack.c.bf16 %v663, %v660
  %v845 = vpack.c.bf16 %v671, %v668
  %v846 = vpack.c.bf16 %v679, %v676
  %v847 = vpack.c.bf16 %v687, %v684
  %v848 = vpack.c.bf16 %v695, %v692
  %v849 = vpack.c.bf16 %v703, %v700
  %v850 = vpack.c.bf16 %v711, %v708
  %v851 = vpack.c.bf16 %v719, %v716
  %v852 = vpack.c.bf16 %v727, %v724
  %v853 = vpack.c.bf16 %v735, %v732
  %v854 = vpack.c.bf16 %v743, %v740
  %v855 = vpack.c.bf16 %v751, %v748
  %v856 = vpack.c.bf16 %v759, %v756
  %v857 = vpack.c.bf16 %v767, %v764
  %v858 = vpack.c.bf16 %v775, %v772
  %v859 = vpack.c.bf16 %v783, %v780
  %v860 = vpack.c.bf16 %v791, %v788
  %v861 = vpack.c.bf16 %v799, %v796
  %v862 = vpack.c.bf16 %v807, %v804
  %v863 = vpack.c.bf16 %v815, %v812
  %v864 = vpack.c.bf16 %v823, %v820
  %v865 = vpack.c.bf16 %v831, %v828
  %v994 = vunpack.c.l.b16 %v33
  %v995 = vunpack.c.h.b16 %v33
  %v996 = vunpack.c.l.b16 %v34
  %v997 = vunpack.c.h.b16 %v34
  %v998 = vunpack.c.l.b16 %v35
  %v999 = vunpack.c.h.b16 %v35
  %v1000 = vunpack.c.l.b16 %v36
  %v1001 = vunpack.c.h.b16 %v36
  %v1002 = vunpack.c.l.b16 %v37
  %v1003 = vunpack.c.h.b16 %v37
  %v1004 = vunpack.c.l.b16 %v38
  %v1005 = vunpack.c.h.b16 %v38
  %v1006 = vunpack.c.l.b16 %v39
  %v1007 = vunpack.c.h.b16 %v39
  %v1008 = vunpack.c.l.b16 %v40
  %v1009 = vunpack.c.h.b16 %v40
  %v1010 = vunpack.c.l.b16 %v41
  %v1011 = vunpack.c.h.b16 %v41
  %v1012 = vunpack.c.l.b16 %v42
  %v1013 = vunpack.c.h.b16 %v42
  %v1014 = vunpack.c.l.b16 %v43
  %v1015 = vunpack.c.h.b16 %v43
  %v1016 = vunpack.c.l.b16 %v44
  %v1017 = vunpack.c.h.b16 %v44
  %v1018 = vunpack.c.l.b16 %v45
  %v1019 = vunpack.c.h.b16 %v45
  %v1020 = vunpack.c.l.b16 %v46
  %v1021 = vunpack.c.h.b16 %v46
  %v1022 = vunpack.c.l.b16 %v47
  %v1023 = vunpack.c.h.b16 %v47
  %v1024 = vunpack.c.l.b16 %v48
  %v1025 = vunpack.c.h.b16 %v48
  %v1026 = vunpack.c.l.b16 %v49
  %v1027 = vunpack.c.h.b16 %v49
  %v1028 = vunpack.c.l.b16 %v50
  %v1029 = vunpack.c.h.b16 %v50
  %v1030 = vunpack.c.l.b16 %v51
  %v1031 = vunpack.c.h.b16 %v51
  %v1032 = vunpack.c.l.b16 %v52
  %v1033 = vunpack.c.h.b16 %v52
  %v1034 = vunpack.c.l.b16 %v53
  %v1035 = vunpack.c.h.b16 %v53
  %v1036 = vunpack.c.l.b16 %v54
  %v1037 = vunpack.c.h.b16 %v54
  %v1038 = vunpack.c.l.b16 %v55
  %v1039 = vunpack.c.h.b16 %v55
  %v1040 = vunpack.c.l.b16 %v56
  %v1041 = vunpack.c.h.b16 %v56
  %v1042 = vunpack.c.l.b16 %v57
  %v1043 = vunpack.c.h.b16 %v57
  %v1044 = vunpack.c.l.b16 %v58
  %v1045 = vunpack.c.h.b16 %v58
  %v1046 = vunpack.c.l.b16 %v59
  %v1047 = vunpack.c.h.b16 %v59
  %v1048 = vunpack.c.l.b16 %v60
  %v1049 = vunpack.c.h.b16 %v60
  %v1050 = vunpack.c.l.b16 %v61
  %v1051 = vunpack.c.h.b16 %v61
  %v1052 = vunpack.c.l.b16 %v62
  %v1053 = vunpack.c.h.b16 %v62
  %v1054 = vunpack.c.l.b16 %v63
  %v1055 = vunpack.c.h.b16 %v63
  %v1056 = vunpack.c.l.b16 %v64
  %v1057 = vunpack.c.h.b16 %v64
  %v1058 = vunpack.c.l.b16 %v65
  %v1059 = vunpack.c.h.b16 %v65
  %v1060 = vunpack.c.l.b16 %v66
  %v1061 = vunpack.c.h.b16 %v66
  %v1062 = vunpack.c.l.b16 %v67
  %v1063 = vunpack.c.h.b16 %v67
  %v1064 = vunpack.c.l.b16 %v68
  %v1065 = vunpack.c.h.b16 %v68
  %v1066 = vunpack.c.l.b16 %v69
  %v1067 = vunpack.c.h.b16 %v69
  %v1068 = vunpack.c.l.b16 %v70
  %v1069 = vunpack.c.h.b16 %v70
  %v1070 = vunpack.c.l.b16 %v71
  %v1071 = vunpack.c.h.b16 %v71
  %v1072 = vunpack.c.l.b16 %v72
  %v1073 = vunpack.c.h.b16 %v72
  %v1074 = vunpack.c.l.b16 %v73
  %v1075 = vunpack.c.h.b16 %v73
  %v1076 = vunpack.c.l.b16 %v74
  %v1077 = vunpack.c.h.b16 %v74
  %v1078 = vunpack.c.l.b16 %v75
  %v1079 = vunpack.c.h.b16 %v75
  %v1080 = vunpack.c.l.b16 %v76
  %v1081 = vunpack.c.h.b16 %v76
  %v1082 = vunpack.c.l.b16 %v77
  %v1083 = vunpack.c.h.b16 %v77
  %v1084 = vunpack.c.l.b16 %v78
  %v1085 = vunpack.c.h.b16 %v78
  %v1086 = vunpack.c.l.b16 %v79
  %v1087 = vunpack.c.h.b16 %v79
  %v1088 = vunpack.c.l.b16 %v80
  %v1089 = vunpack.c.h.b16 %v80
  %v1090 = vunpack.c.l.b16 %v81
  %v1091 = vunpack.c.h.b16 %v81
  %v1092 = vunpack.c.l.b16 %v82
  %v1093 = vunpack.c.h.b16 %v82
  %v1094 = vunpack.c.l.b16 %v83
  %v1095 = vunpack.c.h.b16 %v83
  %v1096 = vunpack.c.l.b16 %v84
  %v1097 = vunpack.c.h.b16 %v84
  %v1098 = vunpack.c.l.b16 %v85
  %v1099 = vunpack.c.h.b16 %v85
  %v1100 = vunpack.c.l.b16 %v86
  %v1101 = vunpack.c.h.b16 %v86
  %v1102 = vunpack.c.l.b16 %v87
  %v1103 = vunpack.c.h.b16 %v87
  %v1104 = vunpack.c.l.b16 %v88
  %v1105 = vunpack.c.h.b16 %v88
  %v1106 = vunpack.c.l.b16 %v89
  %v1107 = vunpack.c.h.b16 %v89
  %v1108 = vunpack.c.l.b16 %v90
  %v1109 = vunpack.c.h.b16 %v90
  %v1110 = vunpack.c.l.b16 %v91
  %v1111 = vunpack.c.h.b16 %v91
  %v1112 = vunpack.c.l.b16 %v92
  %v1113 = vunpack.c.h.b16 %v92
  %v1114 = vunpack.c.l.b16 %v93
  %v1115 = vunpack.c.h.b16 %v93
  %v1116 = vunpack.c.l.b16 %v94
  %v1117 = vunpack.c.h.b16 %v94
  %v1118 = vunpack.c.l.b16 %v95
  %v1119 = vunpack.c.h.b16 %v95
  %v1120 = vunpack.c.l.b16 %v96
  %v1121 = vunpack.c.h.b16 %v96
  %v1122 = vunpack.c.l.b16 %v97
  %v1123 = vunpack.c.h.b16 %v97
  %v1124 = vunpack.c.l.b16 %v98
  %v1125 = vunpack.c.h.b16 %v98
  %v1126 = vunpack.c.l.b16 %v99
  %v1127 = vunpack.c.h.b16 %v99
  %v1128 = vunpack.c.l.b16 %v100
  %v1129 = vunpack.c.h.b16 %v100
  %v1130 = vunpack.c.l.b16 %v101
  %v1131 = vunpack.c.h.b16 %v101
  %v1132 = vunpack.c.l.b16 %v102
  %v1133 = vunpack.c.h.b16 %v102
  %v1134 = vunpack.c.l.b16 %v103
  %v1135 = vunpack.c.h.b16 %v103
  %v1136 = vunpack.c.l.b16 %v104
  %v1137 = vunpack.c.h.b16 %v104
  %v1138 = vunpack.c.l.b16 %v105
  %v1139 = vunpack.c.h.b16 %v105
  %v1140 = vunpack.c.l.b16 %v106
  %v1141 = vunpack.c.h.b16 %v106
  %v1142 = vunpack.c.l.b16 %v107
  %v1143 = vunpack.c.h.b16 %v107
  %v1144 = vunpack.c.l.b16 %v108
  %v1145 = vunpack.c.h.b16 %v108
  %v1146 = vunpack.c.l.b16 %v109
  %v1147 = vunpack.c.h.b16 %v109
  %v1148 = vunpack.c.l.b16 %v110
  %v1149 = vunpack.c.h.b16 %v110
  %v1150 = vunpack.c.l.b16 %v111
  %v1151 = vunpack.c.h.b16 %v111
  %v1152 = vunpack.c.l.b16 %v112
  %v1153 = vunpack.c.h.b16 %v112
  %v1154 = vunpack.c.l.b16 %v113
  %v1155 = vunpack.c.h.b16 %v113
  %v1156 = vunpack.c.l.b16 %v114
  %v1157 = vunpack.c.h.b16 %v114
  %v1158 = vunpack.c.l.b16 %v115
  %v1159 = vunpack.c.h.b16 %v115
  %v1160 = vunpack.c.l.b16 %v116
  %v1161 = vunpack.c.h.b16 %v116
  %v1162 = vunpack.c.l.b16 %v117
  %v1163 = vunpack.c.h.b16 %v117
  %v1164 = vunpack.c.l.b16 %v118
  %v1165 = vunpack.c.h.b16 %v118
  %v1166 = vunpack.c.l.b16 %v119
  %v1167 = vunpack.c.h.b16 %v119
  %v1168 = vunpack.c.l.b16 %v120
  %v1169 = vunpack.c.h.b16 %v120
  %v1170 = vunpack.c.l.b16 %v121
  %v1171 = vunpack.c.h.b16 %v121
  %v1172 = vunpack.c.l.b16 %v122
  %v1173 = vunpack.c.h.b16 %v122
  %v1174 = vunpack.c.l.b16 %v123
  %v1175 = vunpack.c.h.b16 %v123
  %v1176 = vunpack.c.l.b16 %v124
  %v1177 = vunpack.c.h.b16 %v124
  %v1178 = vunpack.c.l.b16 %v125
  %v1179 = vunpack.c.h.b16 %v125
  %v1180 = vunpack.c.l.b16 %v126
  %v1181 = vunpack.c.h.b16 %v126
  %v1182 = vunpack.c.l.b16 %v127
  %v1183 = vunpack.c.h.b16 %v127
  %v1184 = vunpack.c.l.b16 %v128
  %v1185 = vunpack.c.h.b16 %v128
  %v1186 = vunpack.c.l.b16 %v129
  %v1187 = vunpack.c.h.b16 %v129
  %v1188 = vunpack.c.l.b16 %v130
  %v1189 = vunpack.c.h.b16 %v130
  %v1190 = vunpack.c.l.b16 %v131
  %v1191 = vunpack.c.h.b16 %v131
  %v1192 = vunpack.c.l.b16 %v132
  %v1193 = vunpack.c.h.b16 %v132
  %v1194 = vunpack.c.l.b16 %v133
  %v1195 = vunpack.c.h.b16 %v133
  %v1196 = vunpack.c.l.b16 %v134
  %v1197 = vunpack.c.h.b16 %v134
  %v1198 = vunpack.c.l.b16 %v135
  %v1199 = vunpack.c.h.b16 %v135
  %v1200 = vunpack.c.l.b16 %v136
  %v1201 = vunpack.c.h.b16 %v136
  %v1202 = vunpack.c.l.b16 %v137
  %v1203 = vunpack.c.h.b16 %v137
  %v1204 = vunpack.c.l.b16 %v138
  %v1205 = vunpack.c.h.b16 %v138
  %v1206 = vunpack.c.l.b16 %v139
  %v1207 = vunpack.c.h.b16 %v139
  %v1208 = vunpack.c.l.b16 %v140
  %v1209 = vunpack.c.h.b16 %v140
  %v1210 = vunpack.c.l.b16 %v141
  %v1211 = vunpack.c.h.b16 %v141
  %v1212 = vunpack.c.l.b16 %v142
  %v1213 = vunpack.c.h.b16 %v142
  %v1214 = vunpack.c.l.b16 %v143
  %v1215 = vunpack.c.h.b16 %v143
  %v1216 = vunpack.c.l.b16 %v144
  %v1217 = vunpack.c.h.b16 %v144
  %v1218 = vunpack.c.l.b16 %v145
  %v1219 = vunpack.c.h.b16 %v145
  %v1220 = vunpack.c.l.b16 %v146
  %v1221 = vunpack.c.h.b16 %v146
  %v1222 = vunpack.c.l.b16 %v147
  %v1223 = vunpack.c.h.b16 %v147
  %v1224 = vunpack.c.l.b16 %v148
  %v1225 = vunpack.c.h.b16 %v148
  %v1226 = vunpack.c.l.b16 %v149
  %v1227 = vunpack.c.h.b16 %v149
  %v1228 = vunpack.c.l.b16 %v150
  %v1229 = vunpack.c.h.b16 %v150
  %v1230 = vunpack.c.l.b16 %v151
  %v1231 = vunpack.c.h.b16 %v151
  %v1232 = vunpack.c.l.b16 %v152
  %v1233 = vunpack.c.h.b16 %v152
  %v1234 = vunpack.c.l.b16 %v153
  %v1235 = vunpack.c.h.b16 %v153
  %v1236 = vunpack.c.l.b16 %v154
  %v1237 = vunpack.c.h.b16 %v154
  %v1238 = vunpack.c.l.b16 %v155
  %v1239 = vunpack.c.h.b16 %v155
  %v1240 = vunpack.c.l.b16 %v156
  %v1241 = vunpack.c.h.b16 %v156
  %v1242 = vunpack.c.l.b16 %v157
  %v1243 = vunpack.c.h.b16 %v157
  %v1244 = vunpack.c.l.b16 %v158
  %v1245 = vunpack.c.h.b16 %v158
  %v1246 = vunpack.c.l.b16 %v159
  %v1247 = vunpack.c.h.b16 %v159
  %v1248 = vunpack.c.l.b16 %v160
  %v1249 = vunpack.c.h.b16 %v160
  %v1250 = vpack.c.b16 %v998, %v994
  %v1251 = vpack.c.b16 %v999, %v995
  %v1252 = vpack.c.b16 %v1000, %v996
  %v1253 = vpack.c.b16 %v1001, %v997
  %v1254 = vpack.c.b16 %v1006, %v1002
  %v1255 = vpack.c.b16 %v1007, %v1003
  %v1256 = vpack.c.b16 %v1008, %v1004
  %v1257 = vpack.c.b16 %v1009, %v1005
  %v1258 = vpack.c.b16 %v1014, %v1010
  %v1259 = vpack.c.b16 %v1015, %v1011
  %v1260 = vpack.c.b16 %v1016, %v1012
  %v1261 = vpack.c.b16 %v1017, %v1013
  %v1262 = vpack.c.b16 %v1022, %v1018
  %v1263 = vpack.c.b16 %v1023, %v1019
  %v1264 = vpack.c.b16 %v1024, %v1020
  %v1265 = vpack.c.b16 %v1025, %v1021
  %v1266 = vpack.c.b16 %v1030, %v1026
  %v1267 = vpack.c.b16 %v1031, %v1027
  %v1268 = vpack.c.b16 %v1032, %v1028
  %v1269 = vpack.c.b16 %v1033, %v1029
  %v1270 = vpack.c.b16 %v1038, %v1034
  %v1271 = vpack.c.b16 %v1039, %v1035
  %v1272 = vpack.c.b16 %v1040, %v1036
  %v1273 = vpack.c.b16 %v1041, %v1037
  %v1274 = vpack.c.b16 %v1046, %v1042
  %v1275 = vpack.c.b16 %v1047, %v1043
  %v1276 = vpack.c.b16 %v1048, %v1044
  %v1277 = vpack.c.b16 %v1049, %v1045
  %v1278 = vpack.c.b16 %v1054, %v1050
  %v1279 = vpack.c.b16 %v1055, %v1051
  %v1280 = vpack.c.b16 %v1056, %v1052
  %v1281 = vpack.c.b16 %v1057, %v1053
  %v1282 = vpack.c.b16 %v1062, %v1058
  %v1283 = vpack.c.b16 %v1063, %v1059
  %v1284 = vpack.c.b16 %v1064, %v1060
  %v1285 = vpack.c.b16 %v1065, %v1061
  %v1286 = vpack.c.b16 %v1070, %v1066
  %v1287 = vpack.c.b16 %v1071, %v1067
  %v1288 = vpack.c.b16 %v1072, %v1068
  %v1289 = vpack.c.b16 %v1073, %v1069
  %v1290 = vpack.c.b16 %v1078, %v1074
  %v1291 = vpack.c.b16 %v1079, %v1075
  %v1292 = vpack.c.b16 %v1080, %v1076
  %v1293 = vpack.c.b16 %v1081, %v1077
  %v1294 = vpack.c.b16 %v1086, %v1082
  %v1295 = vpack.c.b16 %v1087, %v1083
  %v1296 = vpack.c.b16 %v1088, %v1084
  %v1297 = vpack.c.b16 %v1089, %v1085
  %v1298 = vpack.c.b16 %v1094, %v1090
  %v1299 = vpack.c.b16 %v1095, %v1091
  %v1300 = vpack.c.b16 %v1096, %v1092
  %v1301 = vpack.c.b16 %v1097, %v1093
  %v1302 = vpack.c.b16 %v1102, %v1098
  %v1303 = vpack.c.b16 %v1103, %v1099
  %v1304 = vpack.c.b16 %v1104, %v1100
  %v1305 = vpack.c.b16 %v1105, %v1101
  %v1306 = vpack.c.b16 %v1110, %v1106
  %v1307 = vpack.c.b16 %v1111, %v1107
  %v1308 = vpack.c.b16 %v1112, %v1108
  %v1309 = vpack.c.b16 %v1113, %v1109
  %v1310 = vpack.c.b16 %v1118, %v1114
  %v1311 = vpack.c.b16 %v1119, %v1115
  %v1312 = vpack.c.b16 %v1120, %v1116
  %v1313 = vpack.c.b16 %v1121, %v1117
  %v1314 = vpack.c.b16 %v1126, %v1122
  %v1315 = vpack.c.b16 %v1127, %v1123
  %v1316 = vpack.c.b16 %v1128, %v1124
  %v1317 = vpack.c.b16 %v1129, %v1125
  %v1318 = vpack.c.b16 %v1134, %v1130
  %v1319 = vpack.c.b16 %v1135, %v1131
  %v1320 = vpack.c.b16 %v1136, %v1132
  %v1321 = vpack.c.b16 %v1137, %v1133
  %v1322 = vpack.c.b16 %v1142, %v1138
  %v1323 = vpack.c.b16 %v1143, %v1139
  %v1324 = vpack.c.b16 %v1144, %v1140
  %v1325 = vpack.c.b16 %v1145, %v1141
  %v1326 = vpack.c.b16 %v1150, %v1146
  %v1327 = vpack.c.b16 %v1151, %v1147
  %v1328 = vpack.c.b16 %v1152, %v1148
  %v1329 = vpack.c.b16 %v1153, %v1149
  %v1330 = vpack.c.b16 %v1158, %v1154
  %v1331 = vpack.c.b16 %v1159, %v1155
  %v1332 = vpack.c.b16 %v1160, %v1156
  %v1333 = vpack.c.b16 %v1161, %v1157
  %v1334 = vpack.c.b16 %v1166, %v1162
  %v1335 = vpack.c.b16 %v1167, %v1163
  %v1336 = vpack.c.b16 %v1168, %v1164
  %v1337 = vpack.c.b16 %v1169, %v1165
  %v1338 = vpack.c.b16 %v1174, %v1170
  %v1339 = vpack.c.b16 %v1175, %v1171
  %v1340 = vpack.c.b16 %v1176, %v1172
  %v1341 = vpack.c.b16 %v1177, %v1173
  %v1342 = vpack.c.b16 %v1182, %v1178
  %v1343 = vpack.c.b16 %v1183, %v1179
  %v1344 = vpack.c.b16 %v1184, %v1180
  %v1345 = vpack.c.b16 %v1185, %v1181
  %v1346 = vpack.c.b16 %v1190, %v1186
  %v1347 = vpack.c.b16 %v1191, %v1187
  %v1348 = vpack.c.b16 %v1192, %v1188
  %v1349 = vpack.c.b16 %v1193, %v1189
  %v1350 = vpack.c.b16 %v1198, %v1194
  %v1351 = vpack.c.b16 %v1199, %v1195
  %v1352 = vpack.c.b16 %v1200, %v1196
  %v1353 = vpack.c.b16 %v1201, %v1197
  %v1354 = vpack.c.b16 %v1206, %v1202
  %v1355 = vpack.c.b16 %v1207, %v1203
  %v1356 = vpack.c.b16 %v1208, %v1204
  %v1357 = vpack.c.b16 %v1209, %v1205
  %v1358 = vpack.c.b16 %v1214, %v1210
  %v1359 = vpack.c.b16 %v1215, %v1211
  %v1360 = vpack.c.b16 %v1216, %v1212
  %v1361 = vpack.c.b16 %v1217, %v1213
  %v1362 = vpack.c.b16 %v1222, %v1218
  %v1363 = vpack.c.b16 %v1223, %v1219
  %v1364 = vpack.c.b16 %v1224, %v1220
  %v1365 = vpack.c.b16 %v1225, %v1221
  %v1366 = vpack.c.b16 %v1230, %v1226
  %v1367 = vpack.c.b16 %v1231, %v1227
  %v1368 = vpack.c.b16 %v1232, %v1228
  %v1369 = vpack.c.b16 %v1233, %v1229
  %v1370 = vpack.c.b16 %v1238, %v1234
  %v1371 = vpack.c.b16 %v1239, %v1235
  %v1372 = vpack.c.b16 %v1240, %v1236
  %v1373 = vpack.c.b16 %v1241, %v1237
  %v1374 = vpack.c.b16 %v1246, %v1242
  %v1375 = vpack.c.b16 %v1247, %v1243
  %v1376 = vpack.c.b16 %v1248, %v1244
  %v1377 = vpack.c.b16 %v1249, %v1245
  %1506 = vmatprep.subr.bf16.mxu0 0
  %1507 = vmatpush1.bf16.msra.mxu0 %v834
  %1508 = vmatprep.subr.bf16.mxu0 0
  %1509 = vmatpush1.bf16.msra.mxu0 %v835
  %1510 = vmatprep.subr.bf16.mxu0 0
  %1511 = vmatpush1.bf16.msra.mxu0 %v836
  %1512 = vmatprep.subr.bf16.mxu0 0
  %1513 = vmatpush1.bf16.msra.mxu0 %v837
  %1514 = vmatprep.subr.bf16.mxu0 0
  %1515 = vmatpush1.bf16.msra.mxu0 %v838
  %1516 = vmatprep.subr.bf16.mxu0 0
  %1517 = vmatpush1.bf16.msra.mxu0 %v839
  %1518 = vmatprep.subr.bf16.mxu0 0
  %1519 = vmatpush1.bf16.msra.mxu0 %v840
  %1520 = vmatprep.subr.bf16.mxu0 0
  %1521 = vmatpush1.bf16.msra.mxu0 %v841
  %1522 = vmatprep.subr.bf16.mxu0 0
  %1523 = vmatpush1.bf16.msra.mxu0 %v842
  %1524 = vmatprep.subr.bf16.mxu0 0
  %1525 = vmatpush1.bf16.msra.mxu0 %v843
  %1526 = vmatprep.subr.bf16.mxu0 0
  %1527 = vmatpush1.bf16.msra.mxu0 %v844
  %1528 = vmatprep.subr.bf16.mxu0 0
  %1529 = vmatpush1.bf16.msra.mxu0 %v845
  %1530 = vmatprep.subr.bf16.mxu0 0
  %1531 = vmatpush1.bf16.msra.mxu0 %v846
  %1532 = vmatprep.subr.bf16.mxu0 0
  %1533 = vmatpush1.bf16.msra.mxu0 %v847
  %1534 = vmatprep.subr.bf16.mxu0 0
  %1535 = vmatpush1.bf16.msra.mxu0 %v848
  %1536 = vmatprep.subr.bf16.mxu0 0
  %1537 = vmatpush1.bf16.msra.mxu0 %v849
  %1538 = vmatprep.mubr.bf16.mxu0 %v1251
  %1539 = vmatmul.mubr.bf16.gmra.mrb[0].mxu0 %v1250
  %v1540 = vpop.f32.mrb[0].mxu0
  %v1541 = vadd.f32 0.0, %v1540
  %v1542 = vpop.f32.mrb[0].mxu0
  %v1543 = vpop.f32.mrb[0].mxu0
  %v1544 = vadd.f32 0.0, %v1543
  %v1545 = vpop.f32.mrb[0].mxu0
  %1546 = vmatprep.mubr.bf16.mxu0 %v1255
  %1547 = vmatmul.mubr.bf16.gmra.mrb[0].mxu0 %v1254
  %v1548 = vpop.f32.mrb[0].mxu0
  %v1549 = vadd.f32 0.0, %v1548
  %v1550 = vpop.f32.mrb[0].mxu0
  %v1551 = vpop.f32.mrb[0].mxu0
  %v1552 = vadd.f32 0.0, %v1551
  %v1553 = vpop.f32.mrb[0].mxu0
  %1554 = vmatprep.mubr.bf16.mxu0 %v1259
  %1555 = vmatmul.mubr.bf16.gmra.mrb[0].mxu0 %v1258
  %v1556 = vpop.f32.mrb[0].mxu0
  %v1557 = vadd.f32 0.0, %v1556
  %v1558 = vpop.f32.mrb[0].mxu0
  %v1559 = vpop.f32.mrb[0].mxu0
  %v1560 = vadd.f32 0.0, %v1559
  %v1561 = vpop.f32.mrb[0].mxu0
  %1562 = vmatprep.mubr.bf16.mxu0 %v1263
  %1563 = vmatmul.mubr.bf16.gmra.mrb[0].mxu0 %v1262
  %v1564 = vpop.f32.mrb[0].mxu0
  %v1565 = vadd.f32 0.0, %v1564
  %v1566 = vpop.f32.mrb[0].mxu0
  %v1567 = vpop.f32.mrb[0].mxu0
  %v1568 = vadd.f32 0.0, %v1567
  %v1569 = vpop.f32.mrb[0].mxu0
  %1570 = vmatprep.mubr.bf16.mxu0 %v1267
  %1571 = vmatmul.mubr.bf16.gmra.mrb[0].mxu0 %v1266
  %v1572 = vpop.f32.mrb[0].mxu0
  %v1573 = vadd.f32 0.0, %v1572
  %v1574 = vpop.f32.mrb[0].mxu0
  %v1575 = vpop.f32.mrb[0].mxu0
  %v1576 = vadd.f32 0.0, %v1575
  %v1577 = vpop.f32.mrb[0].mxu0
  %1578 = vmatprep.mubr.bf16.mxu0 %v1271
  %1579 = vmatmul.mubr.bf16.gmra.mrb[0].mxu0 %v1270
  %v1580 = vpop.f32.mrb[0].mxu0
  %v1581 = vadd.f32 0.0, %v1580
  %v1582 = vpop.f32.mrb[0].mxu0
  %v1583 = vpop.f32.mrb[0].mxu0
  %v1584 = vadd.f32 0.0, %v1583
  %v1585 = vpop.f32.mrb[0].mxu0
  %1586 = vmatprep.mubr.bf16.mxu0 %v1275
  %1587 = vmatmul.mubr.bf16.gmra.mrb[0].mxu0 %v1274
  %v1588 = vpop.f32.mrb[0].mxu0
  %v1589 = vadd.f32 0.0, %v1588
  %v1590 = vpop.f32.mrb[0].mxu0
  %v1591 = vpop.f32.mrb[0].mxu0
  %v1592 = vadd.f32 0.0, %v1591
  %v1593 = vpop.f32.mrb[0].mxu0
  %1594 = vmatprep.mubr.bf16.mxu0 %v1279
  %1595 = vmatmul.mubr.bf16.gmra.mrb[0].mxu0 %v1278
  %v1596 = vpop.f32.mrb[0].mxu0
  %v1597 = vadd.f32 0.0, %v1596
  %v1598 = vpop.f32.mrb[0].mxu0
  %v1599 = vpop.f32.mrb[0].mxu0
  %v1600 = vadd.f32 0.0, %v1599
  %v1601 = vpop.f32.mrb[0].mxu0
  %1602 = vmatprep.mubr.bf16.mxu0 %v1283
  %1603 = vmatmul.mubr.bf16.gmra.mrb[0].mxu0 %v1282
  %v1604 = vpop.f32.mrb[0].mxu0
  %v1605 = vadd.f32 0.0, %v1604
  %v1606 = vpop.f32.mrb[0].mxu0
  %v1607 = vpop.f32.mrb[0].mxu0
  %v1608 = vadd.f32 0.0, %v1607
  %v1609 = vpop.f32.mrb[0].mxu0
  %1610 = vmatprep.mubr.bf16.mxu0 %v1287
  %1611 = vmatmul.mubr.bf16.gmra.mrb[0].mxu0 %v1286
  %v1612 = vpop.f32.mrb[0].mxu0
  %v1613 = vadd.f32 0.0, %v1612
  %v1614 = vpop.f32.mrb[0].mxu0
  %v1615 = vpop.f32.mrb[0].mxu0
  %v1616 = vadd.f32 0.0, %v1615
  %v1617 = vpop.f32.mrb[0].mxu0
  %1618 = vmatprep.mubr.bf16.mxu0 %v1291
  %1619 = vmatmul.mubr.bf16.gmra.mrb[0].mxu0 %v1290
  %v1620 = vpop.f32.mrb[0].mxu0
  %v1621 = vadd.f32 0.0, %v1620
  %v1622 = vpop.f32.mrb[0].mxu0
  %v1623 = vpop.f32.mrb[0].mxu0
  %v1624 = vadd.f32 0.0, %v1623
  %v1625 = vpop.f32.mrb[0].mxu0
  %1626 = vmatprep.mubr.bf16.mxu0 %v1295
  %1627 = vmatmul.mubr.bf16.gmra.mrb[0].mxu0 %v1294
  %v1628 = vpop.f32.mrb[0].mxu0
  %v1629 = vadd.f32 0.0, %v1628
  %v1630 = vpop.f32.mrb[0].mxu0
  %v1631 = vpop.f32.mrb[0].mxu0
  %v1632 = vadd.f32 0.0, %v1631
  %v1633 = vpop.f32.mrb[0].mxu0
  %1634 = vmatprep.mubr.bf16.mxu0 %v1299
  %1635 = vmatmul.mubr.bf16.gmra.mrb[0].mxu0 %v1298
  %v1636 = vpop.f32.mrb[0].mxu0
  %v1637 = vadd.f32 0.0, %v1636
  %v1638 = vpop.f32.mrb[0].mxu0
  %v1639 = vpop.f32.mrb[0].mxu0
  %v1640 = vadd.f32 0.0, %v1639
  %v1641 = vpop.f32.mrb[0].mxu0
  %1642 = vmatprep.mubr.bf16.mxu0 %v1303
  %1643 = vmatmul.mubr.bf16.gmra.mrb[0].mxu0 %v1302
  %v1644 = vpop.f32.mrb[0].mxu0
  %v1645 = vadd.f32 0.0, %v1644
  %v1646 = vpop.f32.mrb[0].mxu0
  %v1647 = vpop.f32.mrb[0].mxu0
  %v1648 = vadd.f32 0.0, %v1647
  %v1649 = vpop.f32.mrb[0].mxu0
  %1650 = vmatprep.mubr.bf16.mxu0 %v1307
  %1651 = vmatmul.mubr.bf16.gmra.mrb[0].mxu0 %v1306
  %v1652 = vpop.f32.mrb[0].mxu0
  %v1653 = vadd.f32 0.0, %v1652
  %v1654 = vpop.f32.mrb[0].mxu0
  %v1655 = vpop.f32.mrb[0].mxu0
  %v1656 = vadd.f32 0.0, %v1655
  %v1657 = vpop.f32.mrb[0].mxu0
  %1658 = vmatprep.mubr.bf16.mxu0 %v1311
  %1659 = vmatmul.mubr.bf16.gmra.mrb[0].mxu0 %v1310
  %v1660 = vpop.f32.mrb[0].mxu0
  %v1661 = vadd.f32 0.0, %v1660
  %v1662 = vpop.f32.mrb[0].mxu0
  %v1663 = vpop.f32.mrb[0].mxu0
  %v1664 = vadd.f32 0.0, %v1663
  %v1665 = vpop.f32.mrb[0].mxu0
  %1666 = vmatprep.mubr.bf16.mxu0 %v1315
  %1667 = vmatmul.mubr.bf16.gmra.mrb[0].mxu0 %v1314
  %v1668 = vpop.f32.mrb[0].mxu0
  %v1669 = vadd.f32 0.0, %v1668
  %v1670 = vpop.f32.mrb[0].mxu0
  %v1671 = vpop.f32.mrb[0].mxu0
  %v1672 = vadd.f32 0.0, %v1671
  %v1673 = vpop.f32.mrb[0].mxu0
  %1674 = vmatprep.mubr.bf16.mxu0 %v1319
  %1675 = vmatmul.mubr.bf16.gmra.mrb[0].mxu0 %v1318
  %v1676 = vpop.f32.mrb[0].mxu0
  %v1677 = vadd.f32 0.0, %v1676
  %v1678 = vpop.f32.mrb[0].mxu0
  %v1679 = vpop.f32.mrb[0].mxu0
  %v1680 = vadd.f32 0.0, %v1679
  %v1681 = vpop.f32.mrb[0].mxu0
  %1682 = vmatprep.mubr.bf16.mxu0 %v1323
  %1683 = vmatmul.mubr.bf16.gmra.mrb[0].mxu0 %v1322
  %v1684 = vpop.f32.mrb[0].mxu0
  %v1685 = vadd.f32 0.0, %v1684
  %v1686 = vpop.f32.mrb[0].mxu0
  %v1687 = vpop.f32.mrb[0].mxu0
  %v1688 = vadd.f32 0.0, %v1687
  %v1689 = vpop.f32.mrb[0].mxu0
  %1690 = vmatprep.mubr.bf16.mxu0 %v1327
  %1691 = vmatmul.mubr.bf16.gmra.mrb[0].mxu0 %v1326
  %v1692 = vpop.f32.mrb[0].mxu0
  %v1693 = vadd.f32 0.0, %v1692
  %v1694 = vpop.f32.mrb[0].mxu0
  %v1695 = vpop.f32.mrb[0].mxu0
  %v1696 = vadd.f32 0.0, %v1695
  %v1697 = vpop.f32.mrb[0].mxu0
  %1698 = vmatprep.mubr.bf16.mxu0 %v1331
  %1699 = vmatmul.mubr.bf16.gmra.mrb[0].mxu0 %v1330
  %v1700 = vpop.f32.mrb[0].mxu0
  %v1701 = vadd.f32 0.0, %v1700
  %v1702 = vpop.f32.mrb[0].mxu0
  %v1703 = vpop.f32.mrb[0].mxu0
  %v1704 = vadd.f32 0.0, %v1703
  %v1705 = vpop.f32.mrb[0].mxu0
  %1706 = vmatprep.mubr.bf16.mxu0 %v1335
  %1707 = vmatmul.mubr.bf16.gmra.mrb[0].mxu0 %v1334
  %v1708 = vpop.f32.mrb[0].mxu0
  %v1709 = vadd.f32 0.0, %v1708
  %v1710 = vpop.f32.mrb[0].mxu0
  %v1711 = vpop.f32.mrb[0].mxu0
  %v1712 = vadd.f32 0.0, %v1711
  %v1713 = vpop.f32.mrb[0].mxu0
  %1714 = vmatprep.mubr.bf16.mxu0 %v1339
  %1715 = vmatmul.mubr.bf16.gmra.mrb[0].mxu0 %v1338
  %v1716 = vpop.f32.mrb[0].mxu0
  %v1717 = vadd.f32 0.0, %v1716
  %v1718 = vpop.f32.mrb[0].mxu0
  %v1719 = vpop.f32.mrb[0].mxu0
  %v1720 = vadd.f32 0.0, %v1719
  %v1721 = vpop.f32.mrb[0].mxu0
  %1722 = vmatprep.mubr.bf16.mxu0 %v1343
  %1723 = vmatmul.mubr.bf16.gmra.mrb[0].mxu0 %v1342
  %v1724 = vpop.f32.mrb[0].mxu0
  %v1725 = vadd.f32 0.0, %v1724
  %v1726 = vpop.f32.mrb[0].mxu0
  %v1727 = vpop.f32.mrb[0].mxu0
  %v1728 = vadd.f32 0.0, %v1727
  %v1729 = vpop.f32.mrb[0].mxu0
  %1730 = vmatprep.mubr.bf16.mxu0 %v1347
  %1731 = vmatmul.mubr.bf16.gmra.mrb[0].mxu0 %v1346
  %v1732 = vpop.f32.mrb[0].mxu0
  %v1733 = vadd.f32 0.0, %v1732
  %v1734 = vpop.f32.mrb[0].mxu0
  %v1735 = vpop.f32.mrb[0].mxu0
  %v1736 = vadd.f32 0.0, %v1735
  %v1737 = vpop.f32.mrb[0].mxu0
  %1738 = vmatprep.mubr.bf16.mxu0 %v1351
  %1739 = vmatmul.mubr.bf16.gmra.mrb[0].mxu0 %v1350
  %v1740 = vpop.f32.mrb[0].mxu0
  %v1741 = vadd.f32 0.0, %v1740
  %v1742 = vpop.f32.mrb[0].mxu0
  %v1743 = vpop.f32.mrb[0].mxu0
  %v1744 = vadd.f32 0.0, %v1743
  %v1745 = vpop.f32.mrb[0].mxu0
  %1746 = vmatprep.mubr.bf16.mxu0 %v1355
  %1747 = vmatmul.mubr.bf16.gmra.mrb[0].mxu0 %v1354
  %v1748 = vpop.f32.mrb[0].mxu0
  %v1749 = vadd.f32 0.0, %v1748
  %v1750 = vpop.f32.mrb[0].mxu0
  %v1751 = vpop.f32.mrb[0].mxu0
  %v1752 = vadd.f32 0.0, %v1751
  %v1753 = vpop.f32.mrb[0].mxu0
  %1754 = vmatprep.mubr.bf16.mxu0 %v1359
  %1755 = vmatmul.mubr.bf16.gmra.mrb[0].mxu0 %v1358
  %v1756 = vpop.f32.mrb[0].mxu0
  %v1757 = vadd.f32 0.0, %v1756
  %v1758 = vpop.f32.mrb[0].mxu0
  %v1759 = vpop.f32.mrb[0].mxu0
  %v1760 = vadd.f32 0.0, %v1759
  %v1761 = vpop.f32.mrb[0].mxu0
  %1762 = vmatprep.mubr.bf16.mxu0 %v1363
  %1763 = vmatmul.mubr.bf16.gmra.mrb[0].mxu0 %v1362
  %v1764 = vpop.f32.mrb[0].mxu0
  %v1765 = vadd.f32 0.0, %v1764
  %v1766 = vpop.f32.mrb[0].mxu0
  %v1767 = vpop.f32.mrb[0].mxu0
  %v1768 = vadd.f32 0.0, %v1767
  %v1769 = vpop.f32.mrb[0].mxu0
  %1770 = vmatprep.mubr.bf16.mxu0 %v1367
  %1771 = vmatmul.mubr.bf16.gmra.mrb[0].mxu0 %v1366
  %v1772 = vpop.f32.mrb[0].mxu0
  %v1773 = vadd.f32 0.0, %v1772
  %v1774 = vpop.f32.mrb[0].mxu0
  %v1775 = vpop.f32.mrb[0].mxu0
  %v1776 = vadd.f32 0.0, %v1775
  %v1777 = vpop.f32.mrb[0].mxu0
  %1778 = vmatprep.mubr.bf16.mxu0 %v1371
  %1779 = vmatmul.mubr.bf16.gmra.mrb[0].mxu0 %v1370
  %v1780 = vpop.f32.mrb[0].mxu0
  %v1781 = vadd.f32 0.0, %v1780
  %v1782 = vpop.f32.mrb[0].mxu0
  %v1783 = vpop.f32.mrb[0].mxu0
  %v1784 = vadd.f32 0.0, %v1783
  %v1785 = vpop.f32.mrb[0].mxu0
  %1786 = vmatprep.mubr.bf16.mxu0 %v1375
  %1787 = vmatmul.mubr.bf16.gmra.mrb[0].mxu0 %v1374
  %v1788 = vpop.f32.mrb[0].mxu0
  %v1789 = vadd.f32 0.0, %v1788
  %v1790 = vpop.f32.mrb[0].mxu0
  %v1791 = vpop.f32.mrb[0].mxu0
  %v1792 = vadd.f32 0.0, %v1791
  %v1793 = vpop.f32.mrb[0].mxu0
  %1794 = vdwg.mxu0
  %1795 = vmatprep.subr.bf16.mxu0 0
  %1796 = vmatpush1.bf16.msra.mxu0 %v850
  %1797 = vmatprep.subr.bf16.mxu0 0
  %1798 = vmatpush1.bf16.msra.mxu0 %v851
  %1799 = vmatprep.subr.bf16.mxu0 0
  %1800 = vmatpush1.bf16.msra.mxu0 %v852
  %1801 = vmatprep.subr.bf16.mxu0 0
  %1802 = vmatpush1.bf16.msra.mxu0 %v853
  %1803 = vmatprep.subr.bf16.mxu0 0
  %1804 = vmatpush1.bf16.msra.mxu0 %v854
  %1805 = vmatprep.subr.bf16.mxu0 0
  %1806 = vmatpush1.bf16.msra.mxu0 %v855
  %1807 = vmatprep.subr.bf16.mxu0 0
  %1808 = vmatpush1.bf16.msra.mxu0 %v856
  %1809 = vmatprep.subr.bf16.mxu0 0
  %1810 = vmatpush1.bf16.msra.mxu0 %v857
  %1811 = vmatprep.subr.bf16.mxu0 0
  %1812 = vmatpush1.bf16.msra.mxu0 %v858
  %1813 = vmatprep.subr.bf16.mxu0 0
  %1814 = vmatpush1.bf16.msra.mxu0 %v859
  %1815 = vmatprep.subr.bf16.mxu0 0
  %1816 = vmatpush1.bf16.msra.mxu0 %v860
  %1817 = vmatprep.subr.bf16.mxu0 0
  %1818 = vmatpush1.bf16.msra.mxu0 %v861
  %1819 = vmatprep.subr.bf16.mxu0 0
  %1820 = vmatpush1.bf16.msra.mxu0 %v862
  %1821 = vmatprep.subr.bf16.mxu0 0
  %1822 = vmatpush1.bf16.msra.mxu0 %v863
  %1823 = vmatprep.subr.bf16.mxu0 0
  %1824 = vmatpush1.bf16.msra.mxu0 %v864
  %1825 = vmatprep.subr.bf16.mxu0 0
  %1826 = vmatpush1.bf16.msra.mxu0 %v865
  %1827 = vmatprep.mubr.bf16.mxu0 %v1253
  %1828 = vmatmul.mubr.bf16.gmra.mrb[0].mxu0 %v1252
  %v1829 = vpop.f32.mrb[0].mxu0
  %v1830 = vadd.f32 %v1541, %v1829
  %v1831 = vpop.f32.mrb[0].mxu0
  %v1832 = vpop.f32.mrb[0].mxu0
  %v1833 = vadd.f32 %v1544, %v1832
  %v1834 = vpop.f32.mrb[0].mxu0
  %1835 = vmatprep.mubr.bf16.mxu0 %v1257
  %1836 = vmatmul.mubr.bf16.gmra.mrb[0].mxu0 %v1256
  %v1837 = vpop.f32.mrb[0].mxu0
  %v1838 = vadd.f32 %v1549, %v1837
  %v1839 = vpop.f32.mrb[0].mxu0
  %v1840 = vpop.f32.mrb[0].mxu0
  %v1841 = vadd.f32 %v1552, %v1840
  %v1842 = vpop.f32.mrb[0].mxu0
  %1843 = vmatprep.mubr.bf16.mxu0 %v1261
  %1844 = vmatmul.mubr.bf16.gmra.mrb[0].mxu0 %v1260
  %v1845 = vpop.f32.mrb[0].mxu0
  %v1846 = vadd.f32 %v1557, %v1845
  %v1847 = vpop.f32.mrb[0].mxu0
  %v1848 = vpop.f32.mrb[0].mxu0
  %v1849 = vadd.f32 %v1560, %v1848
  %v1850 = vpop.f32.mrb[0].mxu0
  %1851 = vmatprep.mubr.bf16.mxu0 %v1265
  %1852 = vmatmul.mubr.bf16.gmra.mrb[0].mxu0 %v1264
  %v1853 = vpop.f32.mrb[0].mxu0
  %v1854 = vadd.f32 %v1565, %v1853
  %v1855 = vpop.f32.mrb[0].mxu0
  %v1856 = vpop.f32.mrb[0].mxu0
  %v1857 = vadd.f32 %v1568, %v1856
  %v1858 = vpop.f32.mrb[0].mxu0
  %1859 = vmatprep.mubr.bf16.mxu0 %v1269
  %1860 = vmatmul.mubr.bf16.gmra.mrb[0].mxu0 %v1268
  %v1861 = vpop.f32.mrb[0].mxu0
  %v1862 = vadd.f32 %v1573, %v1861
  %v1863 = vpop.f32.mrb[0].mxu0
  %v1864 = vpop.f32.mrb[0].mxu0
  %v1865 = vadd.f32 %v1576, %v1864
  %v1866 = vpop.f32.mrb[0].mxu0
  %1867 = vmatprep.mubr.bf16.mxu0 %v1273
  %1868 = vmatmul.mubr.bf16.gmra.mrb[0].mxu0 %v1272
  %v1869 = vpop.f32.mrb[0].mxu0
  %v1870 = vadd.f32 %v1581, %v1869
  %v1871 = vpop.f32.mrb[0].mxu0
  %v1872 = vpop.f32.mrb[0].mxu0
  %v1873 = vadd.f32 %v1584, %v1872
  %v1874 = vpop.f32.mrb[0].mxu0
  %1875 = vmatprep.mubr.bf16.mxu0 %v1277
  %1876 = vmatmul.mubr.bf16.gmra.mrb[0].mxu0 %v1276
  %v1877 = vpop.f32.mrb[0].mxu0
  %v1878 = vadd.f32 %v1589, %v1877
  %v1879 = vpop.f32.mrb[0].mxu0
  %v1880 = vpop.f32.mrb[0].mxu0
  %v1881 = vadd.f32 %v1592, %v1880
  %v1882 = vpop.f32.mrb[0].mxu0
  %1883 = vmatprep.mubr.bf16.mxu0 %v1281
  %1884 = vmatmul.mubr.bf16.gmra.mrb[0].mxu0 %v1280
  %v1885 = vpop.f32.mrb[0].mxu0
  %v1886 = vadd.f32 %v1597, %v1885
  %v1887 = vpop.f32.mrb[0].mxu0
  %v1888 = vpop.f32.mrb[0].mxu0
  %v1889 = vadd.f32 %v1600, %v1888
  %v1890 = vpop.f32.mrb[0].mxu0
  %1891 = vmatprep.mubr.bf16.mxu0 %v1285
  %1892 = vmatmul.mubr.bf16.gmra.mrb[0].mxu0 %v1284
  %v1893 = vpop.f32.mrb[0].mxu0
  %v1894 = vadd.f32 %v1605, %v1893
  %v1895 = vpop.f32.mrb[0].mxu0
  %v1896 = vpop.f32.mrb[0].mxu0
  %v1897 = vadd.f32 %v1608, %v1896
  %v1898 = vpop.f32.mrb[0].mxu0
  %1899 = vmatprep.mubr.bf16.mxu0 %v1289
  %1900 = vmatmul.mubr.bf16.gmra.mrb[0].mxu0 %v1288
  %v1901 = vpop.f32.mrb[0].mxu0
  %v1902 = vadd.f32 %v1613, %v1901
  %v1903 = vpop.f32.mrb[0].mxu0
  %v1904 = vpop.f32.mrb[0].mxu0
  %v1905 = vadd.f32 %v1616, %v1904
  %v1906 = vpop.f32.mrb[0].mxu0
  %1907 = vmatprep.mubr.bf16.mxu0 %v1293
  %1908 = vmatmul.mubr.bf16.gmra.mrb[0].mxu0 %v1292
  %v1909 = vpop.f32.mrb[0].mxu0
  %v1910 = vadd.f32 %v1621, %v1909
  %v1911 = vpop.f32.mrb[0].mxu0
  %v1912 = vpop.f32.mrb[0].mxu0
  %v1913 = vadd.f32 %v1624, %v1912
  %v1914 = vpop.f32.mrb[0].mxu0
  %1915 = vmatprep.mubr.bf16.mxu0 %v1297
  %1916 = vmatmul.mubr.bf16.gmra.mrb[0].mxu0 %v1296
  %v1917 = vpop.f32.mrb[0].mxu0
  %v1918 = vadd.f32 %v1629, %v1917
  %v1919 = vpop.f32.mrb[0].mxu0
  %v1920 = vpop.f32.mrb[0].mxu0
  %v1921 = vadd.f32 %v1632, %v1920
  %v1922 = vpop.f32.mrb[0].mxu0
  %1923 = vmatprep.mubr.bf16.mxu0 %v1301
  %1924 = vmatmul.mubr.bf16.gmra.mrb[0].mxu0 %v1300
  %v1925 = vpop.f32.mrb[0].mxu0
  %v1926 = vadd.f32 %v1637, %v1925
  %v1927 = vpop.f32.mrb[0].mxu0
  %v1928 = vpop.f32.mrb[0].mxu0
  %v1929 = vadd.f32 %v1640, %v1928
  %v1930 = vpop.f32.mrb[0].mxu0
  %1931 = vmatprep.mubr.bf16.mxu0 %v1305
  %1932 = vmatmul.mubr.bf16.gmra.mrb[0].mxu0 %v1304
  %v1933 = vpop.f32.mrb[0].mxu0
  %v1934 = vadd.f32 %v1645, %v1933
  %v1935 = vpop.f32.mrb[0].mxu0
  %v1936 = vpop.f32.mrb[0].mxu0
  %v1937 = vadd.f32 %v1648, %v1936
  %v1938 = vpop.f32.mrb[0].mxu0
  %1939 = vmatprep.mubr.bf16.mxu0 %v1309
  %1940 = vmatmul.mubr.bf16.gmra.mrb[0].mxu0 %v1308
  %v1941 = vpop.f32.mrb[0].mxu0
  %v1942 = vadd.f32 %v1653, %v1941
  %v1943 = vpop.f32.mrb[0].mxu0
  %v1944 = vpop.f32.mrb[0].mxu0
  %v1945 = vadd.f32 %v1656, %v1944
  %v1946 = vpop.f32.mrb[0].mxu0
  %1947 = vmatprep.mubr.bf16.mxu0 %v1313
  %1948 = vmatmul.mubr.bf16.gmra.mrb[0].mxu0 %v1312
  %v1949 = vpop.f32.mrb[0].mxu0
  %v1950 = vadd.f32 %v1661, %v1949
  %v1951 = vpop.f32.mrb[0].mxu0
  %v1952 = vpop.f32.mrb[0].mxu0
  %v1953 = vadd.f32 %v1664, %v1952
  %v1954 = vpop.f32.mrb[0].mxu0
  %1955 = vmatprep.mubr.bf16.mxu0 %v1317
  %1956 = vmatmul.mubr.bf16.gmra.mrb[0].mxu0 %v1316
  %v1957 = vpop.f32.mrb[0].mxu0
  %v1958 = vadd.f32 %v1669, %v1957
  %v1959 = vpop.f32.mrb[0].mxu0
  %v1960 = vpop.f32.mrb[0].mxu0
  %v1961 = vadd.f32 %v1672, %v1960
  %v1962 = vpop.f32.mrb[0].mxu0
  %1963 = vmatprep.mubr.bf16.mxu0 %v1321
  %1964 = vmatmul.mubr.bf16.gmra.mrb[0].mxu0 %v1320
  %v1965 = vpop.f32.mrb[0].mxu0
  %v1966 = vadd.f32 %v1677, %v1965
  %v1967 = vpop.f32.mrb[0].mxu0
  %v1968 = vpop.f32.mrb[0].mxu0
  %v1969 = vadd.f32 %v1680, %v1968
  %v1970 = vpop.f32.mrb[0].mxu0
  %1971 = vmatprep.mubr.bf16.mxu0 %v1325
  %1972 = vmatmul.mubr.bf16.gmra.mrb[0].mxu0 %v1324
  %v1973 = vpop.f32.mrb[0].mxu0
  %v1974 = vadd.f32 %v1685, %v1973
  %v1975 = vpop.f32.mrb[0].mxu0
  %v1976 = vpop.f32.mrb[0].mxu0
  %v1977 = vadd.f32 %v1688, %v1976
  %v1978 = vpop.f32.mrb[0].mxu0
  %1979 = vmatprep.mubr.bf16.mxu0 %v1329
  %1980 = vmatmul.mubr.bf16.gmra.mrb[0].mxu0 %v1328
  %v1981 = vpop.f32.mrb[0].mxu0
  %v1982 = vadd.f32 %v1693, %v1981
  %v1983 = vpop.f32.mrb[0].mxu0
  %v1984 = vpop.f32.mrb[0].mxu0
  %v1985 = vadd.f32 %v1696, %v1984
  %v1986 = vpop.f32.mrb[0].mxu0
  %1987 = vmatprep.mubr.bf16.mxu0 %v1333
  %1988 = vmatmul.mubr.bf16.gmra.mrb[0].mxu0 %v1332
  %v1989 = vpop.f32.mrb[0].mxu0
  %v1990 = vadd.f32 %v1701, %v1989
  %v1991 = vpop.f32.mrb[0].mxu0
  %v1992 = vpop.f32.mrb[0].mxu0
  %v1993 = vadd.f32 %v1704, %v1992
  %v1994 = vpop.f32.mrb[0].mxu0
  %1995 = vmatprep.mubr.bf16.mxu0 %v1337
  %1996 = vmatmul.mubr.bf16.gmra.mrb[0].mxu0 %v1336
  %v1997 = vpop.f32.mrb[0].mxu0
  %v1998 = vadd.f32 %v1709, %v1997
  %v1999 = vpop.f32.mrb[0].mxu0
  %v2000 = vpop.f32.mrb[0].mxu0
  %v2001 = vadd.f32 %v1712, %v2000
  %v2002 = vpop.f32.mrb[0].mxu0
  %2003 = vmatprep.mubr.bf16.mxu0 %v1341
  %2004 = vmatmul.mubr.bf16.gmra.mrb[0].mxu0 %v1340
  %v2005 = vpop.f32.mrb[0].mxu0
  %v2006 = vadd.f32 %v1717, %v2005
  %v2007 = vpop.f32.mrb[0].mxu0
  %v2008 = vpop.f32.mrb[0].mxu0
  %v2009 = vadd.f32 %v1720, %v2008
  %v2010 = vpop.f32.mrb[0].mxu0
  %2011 = vmatprep.mubr.bf16.mxu0 %v1345
  %2012 = vmatmul.mubr.bf16.gmra.mrb[0].mxu0 %v1344
  %v2013 = vpop.f32.mrb[0].mxu0
  %v2014 = vadd.f32 %v1725, %v2013
  %v2015 = vpop.f32.mrb[0].mxu0
  %v2016 = vpop.f32.mrb[0].mxu0
  %v2017 = vadd.f32 %v1728, %v2016
  %v2018 = vpop.f32.mrb[0].mxu0
  %2019 = vmatprep.mubr.bf16.mxu0 %v1349
  %2020 = vmatmul.mubr.bf16.gmra.mrb[0].mxu0 %v1348
  %v2021 = vpop.f32.mrb[0].mxu0
  %v2022 = vadd.f32 %v1733, %v2021
  %v2023 = vpop.f32.mrb[0].mxu0
  %v2024 = vpop.f32.mrb[0].mxu0
  %v2025 = vadd.f32 %v1736, %v2024
  %v2026 = vpop.f32.mrb[0].mxu0
  %2027 = vmatprep.mubr.bf16.mxu0 %v1353
  %2028 = vmatmul.mubr.bf16.gmra.mrb[0].mxu0 %v1352
  %v2029 = vpop.f32.mrb[0].mxu0
  %v2030 = vadd.f32 %v1741, %v2029
  %v2031 = vpop.f32.mrb[0].mxu0
  %v2032 = vpop.f32.mrb[0].mxu0
  %v2033 = vadd.f32 %v1744, %v2032
  %v2034 = vpop.f32.mrb[0].mxu0
  %2035 = vmatprep.mubr.bf16.mxu0 %v1357
  %2036 = vmatmul.mubr.bf16.gmra.mrb[0].mxu0 %v1356
  %v2037 = vpop.f32.mrb[0].mxu0
  %v2038 = vadd.f32 %v1749, %v2037
  %v2039 = vpop.f32.mrb[0].mxu0
  %v2040 = vpop.f32.mrb[0].mxu0
  %v2041 = vadd.f32 %v1752, %v2040
  %v2042 = vpop.f32.mrb[0].mxu0
  %2043 = vmatprep.mubr.bf16.mxu0 %v1361
  %2044 = vmatmul.mubr.bf16.gmra.mrb[0].mxu0 %v1360
  %v2045 = vpop.f32.mrb[0].mxu0
  %v2046 = vadd.f32 %v1757, %v2045
  %v2047 = vpop.f32.mrb[0].mxu0
  %v2048 = vpop.f32.mrb[0].mxu0
  %v2049 = vadd.f32 %v1760, %v2048
  %v2050 = vpop.f32.mrb[0].mxu0
  %2051 = vmatprep.mubr.bf16.mxu0 %v1365
  %2052 = vmatmul.mubr.bf16.gmra.mrb[0].mxu0 %v1364
  %v2053 = vpop.f32.mrb[0].mxu0
  %v2054 = vadd.f32 %v1765, %v2053
  %v2055 = vpop.f32.mrb[0].mxu0
  %v2056 = vpop.f32.mrb[0].mxu0
  %v2057 = vadd.f32 %v1768, %v2056
  %v2058 = vpop.f32.mrb[0].mxu0
  %2059 = vmatprep.mubr.bf16.mxu0 %v1369
  %2060 = vmatmul.mubr.bf16.gmra.mrb[0].mxu0 %v1368
  %v2061 = vpop.f32.mrb[0].mxu0
  %v2062 = vadd.f32 %v1773, %v2061
  %v2063 = vpop.f32.mrb[0].mxu0
  %v2064 = vpop.f32.mrb[0].mxu0
  %v2065 = vadd.f32 %v1776, %v2064
  %v2066 = vpop.f32.mrb[0].mxu0
  %2067 = vmatprep.mubr.bf16.mxu0 %v1373
  %2068 = vmatmul.mubr.bf16.gmra.mrb[0].mxu0 %v1372
  %v2069 = vpop.f32.mrb[0].mxu0
  %v2070 = vadd.f32 %v1781, %v2069
  %v2071 = vpop.f32.mrb[0].mxu0
  %v2072 = vpop.f32.mrb[0].mxu0
  %v2073 = vadd.f32 %v1784, %v2072
  %v2074 = vpop.f32.mrb[0].mxu0
  %2075 = vmatprep.mubr.bf16.mxu0 %v1377
  %2076 = vmatmul.mubr.bf16.gmra.mrb[0].mxu0 %v1376
  %v2077 = vpop.f32.mrb[0].mxu0
  %v2078 = vadd.f32 %v1789, %v2077
  %v2079 = vpop.f32.mrb[0].mxu0
  %v2080 = vpop.f32.mrb[0].mxu0
  %v2081 = vadd.f32 %v1792, %v2080
  %v2082 = vpop.f32.mrb[0].mxu0
  %2083 = vdwg.mxu0
  %2085 = vset.pattern.permute.xlu0 0
  %2086 = vperm.xlu0 %2085, %v225
  %v2087 = vpop.permute.xlu0 %2086
  %2090 = vset.pattern.permute.xlu0 0
  %2091 = vperm.xlu0 %2090, %v226
  %v2092 = vpop.permute.xlu0 %2091
  %2095 = vset.pattern.permute.xlu0 0
  %2096 = vperm.xlu0 %2095, %v227
  %v2097 = vpop.permute.xlu0 %2096
  %2100 = vset.pattern.permute.xlu0 0
  %2101 = vperm.xlu0 %2100, %v228
  %v2102 = vpop.permute.xlu0 %2101
  %2105 = vset.pattern.permute.xlu0 0
  %2106 = vperm.xlu0 %2105, %v229
  %v2107 = vpop.permute.xlu0 %2106
  %2110 = vset.pattern.permute.xlu0 0
  %2111 = vperm.xlu0 %2110, %v230
  %v2112 = vpop.permute.xlu0 %2111
  %2115 = vset.pattern.permute.xlu0 0
  %2116 = vperm.xlu0 %2115, %v231
  %v2117 = vpop.permute.xlu0 %2116
  %2120 = vset.pattern.permute.xlu0 0
  %2121 = vperm.xlu0 %2120, %v232
  %v2122 = vpop.permute.xlu0 %2121
  %2125 = vset.pattern.permute.xlu0 0
  %2126 = vperm.xlu0 %2125, %v233
  %v2127 = vpop.permute.xlu0 %2126
  %2130 = vset.pattern.permute.xlu0 0
  %2131 = vperm.xlu0 %2130, %v234
  %v2132 = vpop.permute.xlu0 %2131
  %2135 = vset.pattern.permute.xlu0 0
  %2136 = vperm.xlu0 %2135, %v235
  %v2137 = vpop.permute.xlu0 %2136
  %2140 = vset.pattern.permute.xlu0 0
  %2141 = vperm.xlu0 %2140, %v236
  %v2142 = vpop.permute.xlu0 %2141
  %2145 = vset.pattern.permute.xlu0 0
  %2146 = vperm.xlu0 %2145, %v237
  %v2147 = vpop.permute.xlu0 %2146
  %2150 = vset.pattern.permute.xlu0 0
  %2151 = vperm.xlu0 %2150, %v238
  %v2152 = vpop.permute.xlu0 %2151
  %2155 = vset.pattern.permute.xlu0 0
  %2156 = vperm.xlu0 %2155, %v239
  %v2157 = vpop.permute.xlu0 %2156
  %2160 = vset.pattern.permute.xlu0 0
  %2161 = vperm.xlu0 %2160, %v240
  %v2162 = vpop.permute.xlu0 %2161
  %2165 = vset.pattern.permute.xlu0 0
  %2166 = vperm.xlu0 %2165, %v241
  %v2167 = vpop.permute.xlu0 %2166
  %2170 = vset.pattern.permute.xlu0 0
  %2171 = vperm.xlu0 %2170, %v242
  %v2172 = vpop.permute.xlu0 %2171
  %2175 = vset.pattern.permute.xlu0 0
  %2176 = vperm.xlu0 %2175, %v243
  %v2177 = vpop.permute.xlu0 %2176
  %2180 = vset.pattern.permute.xlu0 0
  %2181 = vperm.xlu0 %2180, %v244
  %v2182 = vpop.permute.xlu0 %2181
  %2185 = vset.pattern.permute.xlu0 0
  %2186 = vperm.xlu0 %2185, %v245
  %v2187 = vpop.permute.xlu0 %2186
  %2190 = vset.pattern.permute.xlu0 0
  %2191 = vperm.xlu0 %2190, %v246
  %v2192 = vpop.permute.xlu0 %2191
  %2195 = vset.pattern.permute.xlu0 0
  %2196 = vperm.xlu0 %2195, %v247
  %v2197 = vpop.permute.xlu0 %2196
  %2200 = vset.pattern.permute.xlu0 0
  %2201 = vperm.xlu0 %2200, %v248
  %v2202 = vpop.permute.xlu0 %2201
  %2205 = vset.pattern.permute.xlu0 0
  %2206 = vperm.xlu0 %2205, %v249
  %v2207 = vpop.permute.xlu0 %2206
  %2210 = vset.pattern.permute.xlu0 0
  %2211 = vperm.xlu0 %2210, %v250
  %v2212 = vpop.permute.xlu0 %2211
  %2215 = vset.pattern.permute.xlu0 0
  %2216 = vperm.xlu0 %2215, %v251
  %v2217 = vpop.permute.xlu0 %2216
  %2220 = vset.pattern.permute.xlu0 0
  %2221 = vperm.xlu0 %2220, %v252
  %v2222 = vpop.permute.xlu0 %2221
  %2225 = vset.pattern.permute.xlu0 0
  %2226 = vperm.xlu0 %2225, %v253
  %v2227 = vpop.permute.xlu0 %2226
  %2230 = vset.pattern.permute.xlu0 0
  %2231 = vperm.xlu0 %2230, %v254
  %v2232 = vpop.permute.xlu0 %2231
  %2235 = vset.pattern.permute.xlu0 0
  %2236 = vperm.xlu0 %2235, %v255
  %v2237 = vpop.permute.xlu0 %2236
  %2240 = vset.pattern.permute.xlu0 0
  %2241 = vperm.xlu0 %2240, %v256
  %v2242 = vpop.permute.xlu0 %2241
  %2245 = vset.pattern.permute.xlu0 0
  %2246 = vperm.xlu0 %2245, %v257
  %v2247 = vpop.permute.xlu0 %2246
  %2250 = vset.pattern.permute.xlu0 0
  %2251 = vperm.xlu0 %2250, %v258
  %v2252 = vpop.permute.xlu0 %2251
  %2255 = vset.pattern.permute.xlu0 0
  %2256 = vperm.xlu0 %2255, %v259
  %v2257 = vpop.permute.xlu0 %2256
  %2260 = vset.pattern.permute.xlu0 0
  %2261 = vperm.xlu0 %2260, %v260
  %v2262 = vpop.permute.xlu0 %2261
  %2265 = vset.pattern.permute.xlu0 0
  %2266 = vperm.xlu0 %2265, %v261
  %v2267 = vpop.permute.xlu0 %2266
  %2270 = vset.pattern.permute.xlu0 0
  %2271 = vperm.xlu0 %2270, %v262
  %v2272 = vpop.permute.xlu0 %2271
  %2275 = vset.pattern.permute.xlu0 0
  %2276 = vperm.xlu0 %2275, %v263
  %v2277 = vpop.permute.xlu0 %2276
  %2280 = vset.pattern.permute.xlu0 0
  %2281 = vperm.xlu0 %2280, %v264
  %v2282 = vpop.permute.xlu0 %2281
  %2285 = vset.pattern.permute.xlu0 0
  %2286 = vperm.xlu0 %2285, %v265
  %v2287 = vpop.permute.xlu0 %2286
  %2290 = vset.pattern.permute.xlu0 0
  %2291 = vperm.xlu0 %2290, %v266
  %v2292 = vpop.permute.xlu0 %2291
  %2295 = vset.pattern.permute.xlu0 0
  %2296 = vperm.xlu0 %2295, %v267
  %v2297 = vpop.permute.xlu0 %2296
  %2300 = vset.pattern.permute.xlu0 0
  %2301 = vperm.xlu0 %2300, %v268
  %v2302 = vpop.permute.xlu0 %2301
  %2305 = vset.pattern.permute.xlu0 0
  %2306 = vperm.xlu0 %2305, %v269
  %v2307 = vpop.permute.xlu0 %2306
  %2310 = vset.pattern.permute.xlu0 0
  %2311 = vperm.xlu0 %2310, %v270
  %v2312 = vpop.permute.xlu0 %2311
  %2315 = vset.pattern.permute.xlu0 0
  %2316 = vperm.xlu0 %2315, %v271
  %v2317 = vpop.permute.xlu0 %2316
  %2320 = vset.pattern.permute.xlu0 0
  %2321 = vperm.xlu0 %2320, %v272
  %v2322 = vpop.permute.xlu0 %2321
  %2325 = vset.pattern.permute.xlu0 0
  %2326 = vperm.xlu0 %2325, %v273
  %v2327 = vpop.permute.xlu0 %2326
  %2330 = vset.pattern.permute.xlu0 0
  %2331 = vperm.xlu0 %2330, %v274
  %v2332 = vpop.permute.xlu0 %2331
  %2335 = vset.pattern.permute.xlu0 0
  %2336 = vperm.xlu0 %2335, %v275
  %v2337 = vpop.permute.xlu0 %2336
  %2340 = vset.pattern.permute.xlu0 0
  %2341 = vperm.xlu0 %2340, %v276
  %v2342 = vpop.permute.xlu0 %2341
  %2345 = vset.pattern.permute.xlu0 0
  %2346 = vperm.xlu0 %2345, %v277
  %v2347 = vpop.permute.xlu0 %2346
  %2350 = vset.pattern.permute.xlu0 0
  %2351 = vperm.xlu0 %2350, %v278
  %v2352 = vpop.permute.xlu0 %2351
  %2355 = vset.pattern.permute.xlu0 0
  %2356 = vperm.xlu0 %2355, %v279
  %v2357 = vpop.permute.xlu0 %2356
  %2360 = vset.pattern.permute.xlu0 0
  %2361 = vperm.xlu0 %2360, %v280
  %v2362 = vpop.permute.xlu0 %2361
  %2365 = vset.pattern.permute.xlu0 0
  %2366 = vperm.xlu0 %2365, %v281
  %v2367 = vpop.permute.xlu0 %2366
  %2370 = vset.pattern.permute.xlu0 0
  %2371 = vperm.xlu0 %2370, %v282
  %v2372 = vpop.permute.xlu0 %2371
  %2375 = vset.pattern.permute.xlu0 0
  %2376 = vperm.xlu0 %2375, %v283
  %v2377 = vpop.permute.xlu0 %2376
  %2380 = vset.pattern.permute.xlu0 0
  %2381 = vperm.xlu0 %2380, %v284
  %v2382 = vpop.permute.xlu0 %2381
  %2385 = vset.pattern.permute.xlu0 0
  %2386 = vperm.xlu0 %2385, %v285
  %v2387 = vpop.permute.xlu0 %2386
  %2390 = vset.pattern.permute.xlu0 0
  %2391 = vperm.xlu0 %2390, %v286
  %v2392 = vpop.permute.xlu0 %2391
  %2395 = vset.pattern.permute.xlu0 0
  %2396 = vperm.xlu0 %2395, %v287
  %v2397 = vpop.permute.xlu0 %2396
  %2400 = vset.pattern.permute.xlu0 0
  %2401 = vperm.xlu0 %2400, %v288
  %v2402 = vpop.permute.xlu0 %2401
  %v2404 = vmul.f32 %v2087, %v1830
  %v2405 = vmul.f32 %v2092, %v1833
  %v2406 = vmul.f32 %v2097, %v1838
  %v2407 = vmul.f32 %v2102, %v1841
  %v2408 = vmul.f32 %v2107, %v1846
  %v2409 = vmul.f32 %v2112, %v1849
  %v2410 = vmul.f32 %v2117, %v1854
  %v2411 = vmul.f32 %v2122, %v1857
  %v2412 = vmul.f32 %v2127, %v1862
  %v2413 = vmul.f32 %v2132, %v1865
  %v2414 = vmul.f32 %v2137, %v1870
  %v2415 = vmul.f32 %v2142, %v1873
  %v2416 = vmul.f32 %v2147, %v1878
  %v2417 = vmul.f32 %v2152, %v1881
  %v2418 = vmul.f32 %v2157, %v1886
  %v2419 = vmul.f32 %v2162, %v1889
  %v2420 = vmul.f32 %v2167, %v1894
  %v2421 = vmul.f32 %v2172, %v1897
  %v2422 = vmul.f32 %v2177, %v1902
  %v2423 = vmul.f32 %v2182, %v1905
  %v2424 = vmul.f32 %v2187, %v1910
  %v2425 = vmul.f32 %v2192, %v1913
  %v2426 = vmul.f32 %v2197, %v1918
  %v2427 = vmul.f32 %v2202, %v1921
  %v2428 = vmul.f32 %v2207, %v1926
  %v2429 = vmul.f32 %v2212, %v1929
  %v2430 = vmul.f32 %v2217, %v1934
  %v2431 = vmul.f32 %v2222, %v1937
  %v2432 = vmul.f32 %v2227, %v1942
  %v2433 = vmul.f32 %v2232, %v1945
  %v2434 = vmul.f32 %v2237, %v1950
  %v2435 = vmul.f32 %v2242, %v1953
  %v2436 = vmul.f32 %v2247, %v1958
  %v2437 = vmul.f32 %v2252, %v1961
  %v2438 = vmul.f32 %v2257, %v1966
  %v2439 = vmul.f32 %v2262, %v1969
  %v2440 = vmul.f32 %v2267, %v1974
  %v2441 = vmul.f32 %v2272, %v1977
  %v2442 = vmul.f32 %v2277, %v1982
  %v2443 = vmul.f32 %v2282, %v1985
  %v2444 = vmul.f32 %v2287, %v1990
  %v2445 = vmul.f32 %v2292, %v1993
  %v2446 = vmul.f32 %v2297, %v1998
  %v2447 = vmul.f32 %v2302, %v2001
  %v2448 = vmul.f32 %v2307, %v2006
  %v2449 = vmul.f32 %v2312, %v2009
  %v2450 = vmul.f32 %v2317, %v2014
  %v2451 = vmul.f32 %v2322, %v2017
  %v2452 = vmul.f32 %v2327, %v2022
  %v2453 = vmul.f32 %v2332, %v2025
  %v2454 = vmul.f32 %v2337, %v2030
  %v2455 = vmul.f32 %v2342, %v2033
  %v2456 = vmul.f32 %v2347, %v2038
  %v2457 = vmul.f32 %v2352, %v2041
  %v2458 = vmul.f32 %v2357, %v2046
  %v2459 = vmul.f32 %v2362, %v2049
  %v2460 = vmul.f32 %v2367, %v2054
  %v2461 = vmul.f32 %v2372, %v2057
  %v2462 = vmul.f32 %v2377, %v2062
  %v2463 = vmul.f32 %v2382, %v2065
  %v2464 = vmul.f32 %v2387, %v2070
  %v2465 = vmul.f32 %v2392, %v2073
  %v2466 = vmul.f32 %v2397, %v2078
  %v2467 = vmul.f32 %v2402, %v2081
  %v2468 = vld [vmem:[%s3] sm:$0xf]
  %v2469 = vld [vmem:[%s3 + $0x4] sm:$0xf]
  %v2470 = vld [vmem:[%s3 + $0x8] sm:$0xf]
  %v2471 = vld [vmem:[%s3 + $0xc] sm:$0xf]
  %v2472 = vld [vmem:[%s3 + $0x10] sm:$0xf]
  %v2473 = vld [vmem:[%s3 + $0x14] sm:$0xf]
  %v2474 = vld [vmem:[%s3 + $0x18] sm:$0xf]
  %v2475 = vld [vmem:[%s3 + $0x1c] sm:$0xf]
  %v2476 = vld [vmem:[%s3 + $0x20] sm:$0xf]
  %v2477 = vld [vmem:[%s3 + $0x24] sm:$0xf]
  %v2478 = vld [vmem:[%s3 + $0x28] sm:$0xf]
  %v2479 = vld [vmem:[%s3 + $0x2c] sm:$0xf]
  %v2480 = vld [vmem:[%s3 + $0x30] sm:$0xf]
  %v2481 = vld [vmem:[%s3 + $0x34] sm:$0xf]
  %v2482 = vld [vmem:[%s3 + $0x38] sm:$0xf]
  %v2483 = vld [vmem:[%s3 + $0x3c] sm:$0xf]
  %v2500 = vunpack.c.l.b16 %v2468
  %v2501 = vunpack.c.l.b16 %v2469
  %v2502 = vunpack.c.l.b16 %v2470
  %v2503 = vunpack.c.l.b16 %v2471
  %v2504 = vunpack.c.l.b16 %v2472
  %v2505 = vunpack.c.l.b16 %v2473
  %v2506 = vunpack.c.l.b16 %v2474
  %v2507 = vunpack.c.l.b16 %v2475
  %v2508 = vunpack.c.l.b16 %v2476
  %v2509 = vunpack.c.l.b16 %v2477
  %v2510 = vunpack.c.l.b16 %v2478
  %v2511 = vunpack.c.l.b16 %v2479
  %v2512 = vunpack.c.l.b16 %v2480
  %v2513 = vunpack.c.l.b16 %v2481
  %v2514 = vunpack.c.l.b16 %v2482
  %v2515 = vunpack.c.l.b16 %v2483
  %v2516 = vpack.c.b16 %v2501, %v2500
  %v2517 = vpack.c.b16 %v2503, %v2502
  %v2518 = vpack.c.b16 %v2505, %v2504
  %v2519 = vpack.c.b16 %v2507, %v2506
  %v2520 = vpack.c.b16 %v2509, %v2508
  %v2521 = vpack.c.b16 %v2511, %v2510
  %v2522 = vpack.c.b16 %v2513, %v2512
  %v2523 = vpack.c.b16 %v2515, %v2514
  %2532 = vmatprep.subr.bf16.mxu0 0
  %2533 = vmatpush1.bf16.msra.mxu0 %v2516
  %2534 = vmatprep.subr.bf16.mxu0 0
  %2535 = vmatpush1.bf16.msra.mxu0 %v2517
  %2536 = vmatprep.subr.bf16.mxu0 0
  %2537 = vmatpush1.bf16.msra.mxu0 %v2518
  %2538 = vmatprep.subr.bf16.mxu0 0
  %2539 = vmatpush1.bf16.msra.mxu0 %v2519
  %2540 = vmatprep.subr.bf16.mxu0 0
  %2541 = vmatpush1.bf16.msra.mxu0 %v2520
  %2542 = vmatprep.subr.bf16.mxu0 0
  %2543 = vmatpush1.bf16.msra.mxu0 %v2521
  %2544 = vmatprep.subr.bf16.mxu0 0
  %2545 = vmatpush1.bf16.msra.mxu0 %v2522
  %2546 = vmatprep.subr.bf16.mxu0 0
  %2547 = vmatpush1.bf16.msra.mxu0 %v2523
  %2548 = vmatprep.subr.bf16.mxu0 0
  %2549 = vmatpush1.bf16.msra.mxu0 0
  %2550 = vmatprep.subr.bf16.mxu0 0
  %2551 = vmatpush1.bf16.msra.mxu0 0
  %2552 = vmatprep.subr.bf16.mxu0 0
  %2553 = vmatpush1.bf16.msra.mxu0 0
  %2554 = vmatprep.subr.bf16.mxu0 0
  %2555 = vmatpush1.bf16.msra.mxu0 0
  %2556 = vmatprep.subr.bf16.mxu0 0
  %2557 = vmatpush1.bf16.msra.mxu0 0
  %2558 = vmatprep.subr.bf16.mxu0 0
  %2559 = vmatpush1.bf16.msra.mxu0 0
  %2560 = vmatprep.subr.bf16.mxu0 0
  %2561 = vmatpush1.bf16.msra.mxu0 0
  %2562 = vmatprep.subr.bf16.mxu0 0
  %2563 = vmatpush1.bf16.msra.mxu0 0
  %2564 = vmatprep.mubr.bf16.mxu0 0
  %2565 = vmatmul.mubr.bf16.gmra.mrb[0].mxu0 %v433
  %v2566 = vpop.f32.mrb[0].mxu0
  %v2567 = vadd.f32 0.0, %v2566
  %v2568 = vpop.f32.mrb[0].mxu0
  %v2569 = vpop.f32.mrb[0].mxu0
  %v2570 = vadd.f32 0.0, %v2569
  %v2571 = vpop.f32.mrb[0].mxu0
  %2572 = vmatprep.mubr.bf16.mxu0 0
  %2573 = vmatmul.mubr.bf16.gmra.mrb[0].mxu0 %v434
  %v2574 = vpop.f32.mrb[0].mxu0
  %v2575 = vadd.f32 0.0, %v2574
  %v2576 = vpop.f32.mrb[0].mxu0
  %v2577 = vpop.f32.mrb[0].mxu0
  %v2578 = vadd.f32 0.0, %v2577
  %v2579 = vpop.f32.mrb[0].mxu0
  %2580 = vmatprep.mubr.bf16.mxu0 0
  %2581 = vmatmul.mubr.bf16.gmra.mrb[0].mxu0 %v435
  %v2582 = vpop.f32.mrb[0].mxu0
  %v2583 = vadd.f32 0.0, %v2582
  %v2584 = vpop.f32.mrb[0].mxu0
  %v2585 = vpop.f32.mrb[0].mxu0
  %v2586 = vadd.f32 0.0, %v2585
  %v2587 = vpop.f32.mrb[0].mxu0
  %2588 = vmatprep.mubr.bf16.mxu0 0
  %2589 = vmatmul.mubr.bf16.gmra.mrb[0].mxu0 %v436
  %v2590 = vpop.f32.mrb[0].mxu0
  %v2591 = vadd.f32 0.0, %v2590
  %v2592 = vpop.f32.mrb[0].mxu0
  %v2593 = vpop.f32.mrb[0].mxu0
  %v2594 = vadd.f32 0.0, %v2593
  %v2595 = vpop.f32.mrb[0].mxu0
  %2596 = vmatprep.mubr.bf16.mxu0 0
  %2597 = vmatmul.mubr.bf16.gmra.mrb[0].mxu0 %v437
  %v2598 = vpop.f32.mrb[0].mxu0
  %v2599 = vadd.f32 0.0, %v2598
  %v2600 = vpop.f32.mrb[0].mxu0
  %v2601 = vpop.f32.mrb[0].mxu0
  %v2602 = vadd.f32 0.0, %v2601
  %v2603 = vpop.f32.mrb[0].mxu0
  %2604 = vmatprep.mubr.bf16.mxu0 0
  %2605 = vmatmul.mubr.bf16.gmra.mrb[0].mxu0 %v438
  %v2606 = vpop.f32.mrb[0].mxu0
  %v2607 = vadd.f32 0.0, %v2606
  %v2608 = vpop.f32.mrb[0].mxu0
  %v2609 = vpop.f32.mrb[0].mxu0
  %v2610 = vadd.f32 0.0, %v2609
  %v2611 = vpop.f32.mrb[0].mxu0
  %2612 = vmatprep.mubr.bf16.mxu0 0
  %2613 = vmatmul.mubr.bf16.gmra.mrb[0].mxu0 %v439
  %v2614 = vpop.f32.mrb[0].mxu0
  %v2615 = vadd.f32 0.0, %v2614
  %v2616 = vpop.f32.mrb[0].mxu0
  %v2617 = vpop.f32.mrb[0].mxu0
  %v2618 = vadd.f32 0.0, %v2617
  %v2619 = vpop.f32.mrb[0].mxu0
  %2620 = vmatprep.mubr.bf16.mxu0 0
  %2621 = vmatmul.mubr.bf16.gmra.mrb[0].mxu0 %v440
  %v2622 = vpop.f32.mrb[0].mxu0
  %v2623 = vadd.f32 0.0, %v2622
  %v2624 = vpop.f32.mrb[0].mxu0
  %v2625 = vpop.f32.mrb[0].mxu0
  %v2626 = vadd.f32 0.0, %v2625
  %v2627 = vpop.f32.mrb[0].mxu0
  %2628 = vmatprep.mubr.bf16.mxu0 0
  %2629 = vmatmul.mubr.bf16.gmra.mrb[0].mxu0 %v441
  %v2630 = vpop.f32.mrb[0].mxu0
  %v2631 = vadd.f32 0.0, %v2630
  %v2632 = vpop.f32.mrb[0].mxu0
  %v2633 = vpop.f32.mrb[0].mxu0
  %v2634 = vadd.f32 0.0, %v2633
  %v2635 = vpop.f32.mrb[0].mxu0
  %2636 = vmatprep.mubr.bf16.mxu0 0
  %2637 = vmatmul.mubr.bf16.gmra.mrb[0].mxu0 %v442
  %v2638 = vpop.f32.mrb[0].mxu0
  %v2639 = vadd.f32 0.0, %v2638
  %v2640 = vpop.f32.mrb[0].mxu0
  %v2641 = vpop.f32.mrb[0].mxu0
  %v2642 = vadd.f32 0.0, %v2641
  %v2643 = vpop.f32.mrb[0].mxu0
  %2644 = vmatprep.mubr.bf16.mxu0 0
  %2645 = vmatmul.mubr.bf16.gmra.mrb[0].mxu0 %v443
  %v2646 = vpop.f32.mrb[0].mxu0
  %v2647 = vadd.f32 0.0, %v2646
  %v2648 = vpop.f32.mrb[0].mxu0
  %v2649 = vpop.f32.mrb[0].mxu0
  %v2650 = vadd.f32 0.0, %v2649
  %v2651 = vpop.f32.mrb[0].mxu0
  %2652 = vmatprep.mubr.bf16.mxu0 0
  %2653 = vmatmul.mubr.bf16.gmra.mrb[0].mxu0 %v444
  %v2654 = vpop.f32.mrb[0].mxu0
  %v2655 = vadd.f32 0.0, %v2654
  %v2656 = vpop.f32.mrb[0].mxu0
  %v2657 = vpop.f32.mrb[0].mxu0
  %v2658 = vadd.f32 0.0, %v2657
  %v2659 = vpop.f32.mrb[0].mxu0
  %2660 = vmatprep.mubr.bf16.mxu0 0
  %2661 = vmatmul.mubr.bf16.gmra.mrb[0].mxu0 %v445
  %v2662 = vpop.f32.mrb[0].mxu0
  %v2663 = vadd.f32 0.0, %v2662
  %v2664 = vpop.f32.mrb[0].mxu0
  %v2665 = vpop.f32.mrb[0].mxu0
  %v2666 = vadd.f32 0.0, %v2665
  %v2667 = vpop.f32.mrb[0].mxu0
  %2668 = vmatprep.mubr.bf16.mxu0 0
  %2669 = vmatmul.mubr.bf16.gmra.mrb[0].mxu0 %v446
  %v2670 = vpop.f32.mrb[0].mxu0
  %v2671 = vadd.f32 0.0, %v2670
  %v2672 = vpop.f32.mrb[0].mxu0
  %v2673 = vpop.f32.mrb[0].mxu0
  %v2674 = vadd.f32 0.0, %v2673
  %v2675 = vpop.f32.mrb[0].mxu0
  %2676 = vmatprep.mubr.bf16.mxu0 0
  %2677 = vmatmul.mubr.bf16.gmra.mrb[0].mxu0 %v447
  %v2678 = vpop.f32.mrb[0].mxu0
  %v2679 = vadd.f32 0.0, %v2678
  %v2680 = vpop.f32.mrb[0].mxu0
  %v2681 = vpop.f32.mrb[0].mxu0
  %v2682 = vadd.f32 0.0, %v2681
  %v2683 = vpop.f32.mrb[0].mxu0
  %2684 = vmatprep.mubr.bf16.mxu0 0
  %2685 = vmatmul.mubr.bf16.gmra.mrb[0].mxu0 %v448
  %v2686 = vpop.f32.mrb[0].mxu0
  %v2687 = vadd.f32 0.0, %v2686
  %v2688 = vpop.f32.mrb[0].mxu0
  %v2689 = vpop.f32.mrb[0].mxu0
  %v2690 = vadd.f32 0.0, %v2689
  %v2691 = vpop.f32.mrb[0].mxu0
  %2692 = vmatprep.mubr.bf16.mxu0 0
  %2693 = vmatmul.mubr.bf16.gmra.mrb[0].mxu0 %v449
  %v2694 = vpop.f32.mrb[0].mxu0
  %v2695 = vadd.f32 0.0, %v2694
  %v2696 = vpop.f32.mrb[0].mxu0
  %v2697 = vpop.f32.mrb[0].mxu0
  %v2698 = vadd.f32 0.0, %v2697
  %v2699 = vpop.f32.mrb[0].mxu0
  %2700 = vmatprep.mubr.bf16.mxu0 0
  %2701 = vmatmul.mubr.bf16.gmra.mrb[0].mxu0 %v450
  %v2702 = vpop.f32.mrb[0].mxu0
  %v2703 = vadd.f32 0.0, %v2702
  %v2704 = vpop.f32.mrb[0].mxu0
  %v2705 = vpop.f32.mrb[0].mxu0
  %v2706 = vadd.f32 0.0, %v2705
  %v2707 = vpop.f32.mrb[0].mxu0
  %2708 = vmatprep.mubr.bf16.mxu0 0
  %2709 = vmatmul.mubr.bf16.gmra.mrb[0].mxu0 %v451
  %v2710 = vpop.f32.mrb[0].mxu0
  %v2711 = vadd.f32 0.0, %v2710
  %v2712 = vpop.f32.mrb[0].mxu0
  %v2713 = vpop.f32.mrb[0].mxu0
  %v2714 = vadd.f32 0.0, %v2713
  %v2715 = vpop.f32.mrb[0].mxu0
  %2716 = vmatprep.mubr.bf16.mxu0 0
  %2717 = vmatmul.mubr.bf16.gmra.mrb[0].mxu0 %v452
  %v2718 = vpop.f32.mrb[0].mxu0
  %v2719 = vadd.f32 0.0, %v2718
  %v2720 = vpop.f32.mrb[0].mxu0
  %v2721 = vpop.f32.mrb[0].mxu0
  %v2722 = vadd.f32 0.0, %v2721
  %v2723 = vpop.f32.mrb[0].mxu0
  %2724 = vmatprep.mubr.bf16.mxu0 0
  %2725 = vmatmul.mubr.bf16.gmra.mrb[0].mxu0 %v453
  %v2726 = vpop.f32.mrb[0].mxu0
  %v2727 = vadd.f32 0.0, %v2726
  %v2728 = vpop.f32.mrb[0].mxu0
  %v2729 = vpop.f32.mrb[0].mxu0
  %v2730 = vadd.f32 0.0, %v2729
  %v2731 = vpop.f32.mrb[0].mxu0
  %2732 = vmatprep.mubr.bf16.mxu0 0
  %2733 = vmatmul.mubr.bf16.gmra.mrb[0].mxu0 %v454
  %v2734 = vpop.f32.mrb[0].mxu0
  %v2735 = vadd.f32 0.0, %v2734
  %v2736 = vpop.f32.mrb[0].mxu0
  %v2737 = vpop.f32.mrb[0].mxu0
  %v2738 = vadd.f32 0.0, %v2737
  %v2739 = vpop.f32.mrb[0].mxu0
  %2740 = vmatprep.mubr.bf16.mxu0 0
  %2741 = vmatmul.mubr.bf16.gmra.mrb[0].mxu0 %v455
  %v2742 = vpop.f32.mrb[0].mxu0
  %v2743 = vadd.f32 0.0, %v2742
  %v2744 = vpop.f32.mrb[0].mxu0
  %v2745 = vpop.f32.mrb[0].mxu0
  %v2746 = vadd.f32 0.0, %v2745
  %v2747 = vpop.f32.mrb[0].mxu0
  %2748 = vmatprep.mubr.bf16.mxu0 0
  %2749 = vmatmul.mubr.bf16.gmra.mrb[0].mxu0 %v456
  %v2750 = vpop.f32.mrb[0].mxu0
  %v2751 = vadd.f32 0.0, %v2750
  %v2752 = vpop.f32.mrb[0].mxu0
  %v2753 = vpop.f32.mrb[0].mxu0
  %v2754 = vadd.f32 0.0, %v2753
  %v2755 = vpop.f32.mrb[0].mxu0
  %2756 = vmatprep.mubr.bf16.mxu0 0
  %2757 = vmatmul.mubr.bf16.gmra.mrb[0].mxu0 %v457
  %v2758 = vpop.f32.mrb[0].mxu0
  %v2759 = vadd.f32 0.0, %v2758
  %v2760 = vpop.f32.mrb[0].mxu0
  %v2761 = vpop.f32.mrb[0].mxu0
  %v2762 = vadd.f32 0.0, %v2761
  %v2763 = vpop.f32.mrb[0].mxu0
  %2764 = vmatprep.mubr.bf16.mxu0 0
  %2765 = vmatmul.mubr.bf16.gmra.mrb[0].mxu0 %v458
  %v2766 = vpop.f32.mrb[0].mxu0
  %v2767 = vadd.f32 0.0, %v2766
  %v2768 = vpop.f32.mrb[0].mxu0
  %v2769 = vpop.f32.mrb[0].mxu0
  %v2770 = vadd.f32 0.0, %v2769
  %v2771 = vpop.f32.mrb[0].mxu0
  %2772 = vmatprep.mubr.bf16.mxu0 0
  %2773 = vmatmul.mubr.bf16.gmra.mrb[0].mxu0 %v459
  %v2774 = vpop.f32.mrb[0].mxu0
  %v2775 = vadd.f32 0.0, %v2774
  %v2776 = vpop.f32.mrb[0].mxu0
  %v2777 = vpop.f32.mrb[0].mxu0
  %v2778 = vadd.f32 0.0, %v2777
  %v2779 = vpop.f32.mrb[0].mxu0
  %2780 = vmatprep.mubr.bf16.mxu0 0
  %2781 = vmatmul.mubr.bf16.gmra.mrb[0].mxu0 %v460
  %v2782 = vpop.f32.mrb[0].mxu0
  %v2783 = vadd.f32 0.0, %v2782
  %v2784 = vpop.f32.mrb[0].mxu0
  %v2785 = vpop.f32.mrb[0].mxu0
  %v2786 = vadd.f32 0.0, %v2785
  %v2787 = vpop.f32.mrb[0].mxu0
  %2788 = vmatprep.mubr.bf16.mxu0 0
  %2789 = vmatmul.mubr.bf16.gmra.mrb[0].mxu0 %v461
  %v2790 = vpop.f32.mrb[0].mxu0
  %v2791 = vadd.f32 0.0, %v2790
  %v2792 = vpop.f32.mrb[0].mxu0
  %v2793 = vpop.f32.mrb[0].mxu0
  %v2794 = vadd.f32 0.0, %v2793
  %v2795 = vpop.f32.mrb[0].mxu0
  %2796 = vmatprep.mubr.bf16.mxu0 0
  %2797 = vmatmul.mubr.bf16.gmra.mrb[0].mxu0 %v462
  %v2798 = vpop.f32.mrb[0].mxu0
  %v2799 = vadd.f32 0.0, %v2798
  %v2800 = vpop.f32.mrb[0].mxu0
  %v2801 = vpop.f32.mrb[0].mxu0
  %v2802 = vadd.f32 0.0, %v2801
  %v2803 = vpop.f32.mrb[0].mxu0
  %2804 = vmatprep.mubr.bf16.mxu0 0
  %2805 = vmatmul.mubr.bf16.gmra.mrb[0].mxu0 %v463
  %v2806 = vpop.f32.mrb[0].mxu0
  %v2807 = vadd.f32 0.0, %v2806
  %v2808 = vpop.f32.mrb[0].mxu0
  %v2809 = vpop.f32.mrb[0].mxu0
  %v2810 = vadd.f32 0.0, %v2809
  %v2811 = vpop.f32.mrb[0].mxu0
  %2812 = vmatprep.mubr.bf16.mxu0 0
  %2813 = vmatmul.mubr.bf16.gmra.mrb[0].mxu0 %v464
  %v2814 = vpop.f32.mrb[0].mxu0
  %v2815 = vadd.f32 0.0, %v2814
  %v2816 = vpop.f32.mrb[0].mxu0
  %v2817 = vpop.f32.mrb[0].mxu0
  %v2818 = vadd.f32 0.0, %v2817
  %v2819 = vpop.f32.mrb[0].mxu0
  %2820 = vdwg.mxu0
  %v2821 = vadd.f32 %v2404, %v2567
  %v2822 = vadd.f32 %v2405, %v2570
  %v2823 = vadd.f32 %v2406, %v2575
  %v2824 = vadd.f32 %v2407, %v2578
  %v2825 = vadd.f32 %v2408, %v2583
  %v2826 = vadd.f32 %v2409, %v2586
  %v2827 = vadd.f32 %v2410, %v2591
  %v2828 = vadd.f32 %v2411, %v2594
  %v2829 = vadd.f32 %v2412, %v2599
  %v2830 = vadd.f32 %v2413, %v2602
  %v2831 = vadd.f32 %v2414, %v2607
  %v2832 = vadd.f32 %v2415, %v2610
  %v2833 = vadd.f32 %v2416, %v2615
  %v2834 = vadd.f32 %v2417, %v2618
  %v2835 = vadd.f32 %v2418, %v2623
  %v2836 = vadd.f32 %v2419, %v2626
  %v2837 = vadd.f32 %v2420, %v2631
  %v2838 = vadd.f32 %v2421, %v2634
  %v2839 = vadd.f32 %v2422, %v2639
  %v2840 = vadd.f32 %v2423, %v2642
  %v2841 = vadd.f32 %v2424, %v2647
  %v2842 = vadd.f32 %v2425, %v2650
  %v2843 = vadd.f32 %v2426, %v2655
  %v2844 = vadd.f32 %v2427, %v2658
  %v2845 = vadd.f32 %v2428, %v2663
  %v2846 = vadd.f32 %v2429, %v2666
  %v2847 = vadd.f32 %v2430, %v2671
  %v2848 = vadd.f32 %v2431, %v2674
  %v2849 = vadd.f32 %v2432, %v2679
  %v2850 = vadd.f32 %v2433, %v2682
  %v2851 = vadd.f32 %v2434, %v2687
  %v2852 = vadd.f32 %v2435, %v2690
  %v2853 = vadd.f32 %v2436, %v2695
  %v2854 = vadd.f32 %v2437, %v2698
  %v2855 = vadd.f32 %v2438, %v2703
  %v2856 = vadd.f32 %v2439, %v2706
  %v2857 = vadd.f32 %v2440, %v2711
  %v2858 = vadd.f32 %v2441, %v2714
  %v2859 = vadd.f32 %v2442, %v2719
  %v2860 = vadd.f32 %v2443, %v2722
  %v2861 = vadd.f32 %v2444, %v2727
  %v2862 = vadd.f32 %v2445, %v2730
  %v2863 = vadd.f32 %v2446, %v2735
  %v2864 = vadd.f32 %v2447, %v2738
  %v2865 = vadd.f32 %v2448, %v2743
  %v2866 = vadd.f32 %v2449, %v2746
  %v2867 = vadd.f32 %v2450, %v2751
  %v2868 = vadd.f32 %v2451, %v2754
  %v2869 = vadd.f32 %v2452, %v2759
  %v2870 = vadd.f32 %v2453, %v2762
  %v2871 = vadd.f32 %v2454, %v2767
  %v2872 = vadd.f32 %v2455, %v2770
  %v2873 = vadd.f32 %v2456, %v2775
  %v2874 = vadd.f32 %v2457, %v2778
  %v2875 = vadd.f32 %v2458, %v2783
  %v2876 = vadd.f32 %v2459, %v2786
  %v2877 = vadd.f32 %v2460, %v2791
  %v2878 = vadd.f32 %v2461, %v2794
  %v2879 = vadd.f32 %v2462, %v2799
  %v2880 = vadd.f32 %v2463, %v2802
  %v2881 = vadd.f32 %v2464, %v2807
  %v2882 = vadd.f32 %v2465, %v2810
  %v2883 = vadd.f32 %v2466, %v2815
  %v2884 = vadd.f32 %v2467, %v2818
  %v2885 = vld [vmem:[%s4] sm:$0x1]
  %v2887 = vlaneseq
  %v2888 = vshrl.u32 %v2887, 7
  %v2889 = vsub.s32 0, %v2888
  %v2890 = vrot.slane %v2885, %v2889
  %v2892 = vadd.f32 %v2821, %v2890
  %v2893 = vadd.f32 %v2822, %v2890
  %v2894 = vadd.f32 %v2823, %v2890
  %v2895 = vadd.f32 %v2824, %v2890
  %v2896 = vadd.f32 %v2825, %v2890
  %v2897 = vadd.f32 %v2826, %v2890
  %v2898 = vadd.f32 %v2827, %v2890
  %v2899 = vadd.f32 %v2828, %v2890
  %v2900 = vadd.f32 %v2829, %v2890
  %v2901 = vadd.f32 %v2830, %v2890
  %v2902 = vadd.f32 %v2831, %v2890
  %v2903 = vadd.f32 %v2832, %v2890
  %v2904 = vadd.f32 %v2833, %v2890
  %v2905 = vadd.f32 %v2834, %v2890
  %v2906 = vadd.f32 %v2835, %v2890
  %v2907 = vadd.f32 %v2836, %v2890
  %v2908 = vadd.f32 %v2837, %v2890
  %v2909 = vadd.f32 %v2838, %v2890
  %v2910 = vadd.f32 %v2839, %v2890
  %v2911 = vadd.f32 %v2840, %v2890
  %v2912 = vadd.f32 %v2841, %v2890
  %v2913 = vadd.f32 %v2842, %v2890
  %v2914 = vadd.f32 %v2843, %v2890
  %v2915 = vadd.f32 %v2844, %v2890
  %v2916 = vadd.f32 %v2845, %v2890
  %v2917 = vadd.f32 %v2846, %v2890
  %v2918 = vadd.f32 %v2847, %v2890
  %v2919 = vadd.f32 %v2848, %v2890
  %v2920 = vadd.f32 %v2849, %v2890
  %v2921 = vadd.f32 %v2850, %v2890
  %v2922 = vadd.f32 %v2851, %v2890
  %v2923 = vadd.f32 %v2852, %v2890
  %v2924 = vadd.f32 %v2853, %v2890
  %v2925 = vadd.f32 %v2854, %v2890
  %v2926 = vadd.f32 %v2855, %v2890
  %v2927 = vadd.f32 %v2856, %v2890
  %v2928 = vadd.f32 %v2857, %v2890
  %v2929 = vadd.f32 %v2858, %v2890
  %v2930 = vadd.f32 %v2859, %v2890
  %v2931 = vadd.f32 %v2860, %v2890
  %v2932 = vadd.f32 %v2861, %v2890
  %v2933 = vadd.f32 %v2862, %v2890
  %v2934 = vadd.f32 %v2863, %v2890
  %v2935 = vadd.f32 %v2864, %v2890
  %v2936 = vadd.f32 %v2865, %v2890
  %v2937 = vadd.f32 %v2866, %v2890
  %v2938 = vadd.f32 %v2867, %v2890
  %v2939 = vadd.f32 %v2868, %v2890
  %v2940 = vadd.f32 %v2869, %v2890
  %v2941 = vadd.f32 %v2870, %v2890
  %v2942 = vadd.f32 %v2871, %v2890
  %v2943 = vadd.f32 %v2872, %v2890
  %v2944 = vadd.f32 %v2873, %v2890
  %v2945 = vadd.f32 %v2874, %v2890
  %v2946 = vadd.f32 %v2875, %v2890
  %v2947 = vadd.f32 %v2876, %v2890
  %v2948 = vadd.f32 %v2877, %v2890
  %v2949 = vadd.f32 %v2878, %v2890
  %v2950 = vadd.f32 %v2879, %v2890
  %v2951 = vadd.f32 %v2880, %v2890
  %v2952 = vadd.f32 %v2881, %v2890
  %v2953 = vadd.f32 %v2882, %v2890
  %v2954 = vadd.f32 %v2883, %v2890
  %v2955 = vadd.f32 %v2884, %v2890
  %v2956 = vmax.f32 %v2892, 0.0
  %v2957 = vmax.f32 %v2893, 0.0
  %v2958 = vmax.f32 %v2894, 0.0
  %v2959 = vmax.f32 %v2895, 0.0
  %v2960 = vmax.f32 %v2896, 0.0
  %v2961 = vmax.f32 %v2897, 0.0
  %v2962 = vmax.f32 %v2898, 0.0
  %v2963 = vmax.f32 %v2899, 0.0
  %v2964 = vmax.f32 %v2900, 0.0
  %v2965 = vmax.f32 %v2901, 0.0
  %v2966 = vmax.f32 %v2902, 0.0
  %v2967 = vmax.f32 %v2903, 0.0
  %v2968 = vmax.f32 %v2904, 0.0
  %v2969 = vmax.f32 %v2905, 0.0
  %v2970 = vmax.f32 %v2906, 0.0
  %v2971 = vmax.f32 %v2907, 0.0
  %v2972 = vmax.f32 %v2908, 0.0
  %v2973 = vmax.f32 %v2909, 0.0
  %v2974 = vmax.f32 %v2910, 0.0
  %v2975 = vmax.f32 %v2911, 0.0
  %v2976 = vmax.f32 %v2912, 0.0
  %v2977 = vmax.f32 %v2913, 0.0
  %v2978 = vmax.f32 %v2914, 0.0
  %v2979 = vmax.f32 %v2915, 0.0
  %v2980 = vmax.f32 %v2916, 0.0
  %v2981 = vmax.f32 %v2917, 0.0
  %v2982 = vmax.f32 %v2918, 0.0
  %v2983 = vmax.f32 %v2919, 0.0
  %v2984 = vmax.f32 %v2920, 0.0
  %v2985 = vmax.f32 %v2921, 0.0
  %v2986 = vmax.f32 %v2922, 0.0
  %v2987 = vmax.f32 %v2923, 0.0
  %v2988 = vmax.f32 %v2924, 0.0
  %v2989 = vmax.f32 %v2925, 0.0
  %v2990 = vmax.f32 %v2926, 0.0
  %v2991 = vmax.f32 %v2927, 0.0
  %v2992 = vmax.f32 %v2928, 0.0
  %v2993 = vmax.f32 %v2929, 0.0
  %v2994 = vmax.f32 %v2930, 0.0
  %v2995 = vmax.f32 %v2931, 0.0
  %v2996 = vmax.f32 %v2932, 0.0
  %v2997 = vmax.f32 %v2933, 0.0
  %v2998 = vmax.f32 %v2934, 0.0
  %v2999 = vmax.f32 %v2935, 0.0
  %v3000 = vmax.f32 %v2936, 0.0
  %v3001 = vmax.f32 %v2937, 0.0
  %v3002 = vmax.f32 %v2938, 0.0
  %v3003 = vmax.f32 %v2939, 0.0
  %v3004 = vmax.f32 %v2940, 0.0
  %v3005 = vmax.f32 %v2941, 0.0
  %v3006 = vmax.f32 %v2942, 0.0
  %v3007 = vmax.f32 %v2943, 0.0
  %v3008 = vmax.f32 %v2944, 0.0
  %v3009 = vmax.f32 %v2945, 0.0
  %v3010 = vmax.f32 %v2946, 0.0
  %v3011 = vmax.f32 %v2947, 0.0
  %v3012 = vmax.f32 %v2948, 0.0
  %v3013 = vmax.f32 %v2949, 0.0
  %v3014 = vmax.f32 %v2950, 0.0
  %v3015 = vmax.f32 %v2951, 0.0
  %v3016 = vmax.f32 %v2952, 0.0
  %v3017 = vmax.f32 %v2953, 0.0
  %v3018 = vmax.f32 %v2954, 0.0
  %v3019 = vmax.f32 %v2955, 0.0
  %v3020 = vpack.c.bf16 %v2957, %v2956
  %v3021 = vpack.c.bf16 %v2959, %v2958
  %v3022 = vpack.c.bf16 %v2961, %v2960
  %v3023 = vpack.c.bf16 %v2963, %v2962
  %v3024 = vpack.c.bf16 %v2965, %v2964
  %v3025 = vpack.c.bf16 %v2967, %v2966
  %v3026 = vpack.c.bf16 %v2969, %v2968
  %v3027 = vpack.c.bf16 %v2971, %v2970
  %v3028 = vpack.c.bf16 %v2973, %v2972
  %v3029 = vpack.c.bf16 %v2975, %v2974
  %v3030 = vpack.c.bf16 %v2977, %v2976
  %v3031 = vpack.c.bf16 %v2979, %v2978
  %v3032 = vpack.c.bf16 %v2981, %v2980
  %v3033 = vpack.c.bf16 %v2983, %v2982
  %v3034 = vpack.c.bf16 %v2985, %v2984
  %v3035 = vpack.c.bf16 %v2987, %v2986
  %v3036 = vpack.c.bf16 %v2989, %v2988
  %v3037 = vpack.c.bf16 %v2991, %v2990
  %v3038 = vpack.c.bf16 %v2993, %v2992
  %v3039 = vpack.c.bf16 %v2995, %v2994
  %v3040 = vpack.c.bf16 %v2997, %v2996
  %v3041 = vpack.c.bf16 %v2999, %v2998
  %v3042 = vpack.c.bf16 %v3001, %v3000
  %v3043 = vpack.c.bf16 %v3003, %v3002
  %v3044 = vpack.c.bf16 %v3005, %v3004
  %v3045 = vpack.c.bf16 %v3007, %v3006
  %v3046 = vpack.c.bf16 %v3009, %v3008
  %v3047 = vpack.c.bf16 %v3011, %v3010
  %v3048 = vpack.c.bf16 %v3013, %v3012
  %v3049 = vpack.c.bf16 %v3015, %v3014
  %v3050 = vpack.c.bf16 %v3017, %v3016
  %v3051 = vpack.c.bf16 %v3019, %v3018
  %v3052 = vld [vmem:[%s5] sm:$0xf]
  %v3053 = vld [vmem:[%s5 + $0x4] sm:$0xf]
  %v3054 = vld [vmem:[%s5 + $0x8] sm:$0xf]
  %v3055 = vld [vmem:[%s5 + $0xc] sm:$0xf]
  %v3056 = vld [vmem:[%s5 + $0x10] sm:$0xf]
  %v3057 = vld [vmem:[%s5 + $0x14] sm:$0xf]
  %v3058 = vld [vmem:[%s5 + $0x18] sm:$0xf]
  %v3059 = vld [vmem:[%s5 + $0x1c] sm:$0xf]
  %v3060 = vld [vmem:[%s5 + $0x20] sm:$0xf]
  %v3061 = vld [vmem:[%s5 + $0x24] sm:$0xf]
  %v3062 = vld [vmem:[%s5 + $0x28] sm:$0xf]
  %v3063 = vld [vmem:[%s5 + $0x2c] sm:$0xf]
  %v3064 = vld [vmem:[%s5 + $0x30] sm:$0xf]
  %v3065 = vld [vmem:[%s5 + $0x34] sm:$0xf]
  %v3066 = vld [vmem:[%s5 + $0x38] sm:$0xf]
  %v3067 = vld [vmem:[%s5 + $0x3c] sm:$0xf]
  %v3084 = vunpack.c.l.b16 %v3052
  %v3085 = vunpack.c.l.b16 %v3053
  %v3086 = vunpack.c.l.b16 %v3054
  %v3087 = vunpack.c.l.b16 %v3055
  %v3088 = vunpack.c.l.b16 %v3056
  %v3089 = vunpack.c.l.b16 %v3057
  %v3090 = vunpack.c.l.b16 %v3058
  %v3091 = vunpack.c.l.b16 %v3059
  %v3092 = vunpack.c.l.b16 %v3060
  %v3093 = vunpack.c.l.b16 %v3061
  %v3094 = vunpack.c.l.b16 %v3062
  %v3095 = vunpack.c.l.b16 %v3063
  %v3096 = vunpack.c.l.b16 %v3064
  %v3097 = vunpack.c.l.b16 %v3065
  %v3098 = vunpack.c.l.b16 %v3066
  %v3099 = vunpack.c.l.b16 %v3067
  %v3100 = vpack.c.b16 %v3085, %v3084
  %v3101 = vpack.c.b16 %v3087, %v3086
  %v3102 = vpack.c.b16 %v3089, %v3088
  %v3103 = vpack.c.b16 %v3091, %v3090
  %v3104 = vpack.c.b16 %v3093, %v3092
  %v3105 = vpack.c.b16 %v3095, %v3094
  %v3106 = vpack.c.b16 %v3097, %v3096
  %v3107 = vpack.c.b16 %v3099, %v3098
  %3116 = vmatprep.subr.bf16.mxu0 0
  %3117 = vmatpush1.bf16.msra.mxu0 %v3100
  %3118 = vmatprep.subr.bf16.mxu0 0
  %3119 = vmatpush1.bf16.msra.mxu0 %v3101
  %3120 = vmatprep.subr.bf16.mxu0 0
  %3121 = vmatpush1.bf16.msra.mxu0 %v3102
  %3122 = vmatprep.subr.bf16.mxu0 0
  %3123 = vmatpush1.bf16.msra.mxu0 %v3103
  %3124 = vmatprep.subr.bf16.mxu0 0
  %3125 = vmatpush1.bf16.msra.mxu0 %v3104
  %3126 = vmatprep.subr.bf16.mxu0 0
  %3127 = vmatpush1.bf16.msra.mxu0 %v3105
  %3128 = vmatprep.subr.bf16.mxu0 0
  %3129 = vmatpush1.bf16.msra.mxu0 %v3106
  %3130 = vmatprep.subr.bf16.mxu0 0
  %3131 = vmatpush1.bf16.msra.mxu0 %v3107
  %3132 = vmatprep.subr.bf16.mxu0 0
  %3133 = vmatpush1.bf16.msra.mxu0 0
  %3134 = vmatprep.subr.bf16.mxu0 0
  %3135 = vmatpush1.bf16.msra.mxu0 0
  %3136 = vmatprep.subr.bf16.mxu0 0
  %3137 = vmatpush1.bf16.msra.mxu0 0
  %3138 = vmatprep.subr.bf16.mxu0 0
  %3139 = vmatpush1.bf16.msra.mxu0 0
  %3140 = vmatprep.subr.bf16.mxu0 0
  %3141 = vmatpush1.bf16.msra.mxu0 0
  %3142 = vmatprep.subr.bf16.mxu0 0
  %3143 = vmatpush1.bf16.msra.mxu0 0
  %3144 = vmatprep.subr.bf16.mxu0 0
  %3145 = vmatpush1.bf16.msra.mxu0 0
  %3146 = vmatprep.subr.bf16.mxu0 0
  %3147 = vmatpush1.bf16.msra.mxu0 0
  %3148 = vmatprep.mubr.bf16.mxu0 0
  %3149 = vmatmul.mubr.bf16.gmra.mrb[0].mxu0 %v3020
  %v3150 = vpop.f32.mrb[0].mxu0
  %v3151 = vadd.f32 0.0, %v3150
  %v3152 = vpop.f32.mrb[0].mxu0
  %v3153 = vpop.f32.mrb[0].mxu0
  %v3154 = vadd.f32 0.0, %v3153
  %v3155 = vpop.f32.mrb[0].mxu0
  %3156 = vmatprep.mubr.bf16.mxu0 0
  %3157 = vmatmul.mubr.bf16.gmra.mrb[0].mxu0 %v3021
  %v3158 = vpop.f32.mrb[0].mxu0
  %v3159 = vadd.f32 0.0, %v3158
  %v3160 = vpop.f32.mrb[0].mxu0
  %v3161 = vpop.f32.mrb[0].mxu0
  %v3162 = vadd.f32 0.0, %v3161
  %v3163 = vpop.f32.mrb[0].mxu0
  %3164 = vmatprep.mubr.bf16.mxu0 0
  %3165 = vmatmul.mubr.bf16.gmra.mrb[0].mxu0 %v3022
  %v3166 = vpop.f32.mrb[0].mxu0
  %v3167 = vadd.f32 0.0, %v3166
  %v3168 = vpop.f32.mrb[0].mxu0
  %v3169 = vpop.f32.mrb[0].mxu0
  %v3170 = vadd.f32 0.0, %v3169
  %v3171 = vpop.f32.mrb[0].mxu0
  %3172 = vmatprep.mubr.bf16.mxu0 0
  %3173 = vmatmul.mubr.bf16.gmra.mrb[0].mxu0 %v3023
  %v3174 = vpop.f32.mrb[0].mxu0
  %v3175 = vadd.f32 0.0, %v3174
  %v3176 = vpop.f32.mrb[0].mxu0
  %v3177 = vpop.f32.mrb[0].mxu0
  %v3178 = vadd.f32 0.0, %v3177
  %v3179 = vpop.f32.mrb[0].mxu0
  %3180 = vmatprep.mubr.bf16.mxu0 0
  %3181 = vmatmul.mubr.bf16.gmra.mrb[0].mxu0 %v3024
  %v3182 = vpop.f32.mrb[0].mxu0
  %v3183 = vadd.f32 0.0, %v3182
  %v3184 = vpop.f32.mrb[0].mxu0
  %v3185 = vpop.f32.mrb[0].mxu0
  %v3186 = vadd.f32 0.0, %v3185
  %v3187 = vpop.f32.mrb[0].mxu0
  %3188 = vmatprep.mubr.bf16.mxu0 0
  %3189 = vmatmul.mubr.bf16.gmra.mrb[0].mxu0 %v3025
  %v3190 = vpop.f32.mrb[0].mxu0
  %v3191 = vadd.f32 0.0, %v3190
  %v3192 = vpop.f32.mrb[0].mxu0
  %v3193 = vpop.f32.mrb[0].mxu0
  %v3194 = vadd.f32 0.0, %v3193
  %v3195 = vpop.f32.mrb[0].mxu0
  %3196 = vmatprep.mubr.bf16.mxu0 0
  %3197 = vmatmul.mubr.bf16.gmra.mrb[0].mxu0 %v3026
  %v3198 = vpop.f32.mrb[0].mxu0
  %v3199 = vadd.f32 0.0, %v3198
  %v3200 = vpop.f32.mrb[0].mxu0
  %v3201 = vpop.f32.mrb[0].mxu0
  %v3202 = vadd.f32 0.0, %v3201
  %v3203 = vpop.f32.mrb[0].mxu0
  %3204 = vmatprep.mubr.bf16.mxu0 0
  %3205 = vmatmul.mubr.bf16.gmra.mrb[0].mxu0 %v3027
  %v3206 = vpop.f32.mrb[0].mxu0
  %v3207 = vadd.f32 0.0, %v3206
  %v3208 = vpop.f32.mrb[0].mxu0
  %v3209 = vpop.f32.mrb[0].mxu0
  %v3210 = vadd.f32 0.0, %v3209
  %v3211 = vpop.f32.mrb[0].mxu0
  %3212 = vmatprep.mubr.bf16.mxu0 0
  %3213 = vmatmul.mubr.bf16.gmra.mrb[0].mxu0 %v3028
  %v3214 = vpop.f32.mrb[0].mxu0
  %v3215 = vadd.f32 0.0, %v3214
  %v3216 = vpop.f32.mrb[0].mxu0
  %v3217 = vpop.f32.mrb[0].mxu0
  %v3218 = vadd.f32 0.0, %v3217
  %v3219 = vpop.f32.mrb[0].mxu0
  %3220 = vmatprep.mubr.bf16.mxu0 0
  %3221 = vmatmul.mubr.bf16.gmra.mrb[0].mxu0 %v3029
  %v3222 = vpop.f32.mrb[0].mxu0
  %v3223 = vadd.f32 0.0, %v3222
  %v3224 = vpop.f32.mrb[0].mxu0
  %v3225 = vpop.f32.mrb[0].mxu0
  %v3226 = vadd.f32 0.0, %v3225
  %v3227 = vpop.f32.mrb[0].mxu0
  %3228 = vmatprep.mubr.bf16.mxu0 0
  %3229 = vmatmul.mubr.bf16.gmra.mrb[0].mxu0 %v3030
  %v3230 = vpop.f32.mrb[0].mxu0
  %v3231 = vadd.f32 0.0, %v3230
  %v3232 = vpop.f32.mrb[0].mxu0
  %v3233 = vpop.f32.mrb[0].mxu0
  %v3234 = vadd.f32 0.0, %v3233
  %v3235 = vpop.f32.mrb[0].mxu0
  %3236 = vmatprep.mubr.bf16.mxu0 0
  %3237 = vmatmul.mubr.bf16.gmra.mrb[0].mxu0 %v3031
  %v3238 = vpop.f32.mrb[0].mxu0
  %v3239 = vadd.f32 0.0, %v3238
  %v3240 = vpop.f32.mrb[0].mxu0
  %v3241 = vpop.f32.mrb[0].mxu0
  %v3242 = vadd.f32 0.0, %v3241
  %v3243 = vpop.f32.mrb[0].mxu0
  %3244 = vmatprep.mubr.bf16.mxu0 0
  %3245 = vmatmul.mubr.bf16.gmra.mrb[0].mxu0 %v3032
  %v3246 = vpop.f32.mrb[0].mxu0
  %v3247 = vadd.f32 0.0, %v3246
  %v3248 = vpop.f32.mrb[0].mxu0
  %v3249 = vpop.f32.mrb[0].mxu0
  %v3250 = vadd.f32 0.0, %v3249
  %v3251 = vpop.f32.mrb[0].mxu0
  %3252 = vmatprep.mubr.bf16.mxu0 0
  %3253 = vmatmul.mubr.bf16.gmra.mrb[0].mxu0 %v3033
  %v3254 = vpop.f32.mrb[0].mxu0
  %v3255 = vadd.f32 0.0, %v3254
  %v3256 = vpop.f32.mrb[0].mxu0
  %v3257 = vpop.f32.mrb[0].mxu0
  %v3258 = vadd.f32 0.0, %v3257
  %v3259 = vpop.f32.mrb[0].mxu0
  %3260 = vmatprep.mubr.bf16.mxu0 0
  %3261 = vmatmul.mubr.bf16.gmra.mrb[0].mxu0 %v3034
  %v3262 = vpop.f32.mrb[0].mxu0
  %v3263 = vadd.f32 0.0, %v3262
  %v3264 = vpop.f32.mrb[0].mxu0
  %v3265 = vpop.f32.mrb[0].mxu0
  %v3266 = vadd.f32 0.0, %v3265
  %v3267 = vpop.f32.mrb[0].mxu0
  %3268 = vmatprep.mubr.bf16.mxu0 0
  %3269 = vmatmul.mubr.bf16.gmra.mrb[0].mxu0 %v3035
  %v3270 = vpop.f32.mrb[0].mxu0
  %v3271 = vadd.f32 0.0, %v3270
  %v3272 = vpop.f32.mrb[0].mxu0
  %v3273 = vpop.f32.mrb[0].mxu0
  %v3274 = vadd.f32 0.0, %v3273
  %v3275 = vpop.f32.mrb[0].mxu0
  %3276 = vmatprep.mubr.bf16.mxu0 0
  %3277 = vmatmul.mubr.bf16.gmra.mrb[0].mxu0 %v3036
  %v3278 = vpop.f32.mrb[0].mxu0
  %v3279 = vadd.f32 0.0, %v3278
  %v3280 = vpop.f32.mrb[0].mxu0
  %v3281 = vpop.f32.mrb[0].mxu0
  %v3282 = vadd.f32 0.0, %v3281
  %v3283 = vpop.f32.mrb[0].mxu0
  %3284 = vmatprep.mubr.bf16.mxu0 0
  %3285 = vmatmul.mubr.bf16.gmra.mrb[0].mxu0 %v3037
  %v3286 = vpop.f32.mrb[0].mxu0
  %v3287 = vadd.f32 0.0, %v3286
  %v3288 = vpop.f32.mrb[0].mxu0
  %v3289 = vpop.f32.mrb[0].mxu0
  %v3290 = vadd.f32 0.0, %v3289
  %v3291 = vpop.f32.mrb[0].mxu0
  %3292 = vmatprep.mubr.bf16.mxu0 0
  %3293 = vmatmul.mubr.bf16.gmra.mrb[0].mxu0 %v3038
  %v3294 = vpop.f32.mrb[0].mxu0
  %v3295 = vadd.f32 0.0, %v3294
  %v3296 = vpop.f32.mrb[0].mxu0
  %v3297 = vpop.f32.mrb[0].mxu0
  %v3298 = vadd.f32 0.0, %v3297
  %v3299 = vpop.f32.mrb[0].mxu0
  %3300 = vmatprep.mubr.bf16.mxu0 0
  %3301 = vmatmul.mubr.bf16.gmra.mrb[0].mxu0 %v3039
  %v3302 = vpop.f32.mrb[0].mxu0
  %v3303 = vadd.f32 0.0, %v3302
  %v3304 = vpop.f32.mrb[0].mxu0
  %v3305 = vpop.f32.mrb[0].mxu0
  %v3306 = vadd.f32 0.0, %v3305
  %v3307 = vpop.f32.mrb[0].mxu0
  %3308 = vmatprep.mubr.bf16.mxu0 0
  %3309 = vmatmul.mubr.bf16.gmra.mrb[0].mxu0 %v3040
  %v3310 = vpop.f32.mrb[0].mxu0
  %v3311 = vadd.f32 0.0, %v3310
  %v3312 = vpop.f32.mrb[0].mxu0
  %v3313 = vpop.f32.mrb[0].mxu0
  %v3314 = vadd.f32 0.0, %v3313
  %v3315 = vpop.f32.mrb[0].mxu0
  %3316 = vmatprep.mubr.bf16.mxu0 0
  %3317 = vmatmul.mubr.bf16.gmra.mrb[0].mxu0 %v3041
  %v3318 = vpop.f32.mrb[0].mxu0
  %v3319 = vadd.f32 0.0, %v3318
  %v3320 = vpop.f32.mrb[0].mxu0
  %v3321 = vpop.f32.mrb[0].mxu0
  %v3322 = vadd.f32 0.0, %v3321
  %v3323 = vpop.f32.mrb[0].mxu0
  %3324 = vmatprep.mubr.bf16.mxu0 0
  %3325 = vmatmul.mubr.bf16.gmra.mrb[0].mxu0 %v3042
  %v3326 = vpop.f32.mrb[0].mxu0
  %v3327 = vadd.f32 0.0, %v3326
  %v3328 = vpop.f32.mrb[0].mxu0
  %v3329 = vpop.f32.mrb[0].mxu0
  %v3330 = vadd.f32 0.0, %v3329
  %v3331 = vpop.f32.mrb[0].mxu0
  %3332 = vmatprep.mubr.bf16.mxu0 0
  %3333 = vmatmul.mubr.bf16.gmra.mrb[0].mxu0 %v3043
  %v3334 = vpop.f32.mrb[0].mxu0
  %v3335 = vadd.f32 0.0, %v3334
  %v3336 = vpop.f32.mrb[0].mxu0
  %v3337 = vpop.f32.mrb[0].mxu0
  %v3338 = vadd.f32 0.0, %v3337
  %v3339 = vpop.f32.mrb[0].mxu0
  %3340 = vmatprep.mubr.bf16.mxu0 0
  %3341 = vmatmul.mubr.bf16.gmra.mrb[0].mxu0 %v3044
  %v3342 = vpop.f32.mrb[0].mxu0
  %v3343 = vadd.f32 0.0, %v3342
  %v3344 = vpop.f32.mrb[0].mxu0
  %v3345 = vpop.f32.mrb[0].mxu0
  %v3346 = vadd.f32 0.0, %v3345
  %v3347 = vpop.f32.mrb[0].mxu0
  %3348 = vmatprep.mubr.bf16.mxu0 0
  %3349 = vmatmul.mubr.bf16.gmra.mrb[0].mxu0 %v3045
  %v3350 = vpop.f32.mrb[0].mxu0
  %v3351 = vadd.f32 0.0, %v3350
  %v3352 = vpop.f32.mrb[0].mxu0
  %v3353 = vpop.f32.mrb[0].mxu0
  %v3354 = vadd.f32 0.0, %v3353
  %v3355 = vpop.f32.mrb[0].mxu0
  %3356 = vmatprep.mubr.bf16.mxu0 0
  %3357 = vmatmul.mubr.bf16.gmra.mrb[0].mxu0 %v3046
  %v3358 = vpop.f32.mrb[0].mxu0
  %v3359 = vadd.f32 0.0, %v3358
  %v3360 = vpop.f32.mrb[0].mxu0
  %v3361 = vpop.f32.mrb[0].mxu0
  %v3362 = vadd.f32 0.0, %v3361
  %v3363 = vpop.f32.mrb[0].mxu0
  %3364 = vmatprep.mubr.bf16.mxu0 0
  %3365 = vmatmul.mubr.bf16.gmra.mrb[0].mxu0 %v3047
  %v3366 = vpop.f32.mrb[0].mxu0
  %v3367 = vadd.f32 0.0, %v3366
  %v3368 = vpop.f32.mrb[0].mxu0
  %v3369 = vpop.f32.mrb[0].mxu0
  %v3370 = vadd.f32 0.0, %v3369
  %v3371 = vpop.f32.mrb[0].mxu0
  %3372 = vmatprep.mubr.bf16.mxu0 0
  %3373 = vmatmul.mubr.bf16.gmra.mrb[0].mxu0 %v3048
  %v3374 = vpop.f32.mrb[0].mxu0
  %v3375 = vadd.f32 0.0, %v3374
  %v3376 = vpop.f32.mrb[0].mxu0
  %v3377 = vpop.f32.mrb[0].mxu0
  %v3378 = vadd.f32 0.0, %v3377
  %v3379 = vpop.f32.mrb[0].mxu0
  %3380 = vmatprep.mubr.bf16.mxu0 0
  %3381 = vmatmul.mubr.bf16.gmra.mrb[0].mxu0 %v3049
  %v3382 = vpop.f32.mrb[0].mxu0
  %v3383 = vadd.f32 0.0, %v3382
  %v3384 = vpop.f32.mrb[0].mxu0
  %v3385 = vpop.f32.mrb[0].mxu0
  %v3386 = vadd.f32 0.0, %v3385
  %v3387 = vpop.f32.mrb[0].mxu0
  %3388 = vmatprep.mubr.bf16.mxu0 0
  %3389 = vmatmul.mubr.bf16.gmra.mrb[0].mxu0 %v3050
  %v3390 = vpop.f32.mrb[0].mxu0
  %v3391 = vadd.f32 0.0, %v3390
  %v3392 = vpop.f32.mrb[0].mxu0
  %v3393 = vpop.f32.mrb[0].mxu0
  %v3394 = vadd.f32 0.0, %v3393
  %v3395 = vpop.f32.mrb[0].mxu0
  %3396 = vmatprep.mubr.bf16.mxu0 0
  %3397 = vmatmul.mubr.bf16.gmra.mrb[0].mxu0 %v3051
  %v3398 = vpop.f32.mrb[0].mxu0
  %v3399 = vadd.f32 0.0, %v3398
  %v3400 = vpop.f32.mrb[0].mxu0
  %v3401 = vpop.f32.mrb[0].mxu0
  %v3402 = vadd.f32 0.0, %v3401
  %v3403 = vpop.f32.mrb[0].mxu0
  %3404 = vdwg.mxu0
  %v3405 = vpack.c.bf16 %v3154, %v3151
  %v3406 = vpack.c.bf16 %v3162, %v3159
  %v3407 = vpack.c.bf16 %v3170, %v3167
  %v3408 = vpack.c.bf16 %v3178, %v3175
  %v3409 = vpack.c.bf16 %v3186, %v3183
  %v3410 = vpack.c.bf16 %v3194, %v3191
  %v3411 = vpack.c.bf16 %v3202, %v3199
  %v3412 = vpack.c.bf16 %v3210, %v3207
  %v3413 = vpack.c.bf16 %v3218, %v3215
  %v3414 = vpack.c.bf16 %v3226, %v3223
  %v3415 = vpack.c.bf16 %v3234, %v3231
  %v3416 = vpack.c.bf16 %v3242, %v3239
  %v3417 = vpack.c.bf16 %v3250, %v3247
  %v3418 = vpack.c.bf16 %v3258, %v3255
  %v3419 = vpack.c.bf16 %v3266, %v3263
  %v3420 = vpack.c.bf16 %v3274, %v3271
  %v3421 = vpack.c.bf16 %v3282, %v3279
  %v3422 = vpack.c.bf16 %v3290, %v3287
  %v3423 = vpack.c.bf16 %v3298, %v3295
  %v3424 = vpack.c.bf16 %v3306, %v3303
  %v3425 = vpack.c.bf16 %v3314, %v3311
  %v3426 = vpack.c.bf16 %v3322, %v3319
  %v3427 = vpack.c.bf16 %v3330, %v3327
  %v3428 = vpack.c.bf16 %v3338, %v3335
  %v3429 = vpack.c.bf16 %v3346, %v3343
  %v3430 = vpack.c.bf16 %v3354, %v3351
  %v3431 = vpack.c.bf16 %v3362, %v3359
  %v3432 = vpack.c.bf16 %v3370, %v3367
  %v3433 = vpack.c.bf16 %v3378, %v3375
  %v3434 = vpack.c.bf16 %v3386, %v3383
  %v3435 = vpack.c.bf16 %v3394, %v3391
  %v3436 = vpack.c.bf16 %v3402, %v3399
  %3437 = vmatprep.subr.bf16.mxu0 0
  %3438 = vmatpush1.bf16.msra.mxu0 %v3405
  %3439 = vmatprep.subr.bf16.mxu0 0
  %3440 = vmatpush1.bf16.msra.mxu0 %v3406
  %3441 = vmatprep.subr.bf16.mxu0 0
  %3442 = vmatpush1.bf16.msra.mxu0 %v3407
  %3443 = vmatprep.subr.bf16.mxu0 0
  %3444 = vmatpush1.bf16.msra.mxu0 %v3408
  %3445 = vmatprep.subr.bf16.mxu0 0
  %3446 = vmatpush1.bf16.msra.mxu0 %v3409
  %3447 = vmatprep.subr.bf16.mxu0 0
  %3448 = vmatpush1.bf16.msra.mxu0 %v3410
  %3449 = vmatprep.subr.bf16.mxu0 0
  %3450 = vmatpush1.bf16.msra.mxu0 %v3411
  %3451 = vmatprep.subr.bf16.mxu0 0
  %3452 = vmatpush1.bf16.msra.mxu0 %v3412
  %3453 = vmatprep.subr.bf16.mxu0 0
  %3454 = vmatpush1.bf16.msra.mxu0 %v3413
  %3455 = vmatprep.subr.bf16.mxu0 0
  %3456 = vmatpush1.bf16.msra.mxu0 %v3414
  %3457 = vmatprep.subr.bf16.mxu0 0
  %3458 = vmatpush1.bf16.msra.mxu0 %v3415
  %3459 = vmatprep.subr.bf16.mxu0 0
  %3460 = vmatpush1.bf16.msra.mxu0 %v3416
  %3461 = vmatprep.subr.bf16.mxu0 0
  %3462 = vmatpush1.bf16.msra.mxu0 %v3417
  %3463 = vmatprep.subr.bf16.mxu0 0
  %3464 = vmatpush1.bf16.msra.mxu0 %v3418
  %3465 = vmatprep.subr.bf16.mxu0 0
  %3466 = vmatpush1.bf16.msra.mxu0 %v3419
  %3467 = vmatprep.subr.bf16.mxu0 0
  %3468 = vmatpush1.bf16.msra.mxu0 %v3420
  %3469 = vmatprep.mubr.bf16.mxu0 %v1251
  %3470 = vmatmul.mubr.bf16.gmra.mrb[0].mxu0 %v1250
  %v3471 = vpop.f32.mrb[0].mxu0
  %v3472 = vadd.f32 0.0, %v3471
  %v3473 = vpop.f32.mrb[0].mxu0
  %v3474 = vpop.f32.mrb[0].mxu0
  %v3475 = vadd.f32 0.0, %v3474
  %v3476 = vpop.f32.mrb[0].mxu0
  %3477 = vmatprep.mubr.bf16.mxu0 %v1255
  %3478 = vmatmul.mubr.bf16.gmra.mrb[0].mxu0 %v1254
  %v3479 = vpop.f32.mrb[0].mxu0
  %v3480 = vadd.f32 0.0, %v3479
  %v3481 = vpop.f32.mrb[0].mxu0
  %v3482 = vpop.f32.mrb[0].mxu0
  %v3483 = vadd.f32 0.0, %v3482
  %v3484 = vpop.f32.mrb[0].mxu0
  %3485 = vmatprep.mubr.bf16.mxu0 %v1259
  %3486 = vmatmul.mubr.bf16.gmra.mrb[0].mxu0 %v1258
  %v3487 = vpop.f32.mrb[0].mxu0
  %v3488 = vadd.f32 0.0, %v3487
  %v3489 = vpop.f32.mrb[0].mxu0
  %v3490 = vpop.f32.mrb[0].mxu0
  %v3491 = vadd.f32 0.0, %v3490
  %v3492 = vpop.f32.mrb[0].mxu0
  %3493 = vmatprep.mubr.bf16.mxu0 %v1263
  %3494 = vmatmul.mubr.bf16.gmra.mrb[0].mxu0 %v1262
  %v3495 = vpop.f32.mrb[0].mxu0
  %v3496 = vadd.f32 0.0, %v3495
  %v3497 = vpop.f32.mrb[0].mxu0
  %v3498 = vpop.f32.mrb[0].mxu0
  %v3499 = vadd.f32 0.0, %v3498
  %v3500 = vpop.f32.mrb[0].mxu0
  %3501 = vmatprep.mubr.bf16.mxu0 %v1267
  %3502 = vmatmul.mubr.bf16.gmra.mrb[0].mxu0 %v1266
  %v3503 = vpop.f32.mrb[0].mxu0
  %v3504 = vadd.f32 0.0, %v3503
  %v3505 = vpop.f32.mrb[0].mxu0
  %v3506 = vpop.f32.mrb[0].mxu0
  %v3507 = vadd.f32 0.0, %v3506
  %v3508 = vpop.f32.mrb[0].mxu0
  %3509 = vmatprep.mubr.bf16.mxu0 %v1271
  %3510 = vmatmul.mubr.bf16.gmra.mrb[0].mxu0 %v1270
  %v3511 = vpop.f32.mrb[0].mxu0
  %v3512 = vadd.f32 0.0, %v3511
  %v3513 = vpop.f32.mrb[0].mxu0
  %v3514 = vpop.f32.mrb[0].mxu0
  %v3515 = vadd.f32 0.0, %v3514
  %v3516 = vpop.f32.mrb[0].mxu0
  %3517 = vmatprep.mubr.bf16.mxu0 %v1275
  %3518 = vmatmul.mubr.bf16.gmra.mrb[0].mxu0 %v1274
  %v3519 = vpop.f32.mrb[0].mxu0
  %v3520 = vadd.f32 0.0, %v3519
  %v3521 = vpop.f32.mrb[0].mxu0
  %v3522 = vpop.f32.mrb[0].mxu0
  %v3523 = vadd.f32 0.0, %v3522
  %v3524 = vpop.f32.mrb[0].mxu0
  %3525 = vmatprep.mubr.bf16.mxu0 %v1279
  %3526 = vmatmul.mubr.bf16.gmra.mrb[0].mxu0 %v1278
  %v3527 = vpop.f32.mrb[0].mxu0
  %v3528 = vadd.f32 0.0, %v3527
  %v3529 = vpop.f32.mrb[0].mxu0
  %v3530 = vpop.f32.mrb[0].mxu0
  %v3531 = vadd.f32 0.0, %v3530
  %v3532 = vpop.f32.mrb[0].mxu0
  %3533 = vmatprep.mubr.bf16.mxu0 %v1283
  %3534 = vmatmul.mubr.bf16.gmra.mrb[0].mxu0 %v1282
  %v3535 = vpop.f32.mrb[0].mxu0
  %v3536 = vadd.f32 0.0, %v3535
  %v3537 = vpop.f32.mrb[0].mxu0
  %v3538 = vpop.f32.mrb[0].mxu0
  %v3539 = vadd.f32 0.0, %v3538
  %v3540 = vpop.f32.mrb[0].mxu0
  %3541 = vmatprep.mubr.bf16.mxu0 %v1287
  %3542 = vmatmul.mubr.bf16.gmra.mrb[0].mxu0 %v1286
  %v3543 = vpop.f32.mrb[0].mxu0
  %v3544 = vadd.f32 0.0, %v3543
  %v3545 = vpop.f32.mrb[0].mxu0
  %v3546 = vpop.f32.mrb[0].mxu0
  %v3547 = vadd.f32 0.0, %v3546
  %v3548 = vpop.f32.mrb[0].mxu0
  %3549 = vmatprep.mubr.bf16.mxu0 %v1291
  %3550 = vmatmul.mubr.bf16.gmra.mrb[0].mxu0 %v1290
  %v3551 = vpop.f32.mrb[0].mxu0
  %v3552 = vadd.f32 0.0, %v3551
  %v3553 = vpop.f32.mrb[0].mxu0
  %v3554 = vpop.f32.mrb[0].mxu0
  %v3555 = vadd.f32 0.0, %v3554
  %v3556 = vpop.f32.mrb[0].mxu0
  %3557 = vmatprep.mubr.bf16.mxu0 %v1295
  %3558 = vmatmul.mubr.bf16.gmra.mrb[0].mxu0 %v1294
  %v3559 = vpop.f32.mrb[0].mxu0
  %v3560 = vadd.f32 0.0, %v3559
  %v3561 = vpop.f32.mrb[0].mxu0
  %v3562 = vpop.f32.mrb[0].mxu0
  %v3563 = vadd.f32 0.0, %v3562
  %v3564 = vpop.f32.mrb[0].mxu0
  %3565 = vmatprep.mubr.bf16.mxu0 %v1299
  %3566 = vmatmul.mubr.bf16.gmra.mrb[0].mxu0 %v1298
  %v3567 = vpop.f32.mrb[0].mxu0
  %v3568 = vadd.f32 0.0, %v3567
  %v3569 = vpop.f32.mrb[0].mxu0
  %v3570 = vpop.f32.mrb[0].mxu0
  %v3571 = vadd.f32 0.0, %v3570
  %v3572 = vpop.f32.mrb[0].mxu0
  %3573 = vmatprep.mubr.bf16.mxu0 %v1303
  %3574 = vmatmul.mubr.bf16.gmra.mrb[0].mxu0 %v1302
  %v3575 = vpop.f32.mrb[0].mxu0
  %v3576 = vadd.f32 0.0, %v3575
  %v3577 = vpop.f32.mrb[0].mxu0
  %v3578 = vpop.f32.mrb[0].mxu0
  %v3579 = vadd.f32 0.0, %v3578
  %v3580 = vpop.f32.mrb[0].mxu0
  %3581 = vmatprep.mubr.bf16.mxu0 %v1307
  %3582 = vmatmul.mubr.bf16.gmra.mrb[0].mxu0 %v1306
  %v3583 = vpop.f32.mrb[0].mxu0
  %v3584 = vadd.f32 0.0, %v3583
  %v3585 = vpop.f32.mrb[0].mxu0
  %v3586 = vpop.f32.mrb[0].mxu0
  %v3587 = vadd.f32 0.0, %v3586
  %v3588 = vpop.f32.mrb[0].mxu0
  %3589 = vmatprep.mubr.bf16.mxu0 %v1311
  %3590 = vmatmul.mubr.bf16.gmra.mrb[0].mxu0 %v1310
  %v3591 = vpop.f32.mrb[0].mxu0
  %v3592 = vadd.f32 0.0, %v3591
  %v3593 = vpop.f32.mrb[0].mxu0
  %v3594 = vpop.f32.mrb[0].mxu0
  %v3595 = vadd.f32 0.0, %v3594
  %v3596 = vpop.f32.mrb[0].mxu0
  %3597 = vmatprep.mubr.bf16.mxu0 %v1315
  %3598 = vmatmul.mubr.bf16.gmra.mrb[0].mxu0 %v1314
  %v3599 = vpop.f32.mrb[0].mxu0
  %v3600 = vadd.f32 0.0, %v3599
  %v3601 = vpop.f32.mrb[0].mxu0
  %v3602 = vpop.f32.mrb[0].mxu0
  %v3603 = vadd.f32 0.0, %v3602
  %v3604 = vpop.f32.mrb[0].mxu0
  %3605 = vmatprep.mubr.bf16.mxu0 %v1319
  %3606 = vmatmul.mubr.bf16.gmra.mrb[0].mxu0 %v1318
  %v3607 = vpop.f32.mrb[0].mxu0
  %v3608 = vadd.f32 0.0, %v3607
  %v3609 = vpop.f32.mrb[0].mxu0
  %v3610 = vpop.f32.mrb[0].mxu0
  %v3611 = vadd.f32 0.0, %v3610
  %v3612 = vpop.f32.mrb[0].mxu0
  %3613 = vmatprep.mubr.bf16.mxu0 %v1323
  %3614 = vmatmul.mubr.bf16.gmra.mrb[0].mxu0 %v1322
  %v3615 = vpop.f32.mrb[0].mxu0
  %v3616 = vadd.f32 0.0, %v3615
  %v3617 = vpop.f32.mrb[0].mxu0
  %v3618 = vpop.f32.mrb[0].mxu0
  %v3619 = vadd.f32 0.0, %v3618
  %v3620 = vpop.f32.mrb[0].mxu0
  %3621 = vmatprep.mubr.bf16.mxu0 %v1327
  %3622 = vmatmul.mubr.bf16.gmra.mrb[0].mxu0 %v1326
  %v3623 = vpop.f32.mrb[0].mxu0
  %v3624 = vadd.f32 0.0, %v3623
  %v3625 = vpop.f32.mrb[0].mxu0
  %v3626 = vpop.f32.mrb[0].mxu0
  %v3627 = vadd.f32 0.0, %v3626
  %v3628 = vpop.f32.mrb[0].mxu0
  %3629 = vmatprep.mubr.bf16.mxu0 %v1331
  %3630 = vmatmul.mubr.bf16.gmra.mrb[0].mxu0 %v1330
  %v3631 = vpop.f32.mrb[0].mxu0
  %v3632 = vadd.f32 0.0, %v3631
  %v3633 = vpop.f32.mrb[0].mxu0
  %v3634 = vpop.f32.mrb[0].mxu0
  %v3635 = vadd.f32 0.0, %v3634
  %v3636 = vpop.f32.mrb[0].mxu0
  %3637 = vmatprep.mubr.bf16.mxu0 %v1335
  %3638 = vmatmul.mubr.bf16.gmra.mrb[0].mxu0 %v1334
  %v3639 = vpop.f32.mrb[0].mxu0
  %v3640 = vadd.f32 0.0, %v3639
  %v3641 = vpop.f32.mrb[0].mxu0
  %v3642 = vpop.f32.mrb[0].mxu0
  %v3643 = vadd.f32 0.0, %v3642
  %v3644 = vpop.f32.mrb[0].mxu0
  %3645 = vmatprep.mubr.bf16.mxu0 %v1339
  %3646 = vmatmul.mubr.bf16.gmra.mrb[0].mxu0 %v1338
  %v3647 = vpop.f32.mrb[0].mxu0
  %v3648 = vadd.f32 0.0, %v3647
  %v3649 = vpop.f32.mrb[0].mxu0
  %v3650 = vpop.f32.mrb[0].mxu0
  %v3651 = vadd.f32 0.0, %v3650
  %v3652 = vpop.f32.mrb[0].mxu0
  %3653 = vmatprep.mubr.bf16.mxu0 %v1343
  %3654 = vmatmul.mubr.bf16.gmra.mrb[0].mxu0 %v1342
  %v3655 = vpop.f32.mrb[0].mxu0
  %v3656 = vadd.f32 0.0, %v3655
  %v3657 = vpop.f32.mrb[0].mxu0
  %v3658 = vpop.f32.mrb[0].mxu0
  %v3659 = vadd.f32 0.0, %v3658
  %v3660 = vpop.f32.mrb[0].mxu0
  %3661 = vmatprep.mubr.bf16.mxu0 %v1347
  %3662 = vmatmul.mubr.bf16.gmra.mrb[0].mxu0 %v1346
  %v3663 = vpop.f32.mrb[0].mxu0
  %v3664 = vadd.f32 0.0, %v3663
  %v3665 = vpop.f32.mrb[0].mxu0
  %v3666 = vpop.f32.mrb[0].mxu0
  %v3667 = vadd.f32 0.0, %v3666
  %v3668 = vpop.f32.mrb[0].mxu0
  %3669 = vmatprep.mubr.bf16.mxu0 %v1351
  %3670 = vmatmul.mubr.bf16.gmra.mrb[0].mxu0 %v1350
  %v3671 = vpop.f32.mrb[0].mxu0
  %v3672 = vadd.f32 0.0, %v3671
  %v3673 = vpop.f32.mrb[0].mxu0
  %v3674 = vpop.f32.mrb[0].mxu0
  %v3675 = vadd.f32 0.0, %v3674
  %v3676 = vpop.f32.mrb[0].mxu0
  %3677 = vmatprep.mubr.bf16.mxu0 %v1355
  %3678 = vmatmul.mubr.bf16.gmra.mrb[0].mxu0 %v1354
  %v3679 = vpop.f32.mrb[0].mxu0
  %v3680 = vadd.f32 0.0, %v3679
  %v3681 = vpop.f32.mrb[0].mxu0
  %v3682 = vpop.f32.mrb[0].mxu0
  %v3683 = vadd.f32 0.0, %v3682
  %v3684 = vpop.f32.mrb[0].mxu0
  %3685 = vmatprep.mubr.bf16.mxu0 %v1359
  %3686 = vmatmul.mubr.bf16.gmra.mrb[0].mxu0 %v1358
  %v3687 = vpop.f32.mrb[0].mxu0
  %v3688 = vadd.f32 0.0, %v3687
  %v3689 = vpop.f32.mrb[0].mxu0
  %v3690 = vpop.f32.mrb[0].mxu0
  %v3691 = vadd.f32 0.0, %v3690
  %v3692 = vpop.f32.mrb[0].mxu0
  %3693 = vmatprep.mubr.bf16.mxu0 %v1363
  %3694 = vmatmul.mubr.bf16.gmra.mrb[0].mxu0 %v1362
  %v3695 = vpop.f32.mrb[0].mxu0
  %v3696 = vadd.f32 0.0, %v3695
  %v3697 = vpop.f32.mrb[0].mxu0
  %v3698 = vpop.f32.mrb[0].mxu0
  %v3699 = vadd.f32 0.0, %v3698
  %v3700 = vpop.f32.mrb[0].mxu0
  %3701 = vmatprep.mubr.bf16.mxu0 %v1367
  %3702 = vmatmul.mubr.bf16.gmra.mrb[0].mxu0 %v1366
  %v3703 = vpop.f32.mrb[0].mxu0
  %v3704 = vadd.f32 0.0, %v3703
  %v3705 = vpop.f32.mrb[0].mxu0
  %v3706 = vpop.f32.mrb[0].mxu0
  %v3707 = vadd.f32 0.0, %v3706
  %v3708 = vpop.f32.mrb[0].mxu0
  %3709 = vmatprep.mubr.bf16.mxu0 %v1371
  %3710 = vmatmul.mubr.bf16.gmra.mrb[0].mxu0 %v1370
  %v3711 = vpop.f32.mrb[0].mxu0
  %v3712 = vadd.f32 0.0, %v3711
  %v3713 = vpop.f32.mrb[0].mxu0
  %v3714 = vpop.f32.mrb[0].mxu0
  %v3715 = vadd.f32 0.0, %v3714
  %v3716 = vpop.f32.mrb[0].mxu0
  %3717 = vmatprep.mubr.bf16.mxu0 %v1375
  %3718 = vmatmul.mubr.bf16.gmra.mrb[0].mxu0 %v1374
  %v3719 = vpop.f32.mrb[0].mxu0
  %v3720 = vadd.f32 0.0, %v3719
  %v3721 = vpop.f32.mrb[0].mxu0
  %v3722 = vpop.f32.mrb[0].mxu0
  %v3723 = vadd.f32 0.0, %v3722
  %v3724 = vpop.f32.mrb[0].mxu0
  %3725 = vdwg.mxu0
  %3726 = vmatprep.subr.bf16.mxu0 0
  %3727 = vmatpush1.bf16.msra.mxu0 %v3421
  %3728 = vmatprep.subr.bf16.mxu0 0
  %3729 = vmatpush1.bf16.msra.mxu0 %v3422
  %3730 = vmatprep.subr.bf16.mxu0 0
  %3731 = vmatpush1.bf16.msra.mxu0 %v3423
  %3732 = vmatprep.subr.bf16.mxu0 0
  %3733 = vmatpush1.bf16.msra.mxu0 %v3424
  %3734 = vmatprep.subr.bf16.mxu0 0
  %3735 = vmatpush1.bf16.msra.mxu0 %v3425
  %3736 = vmatprep.subr.bf16.mxu0 0
  %3737 = vmatpush1.bf16.msra.mxu0 %v3426
  %3738 = vmatprep.subr.bf16.mxu0 0
  %3739 = vmatpush1.bf16.msra.mxu0 %v3427
  %3740 = vmatprep.subr.bf16.mxu0 0
  %3741 = vmatpush1.bf16.msra.mxu0 %v3428
  %3742 = vmatprep.subr.bf16.mxu0 0
  %3743 = vmatpush1.bf16.msra.mxu0 %v3429
  %3744 = vmatprep.subr.bf16.mxu0 0
  %3745 = vmatpush1.bf16.msra.mxu0 %v3430
  %3746 = vmatprep.subr.bf16.mxu0 0
  %3747 = vmatpush1.bf16.msra.mxu0 %v3431
  %3748 = vmatprep.subr.bf16.mxu0 0
  %3749 = vmatpush1.bf16.msra.mxu0 %v3432
  %3750 = vmatprep.subr.bf16.mxu0 0
  %3751 = vmatpush1.bf16.msra.mxu0 %v3433
  %3752 = vmatprep.subr.bf16.mxu0 0
  %3753 = vmatpush1.bf16.msra.mxu0 %v3434
  %3754 = vmatprep.subr.bf16.mxu0 0
  %3755 = vmatpush1.bf16.msra.mxu0 %v3435
  %3756 = vmatprep.subr.bf16.mxu0 0
  %3757 = vmatpush1.bf16.msra.mxu0 %v3436
  %3758 = vmatprep.mubr.bf16.mxu0 %v1253
  %3759 = vmatmul.mubr.bf16.gmra.mrb[0].mxu0 %v1252
  %v3760 = vpop.f32.mrb[0].mxu0
  %v3761 = vadd.f32 %v3472, %v3760
  %v3762 = vpop.f32.mrb[0].mxu0
  %v3763 = vpop.f32.mrb[0].mxu0
  %v3764 = vadd.f32 %v3475, %v3763
  %v3765 = vpop.f32.mrb[0].mxu0
  %3766 = vmatprep.mubr.bf16.mxu0 %v1257
  %3767 = vmatmul.mubr.bf16.gmra.mrb[0].mxu0 %v1256
  %v3768 = vpop.f32.mrb[0].mxu0
  %v3769 = vadd.f32 %v3480, %v3768
  %v3770 = vpop.f32.mrb[0].mxu0
  %v3771 = vpop.f32.mrb[0].mxu0
  %v3772 = vadd.f32 %v3483, %v3771
  %v3773 = vpop.f32.mrb[0].mxu0
  %3774 = vmatprep.mubr.bf16.mxu0 %v1261
  %3775 = vmatmul.mubr.bf16.gmra.mrb[0].mxu0 %v1260
  %v3776 = vpop.f32.mrb[0].mxu0
  %v3777 = vadd.f32 %v3488, %v3776
  %v3778 = vpop.f32.mrb[0].mxu0
  %v3779 = vpop.f32.mrb[0].mxu0
  %v3780 = vadd.f32 %v3491, %v3779
  %v3781 = vpop.f32.mrb[0].mxu0
  %3782 = vmatprep.mubr.bf16.mxu0 %v1265
  %3783 = vmatmul.mubr.bf16.gmra.mrb[0].mxu0 %v1264
  %v3784 = vpop.f32.mrb[0].mxu0
  %v3785 = vadd.f32 %v3496, %v3784
  %v3786 = vpop.f32.mrb[0].mxu0
  %v3787 = vpop.f32.mrb[0].mxu0
  %v3788 = vadd.f32 %v3499, %v3787
  %v3789 = vpop.f32.mrb[0].mxu0
  %3790 = vmatprep.mubr.bf16.mxu0 %v1269
  %3791 = vmatmul.mubr.bf16.gmra.mrb[0].mxu0 %v1268
  %v3792 = vpop.f32.mrb[0].mxu0
  %v3793 = vadd.f32 %v3504, %v3792
  %v3794 = vpop.f32.mrb[0].mxu0
  %v3795 = vpop.f32.mrb[0].mxu0
  %v3796 = vadd.f32 %v3507, %v3795
  %v3797 = vpop.f32.mrb[0].mxu0
  %3798 = vmatprep.mubr.bf16.mxu0 %v1273
  %3799 = vmatmul.mubr.bf16.gmra.mrb[0].mxu0 %v1272
  %v3800 = vpop.f32.mrb[0].mxu0
  %v3801 = vadd.f32 %v3512, %v3800
  %v3802 = vpop.f32.mrb[0].mxu0
  %v3803 = vpop.f32.mrb[0].mxu0
  %v3804 = vadd.f32 %v3515, %v3803
  %v3805 = vpop.f32.mrb[0].mxu0
  %3806 = vmatprep.mubr.bf16.mxu0 %v1277
  %3807 = vmatmul.mubr.bf16.gmra.mrb[0].mxu0 %v1276
  %v3808 = vpop.f32.mrb[0].mxu0
  %v3809 = vadd.f32 %v3520, %v3808
  %v3810 = vpop.f32.mrb[0].mxu0
  %v3811 = vpop.f32.mrb[0].mxu0
  %v3812 = vadd.f32 %v3523, %v3811
  %v3813 = vpop.f32.mrb[0].mxu0
  %3814 = vmatprep.mubr.bf16.mxu0 %v1281
  %3815 = vmatmul.mubr.bf16.gmra.mrb[0].mxu0 %v1280
  %v3816 = vpop.f32.mrb[0].mxu0
  %v3817 = vadd.f32 %v3528, %v3816
  %v3818 = vpop.f32.mrb[0].mxu0
  %v3819 = vpop.f32.mrb[0].mxu0
  %v3820 = vadd.f32 %v3531, %v3819
  %v3821 = vpop.f32.mrb[0].mxu0
  %3822 = vmatprep.mubr.bf16.mxu0 %v1285
  %3823 = vmatmul.mubr.bf16.gmra.mrb[0].mxu0 %v1284
  %v3824 = vpop.f32.mrb[0].mxu0
  %v3825 = vadd.f32 %v3536, %v3824
  %v3826 = vpop.f32.mrb[0].mxu0
  %v3827 = vpop.f32.mrb[0].mxu0
  %v3828 = vadd.f32 %v3539, %v3827
  %v3829 = vpop.f32.mrb[0].mxu0
  %3830 = vmatprep.mubr.bf16.mxu0 %v1289
  %3831 = vmatmul.mubr.bf16.gmra.mrb[0].mxu0 %v1288
  %v3832 = vpop.f32.mrb[0].mxu0
  %v3833 = vadd.f32 %v3544, %v3832
  %v3834 = vpop.f32.mrb[0].mxu0
  %v3835 = vpop.f32.mrb[0].mxu0
  %v3836 = vadd.f32 %v3547, %v3835
  %v3837 = vpop.f32.mrb[0].mxu0
  %3838 = vmatprep.mubr.bf16.mxu0 %v1293
  %3839 = vmatmul.mubr.bf16.gmra.mrb[0].mxu0 %v1292
  %v3840 = vpop.f32.mrb[0].mxu0
  %v3841 = vadd.f32 %v3552, %v3840
  %v3842 = vpop.f32.mrb[0].mxu0
  %v3843 = vpop.f32.mrb[0].mxu0
  %v3844 = vadd.f32 %v3555, %v3843
  %v3845 = vpop.f32.mrb[0].mxu0
  %3846 = vmatprep.mubr.bf16.mxu0 %v1297
  %3847 = vmatmul.mubr.bf16.gmra.mrb[0].mxu0 %v1296
  %v3848 = vpop.f32.mrb[0].mxu0
  %v3849 = vadd.f32 %v3560, %v3848
  %v3850 = vpop.f32.mrb[0].mxu0
  %v3851 = vpop.f32.mrb[0].mxu0
  %v3852 = vadd.f32 %v3563, %v3851
  %v3853 = vpop.f32.mrb[0].mxu0
  %3854 = vmatprep.mubr.bf16.mxu0 %v1301
  %3855 = vmatmul.mubr.bf16.gmra.mrb[0].mxu0 %v1300
  %v3856 = vpop.f32.mrb[0].mxu0
  %v3857 = vadd.f32 %v3568, %v3856
  %v3858 = vpop.f32.mrb[0].mxu0
  %v3859 = vpop.f32.mrb[0].mxu0
  %v3860 = vadd.f32 %v3571, %v3859
  %v3861 = vpop.f32.mrb[0].mxu0
  %3862 = vmatprep.mubr.bf16.mxu0 %v1305
  %3863 = vmatmul.mubr.bf16.gmra.mrb[0].mxu0 %v1304
  %v3864 = vpop.f32.mrb[0].mxu0
  %v3865 = vadd.f32 %v3576, %v3864
  %v3866 = vpop.f32.mrb[0].mxu0
  %v3867 = vpop.f32.mrb[0].mxu0
  %v3868 = vadd.f32 %v3579, %v3867
  %v3869 = vpop.f32.mrb[0].mxu0
  %3870 = vmatprep.mubr.bf16.mxu0 %v1309
  %3871 = vmatmul.mubr.bf16.gmra.mrb[0].mxu0 %v1308
  %v3872 = vpop.f32.mrb[0].mxu0
  %v3873 = vadd.f32 %v3584, %v3872
  %v3874 = vpop.f32.mrb[0].mxu0
  %v3875 = vpop.f32.mrb[0].mxu0
  %v3876 = vadd.f32 %v3587, %v3875
  %v3877 = vpop.f32.mrb[0].mxu0
  %3878 = vmatprep.mubr.bf16.mxu0 %v1313
  %3879 = vmatmul.mubr.bf16.gmra.mrb[0].mxu0 %v1312
  %v3880 = vpop.f32.mrb[0].mxu0
  %v3881 = vadd.f32 %v3592, %v3880
  %v3882 = vpop.f32.mrb[0].mxu0
  %v3883 = vpop.f32.mrb[0].mxu0
  %v3884 = vadd.f32 %v3595, %v3883
  %v3885 = vpop.f32.mrb[0].mxu0
  %3886 = vmatprep.mubr.bf16.mxu0 %v1317
  %3887 = vmatmul.mubr.bf16.gmra.mrb[0].mxu0 %v1316
  %v3888 = vpop.f32.mrb[0].mxu0
  %v3889 = vadd.f32 %v3600, %v3888
  %v3890 = vpop.f32.mrb[0].mxu0
  %v3891 = vpop.f32.mrb[0].mxu0
  %v3892 = vadd.f32 %v3603, %v3891
  %v3893 = vpop.f32.mrb[0].mxu0
  %3894 = vmatprep.mubr.bf16.mxu0 %v1321
  %3895 = vmatmul.mubr.bf16.gmra.mrb[0].mxu0 %v1320
  %v3896 = vpop.f32.mrb[0].mxu0
  %v3897 = vadd.f32 %v3608, %v3896
  %v3898 = vpop.f32.mrb[0].mxu0
  %v3899 = vpop.f32.mrb[0].mxu0
  %v3900 = vadd.f32 %v3611, %v3899
  %v3901 = vpop.f32.mrb[0].mxu0
  %3902 = vmatprep.mubr.bf16.mxu0 %v1325
  %3903 = vmatmul.mubr.bf16.gmra.mrb[0].mxu0 %v1324
  %v3904 = vpop.f32.mrb[0].mxu0
  %v3905 = vadd.f32 %v3616, %v3904
  %v3906 = vpop.f32.mrb[0].mxu0
  %v3907 = vpop.f32.mrb[0].mxu0
  %v3908 = vadd.f32 %v3619, %v3907
  %v3909 = vpop.f32.mrb[0].mxu0
  %3910 = vmatprep.mubr.bf16.mxu0 %v1329
  %3911 = vmatmul.mubr.bf16.gmra.mrb[0].mxu0 %v1328
  %v3912 = vpop.f32.mrb[0].mxu0
  %v3913 = vadd.f32 %v3624, %v3912
  %v3914 = vpop.f32.mrb[0].mxu0
  %v3915 = vpop.f32.mrb[0].mxu0
  %v3916 = vadd.f32 %v3627, %v3915
  %v3917 = vpop.f32.mrb[0].mxu0
  %3918 = vmatprep.mubr.bf16.mxu0 %v1333
  %3919 = vmatmul.mubr.bf16.gmra.mrb[0].mxu0 %v1332
  %v3920 = vpop.f32.mrb[0].mxu0
  %v3921 = vadd.f32 %v3632, %v3920
  %v3922 = vpop.f32.mrb[0].mxu0
  %v3923 = vpop.f32.mrb[0].mxu0
  %v3924 = vadd.f32 %v3635, %v3923
  %v3925 = vpop.f32.mrb[0].mxu0
  %3926 = vmatprep.mubr.bf16.mxu0 %v1337
  %3927 = vmatmul.mubr.bf16.gmra.mrb[0].mxu0 %v1336
  %v3928 = vpop.f32.mrb[0].mxu0
  %v3929 = vadd.f32 %v3640, %v3928
  %v3930 = vpop.f32.mrb[0].mxu0
  %v3931 = vpop.f32.mrb[0].mxu0
  %v3932 = vadd.f32 %v3643, %v3931
  %v3933 = vpop.f32.mrb[0].mxu0
  %3934 = vmatprep.mubr.bf16.mxu0 %v1341
  %3935 = vmatmul.mubr.bf16.gmra.mrb[0].mxu0 %v1340
  %v3936 = vpop.f32.mrb[0].mxu0
  %v3937 = vadd.f32 %v3648, %v3936
  %v3938 = vpop.f32.mrb[0].mxu0
  %v3939 = vpop.f32.mrb[0].mxu0
  %v3940 = vadd.f32 %v3651, %v3939
  %v3941 = vpop.f32.mrb[0].mxu0
  %3942 = vmatprep.mubr.bf16.mxu0 %v1345
  %3943 = vmatmul.mubr.bf16.gmra.mrb[0].mxu0 %v1344
  %v3944 = vpop.f32.mrb[0].mxu0
  %v3945 = vadd.f32 %v3656, %v3944
  %v3946 = vpop.f32.mrb[0].mxu0
  %v3947 = vpop.f32.mrb[0].mxu0
  %v3948 = vadd.f32 %v3659, %v3947
  %v3949 = vpop.f32.mrb[0].mxu0
  %3950 = vmatprep.mubr.bf16.mxu0 %v1349
  %3951 = vmatmul.mubr.bf16.gmra.mrb[0].mxu0 %v1348
  %v3952 = vpop.f32.mrb[0].mxu0
  %v3953 = vadd.f32 %v3664, %v3952
  %v3954 = vpop.f32.mrb[0].mxu0
  %v3955 = vpop.f32.mrb[0].mxu0
  %v3956 = vadd.f32 %v3667, %v3955
  %v3957 = vpop.f32.mrb[0].mxu0
  %3958 = vmatprep.mubr.bf16.mxu0 %v1353
  %3959 = vmatmul.mubr.bf16.gmra.mrb[0].mxu0 %v1352
  %v3960 = vpop.f32.mrb[0].mxu0
  %v3961 = vadd.f32 %v3672, %v3960
  %v3962 = vpop.f32.mrb[0].mxu0
  %v3963 = vpop.f32.mrb[0].mxu0
  %v3964 = vadd.f32 %v3675, %v3963
  %v3965 = vpop.f32.mrb[0].mxu0
  %3966 = vmatprep.mubr.bf16.mxu0 %v1357
  %3967 = vmatmul.mubr.bf16.gmra.mrb[0].mxu0 %v1356
  %v3968 = vpop.f32.mrb[0].mxu0
  %v3969 = vadd.f32 %v3680, %v3968
  %v3970 = vpop.f32.mrb[0].mxu0
  %v3971 = vpop.f32.mrb[0].mxu0
  %v3972 = vadd.f32 %v3683, %v3971
  %v3973 = vpop.f32.mrb[0].mxu0
  %3974 = vmatprep.mubr.bf16.mxu0 %v1361
  %3975 = vmatmul.mubr.bf16.gmra.mrb[0].mxu0 %v1360
  %v3976 = vpop.f32.mrb[0].mxu0
  %v3977 = vadd.f32 %v3688, %v3976
  %v3978 = vpop.f32.mrb[0].mxu0
  %v3979 = vpop.f32.mrb[0].mxu0
  %v3980 = vadd.f32 %v3691, %v3979
  %v3981 = vpop.f32.mrb[0].mxu0
  %3982 = vmatprep.mubr.bf16.mxu0 %v1365
  %3983 = vmatmul.mubr.bf16.gmra.mrb[0].mxu0 %v1364
  %v3984 = vpop.f32.mrb[0].mxu0
  %v3985 = vadd.f32 %v3696, %v3984
  %v3986 = vpop.f32.mrb[0].mxu0
  %v3987 = vpop.f32.mrb[0].mxu0
  %v3988 = vadd.f32 %v3699, %v3987
  %v3989 = vpop.f32.mrb[0].mxu0
  %3990 = vmatprep.mubr.bf16.mxu0 %v1369
  %3991 = vmatmul.mubr.bf16.gmra.mrb[0].mxu0 %v1368
  %v3992 = vpop.f32.mrb[0].mxu0
  %v3993 = vadd.f32 %v3704, %v3992
  %v3994 = vpop.f32.mrb[0].mxu0
  %v3995 = vpop.f32.mrb[0].mxu0
  %v3996 = vadd.f32 %v3707, %v3995
  %v3997 = vpop.f32.mrb[0].mxu0
  %3998 = vmatprep.mubr.bf16.mxu0 %v1373
  %3999 = vmatmul.mubr.bf16.gmra.mrb[0].mxu0 %v1372
  %v4000 = vpop.f32.mrb[0].mxu0
  %v4001 = vadd.f32 %v3712, %v4000
  %v4002 = vpop.f32.mrb[0].mxu0
  %v4003 = vpop.f32.mrb[0].mxu0
  %v4004 = vadd.f32 %v3715, %v4003
  %v4005 = vpop.f32.mrb[0].mxu0
  %4006 = vmatprep.mubr.bf16.mxu0 %v1377
  %4007 = vmatmul.mubr.bf16.gmra.mrb[0].mxu0 %v1376
  %v4008 = vpop.f32.mrb[0].mxu0
  %v4009 = vadd.f32 %v3720, %v4008
  %v4010 = vpop.f32.mrb[0].mxu0
  %v4011 = vpop.f32.mrb[0].mxu0
  %v4012 = vadd.f32 %v3723, %v4011
  %v4013 = vpop.f32.mrb[0].mxu0
  %4014 = vdwg.mxu0
  %v4015 = vmul.f32 %v2087, %v3761
  %v4016 = vmul.f32 %v2092, %v3764
  %v4017 = vmul.f32 %v2097, %v3769
  %v4018 = vmul.f32 %v2102, %v3772
  %v4019 = vmul.f32 %v2107, %v3777
  %v4020 = vmul.f32 %v2112, %v3780
  %v4021 = vmul.f32 %v2117, %v3785
  %v4022 = vmul.f32 %v2122, %v3788
  %v4023 = vmul.f32 %v2127, %v3793
  %v4024 = vmul.f32 %v2132, %v3796
  %v4025 = vmul.f32 %v2137, %v3801
  %v4026 = vmul.f32 %v2142, %v3804
  %v4027 = vmul.f32 %v2147, %v3809
  %v4028 = vmul.f32 %v2152, %v3812
  %v4029 = vmul.f32 %v2157, %v3817
  %v4030 = vmul.f32 %v2162, %v3820
  %v4031 = vmul.f32 %v2167, %v3825
  %v4032 = vmul.f32 %v2172, %v3828
  %v4033 = vmul.f32 %v2177, %v3833
  %v4034 = vmul.f32 %v2182, %v3836
  %v4035 = vmul.f32 %v2187, %v3841
  %v4036 = vmul.f32 %v2192, %v3844
  %v4037 = vmul.f32 %v2197, %v3849
  %v4038 = vmul.f32 %v2202, %v3852
  %v4039 = vmul.f32 %v2207, %v3857
  %v4040 = vmul.f32 %v2212, %v3860
  %v4041 = vmul.f32 %v2217, %v3865
  %v4042 = vmul.f32 %v2222, %v3868
  %v4043 = vmul.f32 %v2227, %v3873
  %v4044 = vmul.f32 %v2232, %v3876
  %v4045 = vmul.f32 %v2237, %v3881
  %v4046 = vmul.f32 %v2242, %v3884
  %v4047 = vmul.f32 %v2247, %v3889
  %v4048 = vmul.f32 %v2252, %v3892
  %v4049 = vmul.f32 %v2257, %v3897
  %v4050 = vmul.f32 %v2262, %v3900
  %v4051 = vmul.f32 %v2267, %v3905
  %v4052 = vmul.f32 %v2272, %v3908
  %v4053 = vmul.f32 %v2277, %v3913
  %v4054 = vmul.f32 %v2282, %v3916
  %v4055 = vmul.f32 %v2287, %v3921
  %v4056 = vmul.f32 %v2292, %v3924
  %v4057 = vmul.f32 %v2297, %v3929
  %v4058 = vmul.f32 %v2302, %v3932
  %v4059 = vmul.f32 %v2307, %v3937
  %v4060 = vmul.f32 %v2312, %v3940
  %v4061 = vmul.f32 %v2317, %v3945
  %v4062 = vmul.f32 %v2322, %v3948
  %v4063 = vmul.f32 %v2327, %v3953
  %v4064 = vmul.f32 %v2332, %v3956
  %v4065 = vmul.f32 %v2337, %v3961
  %v4066 = vmul.f32 %v2342, %v3964
  %v4067 = vmul.f32 %v2347, %v3969
  %v4068 = vmul.f32 %v2352, %v3972
  %v4069 = vmul.f32 %v2357, %v3977
  %v4070 = vmul.f32 %v2362, %v3980
  %v4071 = vmul.f32 %v2367, %v3985
  %v4072 = vmul.f32 %v2372, %v3988
  %v4073 = vmul.f32 %v2377, %v3993
  %v4074 = vmul.f32 %v2382, %v3996
  %v4075 = vmul.f32 %v2387, %v4001
  %v4076 = vmul.f32 %v2392, %v4004
  %v4077 = vmul.f32 %v2397, %v4009
  %v4078 = vmul.f32 %v2402, %v4012
  %v4079 = vld [vmem:[%s6] sm:$0xf]
  %v4080 = vld [vmem:[%s6 + $0x4] sm:$0xf]
  %v4081 = vld [vmem:[%s6 + $0x8] sm:$0xf]
  %v4082 = vld [vmem:[%s6 + $0xc] sm:$0xf]
  %v4083 = vld [vmem:[%s6 + $0x10] sm:$0xf]
  %v4084 = vld [vmem:[%s6 + $0x14] sm:$0xf]
  %v4085 = vld [vmem:[%s6 + $0x18] sm:$0xf]
  %v4086 = vld [vmem:[%s6 + $0x1c] sm:$0xf]
  %v4087 = vld [vmem:[%s6 + $0x20] sm:$0xf]
  %v4088 = vld [vmem:[%s6 + $0x24] sm:$0xf]
  %v4089 = vld [vmem:[%s6 + $0x28] sm:$0xf]
  %v4090 = vld [vmem:[%s6 + $0x2c] sm:$0xf]
  %v4091 = vld [vmem:[%s6 + $0x30] sm:$0xf]
  %v4092 = vld [vmem:[%s6 + $0x34] sm:$0xf]
  %v4093 = vld [vmem:[%s6 + $0x38] sm:$0xf]
  %v4094 = vld [vmem:[%s6 + $0x3c] sm:$0xf]
  %v4111 = vunpack.c.l.b16 %v4079
  %v4112 = vunpack.c.l.b16 %v4080
  %v4113 = vunpack.c.l.b16 %v4081
  %v4114 = vunpack.c.l.b16 %v4082
  %v4115 = vunpack.c.l.b16 %v4083
  %v4116 = vunpack.c.l.b16 %v4084
  %v4117 = vunpack.c.l.b16 %v4085
  %v4118 = vunpack.c.l.b16 %v4086
  %v4119 = vunpack.c.l.b16 %v4087
  %v4120 = vunpack.c.l.b16 %v4088
  %v4121 = vunpack.c.l.b16 %v4089
  %v4122 = vunpack.c.l.b16 %v4090
  %v4123 = vunpack.c.l.b16 %v4091
  %v4124 = vunpack.c.l.b16 %v4092
  %v4125 = vunpack.c.l.b16 %v4093
  %v4126 = vunpack.c.l.b16 %v4094
  %v4127 = vpack.c.b16 %v4112, %v4111
  %v4128 = vpack.c.b16 %v4114, %v4113
  %v4129 = vpack.c.b16 %v4116, %v4115
  %v4130 = vpack.c.b16 %v4118, %v4117
  %v4131 = vpack.c.b16 %v4120, %v4119
  %v4132 = vpack.c.b16 %v4122, %v4121
  %v4133 = vpack.c.b16 %v4124, %v4123
  %v4134 = vpack.c.b16 %v4126, %v4125
  %4143 = vmatprep.subr.bf16.mxu0 0
  %4144 = vmatpush1.bf16.msra.mxu0 %v4127
  %4145 = vmatprep.subr.bf16.mxu0 0
  %4146 = vmatpush1.bf16.msra.mxu0 %v4128
  %4147 = vmatprep.subr.bf16.mxu0 0
  %4148 = vmatpush1.bf16.msra.mxu0 %v4129
  %4149 = vmatprep.subr.bf16.mxu0 0
  %4150 = vmatpush1.bf16.msra.mxu0 %v4130
  %4151 = vmatprep.subr.bf16.mxu0 0
  %4152 = vmatpush1.bf16.msra.mxu0 %v4131
  %4153 = vmatprep.subr.bf16.mxu0 0
  %4154 = vmatpush1.bf16.msra.mxu0 %v4132
  %4155 = vmatprep.subr.bf16.mxu0 0
  %4156 = vmatpush1.bf16.msra.mxu0 %v4133
  %4157 = vmatprep.subr.bf16.mxu0 0
  %4158 = vmatpush1.bf16.msra.mxu0 %v4134
  %4159 = vmatprep.subr.bf16.mxu0 0
  %4160 = vmatpush1.bf16.msra.mxu0 0
  %4161 = vmatprep.subr.bf16.mxu0 0
  %4162 = vmatpush1.bf16.msra.mxu0 0
  %4163 = vmatprep.subr.bf16.mxu0 0
  %4164 = vmatpush1.bf16.msra.mxu0 0
  %4165 = vmatprep.subr.bf16.mxu0 0
  %4166 = vmatpush1.bf16.msra.mxu0 0
  %4167 = vmatprep.subr.bf16.mxu0 0
  %4168 = vmatpush1.bf16.msra.mxu0 0
  %4169 = vmatprep.subr.bf16.mxu0 0
  %4170 = vmatpush1.bf16.msra.mxu0 0
  %4171 = vmatprep.subr.bf16.mxu0 0
  %4172 = vmatpush1.bf16.msra.mxu0 0
  %4173 = vmatprep.subr.bf16.mxu0 0
  %4174 = vmatpush1.bf16.msra.mxu0 0
  %4175 = vmatprep.mubr.bf16.mxu0 0
  %4176 = vmatmul.mubr.bf16.gmra.mrb[0].mxu0 %v3020
  %v4177 = vpop.f32.mrb[0].mxu0
  %v4178 = vadd.f32 0.0, %v4177
  %v4179 = vpop.f32.mrb[0].mxu0
  %v4180 = vpop.f32.mrb[0].mxu0
  %v4181 = vadd.f32 0.0, %v4180
  %v4182 = vpop.f32.mrb[0].mxu0
  %4183 = vmatprep.mubr.bf16.mxu0 0
  %4184 = vmatmul.mubr.bf16.gmra.mrb[0].mxu0 %v3021
  %v4185 = vpop.f32.mrb[0].mxu0
  %v4186 = vadd.f32 0.0, %v4185
  %v4187 = vpop.f32.mrb[0].mxu0
  %v4188 = vpop.f32.mrb[0].mxu0
  %v4189 = vadd.f32 0.0, %v4188
  %v4190 = vpop.f32.mrb[0].mxu0
  %4191 = vmatprep.mubr.bf16.mxu0 0
  %4192 = vmatmul.mubr.bf16.gmra.mrb[0].mxu0 %v3022
  %v4193 = vpop.f32.mrb[0].mxu0
  %v4194 = vadd.f32 0.0, %v4193
  %v4195 = vpop.f32.mrb[0].mxu0
  %v4196 = vpop.f32.mrb[0].mxu0
  %v4197 = vadd.f32 0.0, %v4196
  %v4198 = vpop.f32.mrb[0].mxu0
  %4199 = vmatprep.mubr.bf16.mxu0 0
  %4200 = vmatmul.mubr.bf16.gmra.mrb[0].mxu0 %v3023
  %v4201 = vpop.f32.mrb[0].mxu0
  %v4202 = vadd.f32 0.0, %v4201
  %v4203 = vpop.f32.mrb[0].mxu0
  %v4204 = vpop.f32.mrb[0].mxu0
  %v4205 = vadd.f32 0.0, %v4204
  %v4206 = vpop.f32.mrb[0].mxu0
  %4207 = vmatprep.mubr.bf16.mxu0 0
  %4208 = vmatmul.mubr.bf16.gmra.mrb[0].mxu0 %v3024
  %v4209 = vpop.f32.mrb[0].mxu0
  %v4210 = vadd.f32 0.0, %v4209
  %v4211 = vpop.f32.mrb[0].mxu0
  %v4212 = vpop.f32.mrb[0].mxu0
  %v4213 = vadd.f32 0.0, %v4212
  %v4214 = vpop.f32.mrb[0].mxu0
  %4215 = vmatprep.mubr.bf16.mxu0 0
  %4216 = vmatmul.mubr.bf16.gmra.mrb[0].mxu0 %v3025
  %v4217 = vpop.f32.mrb[0].mxu0
  %v4218 = vadd.f32 0.0, %v4217
  %v4219 = vpop.f32.mrb[0].mxu0
  %v4220 = vpop.f32.mrb[0].mxu0
  %v4221 = vadd.f32 0.0, %v4220
  %v4222 = vpop.f32.mrb[0].mxu0
  %4223 = vmatprep.mubr.bf16.mxu0 0
  %4224 = vmatmul.mubr.bf16.gmra.mrb[0].mxu0 %v3026
  %v4225 = vpop.f32.mrb[0].mxu0
  %v4226 = vadd.f32 0.0, %v4225
  %v4227 = vpop.f32.mrb[0].mxu0
  %v4228 = vpop.f32.mrb[0].mxu0
  %v4229 = vadd.f32 0.0, %v4228
  %v4230 = vpop.f32.mrb[0].mxu0
  %4231 = vmatprep.mubr.bf16.mxu0 0
  %4232 = vmatmul.mubr.bf16.gmra.mrb[0].mxu0 %v3027
  %v4233 = vpop.f32.mrb[0].mxu0
  %v4234 = vadd.f32 0.0, %v4233
  %v4235 = vpop.f32.mrb[0].mxu0
  %v4236 = vpop.f32.mrb[0].mxu0
  %v4237 = vadd.f32 0.0, %v4236
  %v4238 = vpop.f32.mrb[0].mxu0
  %4239 = vmatprep.mubr.bf16.mxu0 0
  %4240 = vmatmul.mubr.bf16.gmra.mrb[0].mxu0 %v3028
  %v4241 = vpop.f32.mrb[0].mxu0
  %v4242 = vadd.f32 0.0, %v4241
  %v4243 = vpop.f32.mrb[0].mxu0
  %v4244 = vpop.f32.mrb[0].mxu0
  %v4245 = vadd.f32 0.0, %v4244
  %v4246 = vpop.f32.mrb[0].mxu0
  %4247 = vmatprep.mubr.bf16.mxu0 0
  %4248 = vmatmul.mubr.bf16.gmra.mrb[0].mxu0 %v3029
  %v4249 = vpop.f32.mrb[0].mxu0
  %v4250 = vadd.f32 0.0, %v4249
  %v4251 = vpop.f32.mrb[0].mxu0
  %v4252 = vpop.f32.mrb[0].mxu0
  %v4253 = vadd.f32 0.0, %v4252
  %v4254 = vpop.f32.mrb[0].mxu0
  %4255 = vmatprep.mubr.bf16.mxu0 0
  %4256 = vmatmul.mubr.bf16.gmra.mrb[0].mxu0 %v3030
  %v4257 = vpop.f32.mrb[0].mxu0
  %v4258 = vadd.f32 0.0, %v4257
  %v4259 = vpop.f32.mrb[0].mxu0
  %v4260 = vpop.f32.mrb[0].mxu0
  %v4261 = vadd.f32 0.0, %v4260
  %v4262 = vpop.f32.mrb[0].mxu0
  %4263 = vmatprep.mubr.bf16.mxu0 0
  %4264 = vmatmul.mubr.bf16.gmra.mrb[0].mxu0 %v3031
  %v4265 = vpop.f32.mrb[0].mxu0
  %v4266 = vadd.f32 0.0, %v4265
  %v4267 = vpop.f32.mrb[0].mxu0
  %v4268 = vpop.f32.mrb[0].mxu0
  %v4269 = vadd.f32 0.0, %v4268
  %v4270 = vpop.f32.mrb[0].mxu0
  %4271 = vmatprep.mubr.bf16.mxu0 0
  %4272 = vmatmul.mubr.bf16.gmra.mrb[0].mxu0 %v3032
  %v4273 = vpop.f32.mrb[0].mxu0
  %v4274 = vadd.f32 0.0, %v4273
  %v4275 = vpop.f32.mrb[0].mxu0
  %v4276 = vpop.f32.mrb[0].mxu0
  %v4277 = vadd.f32 0.0, %v4276
  %v4278 = vpop.f32.mrb[0].mxu0
  %4279 = vmatprep.mubr.bf16.mxu0 0
  %4280 = vmatmul.mubr.bf16.gmra.mrb[0].mxu0 %v3033
  %v4281 = vpop.f32.mrb[0].mxu0
  %v4282 = vadd.f32 0.0, %v4281
  %v4283 = vpop.f32.mrb[0].mxu0
  %v4284 = vpop.f32.mrb[0].mxu0
  %v4285 = vadd.f32 0.0, %v4284
  %v4286 = vpop.f32.mrb[0].mxu0
  %4287 = vmatprep.mubr.bf16.mxu0 0
  %4288 = vmatmul.mubr.bf16.gmra.mrb[0].mxu0 %v3034
  %v4289 = vpop.f32.mrb[0].mxu0
  %v4290 = vadd.f32 0.0, %v4289
  %v4291 = vpop.f32.mrb[0].mxu0
  %v4292 = vpop.f32.mrb[0].mxu0
  %v4293 = vadd.f32 0.0, %v4292
  %v4294 = vpop.f32.mrb[0].mxu0
  %4295 = vmatprep.mubr.bf16.mxu0 0
  %4296 = vmatmul.mubr.bf16.gmra.mrb[0].mxu0 %v3035
  %v4297 = vpop.f32.mrb[0].mxu0
  %v4298 = vadd.f32 0.0, %v4297
  %v4299 = vpop.f32.mrb[0].mxu0
  %v4300 = vpop.f32.mrb[0].mxu0
  %v4301 = vadd.f32 0.0, %v4300
  %v4302 = vpop.f32.mrb[0].mxu0
  %4303 = vmatprep.mubr.bf16.mxu0 0
  %4304 = vmatmul.mubr.bf16.gmra.mrb[0].mxu0 %v3036
  %v4305 = vpop.f32.mrb[0].mxu0
  %v4306 = vadd.f32 0.0, %v4305
  %v4307 = vpop.f32.mrb[0].mxu0
  %v4308 = vpop.f32.mrb[0].mxu0
  %v4309 = vadd.f32 0.0, %v4308
  %v4310 = vpop.f32.mrb[0].mxu0
  %4311 = vmatprep.mubr.bf16.mxu0 0
  %4312 = vmatmul.mubr.bf16.gmra.mrb[0].mxu0 %v3037
  %v4313 = vpop.f32.mrb[0].mxu0
  %v4314 = vadd.f32 0.0, %v4313
  %v4315 = vpop.f32.mrb[0].mxu0
  %v4316 = vpop.f32.mrb[0].mxu0
  %v4317 = vadd.f32 0.0, %v4316
  %v4318 = vpop.f32.mrb[0].mxu0
  %4319 = vmatprep.mubr.bf16.mxu0 0
  %4320 = vmatmul.mubr.bf16.gmra.mrb[0].mxu0 %v3038
  %v4321 = vpop.f32.mrb[0].mxu0
  %v4322 = vadd.f32 0.0, %v4321
  %v4323 = vpop.f32.mrb[0].mxu0
  %v4324 = vpop.f32.mrb[0].mxu0
  %v4325 = vadd.f32 0.0, %v4324
  %v4326 = vpop.f32.mrb[0].mxu0
  %4327 = vmatprep.mubr.bf16.mxu0 0
  %4328 = vmatmul.mubr.bf16.gmra.mrb[0].mxu0 %v3039
  %v4329 = vpop.f32.mrb[0].mxu0
  %v4330 = vadd.f32 0.0, %v4329
  %v4331 = vpop.f32.mrb[0].mxu0
  %v4332 = vpop.f32.mrb[0].mxu0
  %v4333 = vadd.f32 0.0, %v4332
  %v4334 = vpop.f32.mrb[0].mxu0
  %4335 = vmatprep.mubr.bf16.mxu0 0
  %4336 = vmatmul.mubr.bf16.gmra.mrb[0].mxu0 %v3040
  %v4337 = vpop.f32.mrb[0].mxu0
  %v4338 = vadd.f32 0.0, %v4337
  %v4339 = vpop.f32.mrb[0].mxu0
  %v4340 = vpop.f32.mrb[0].mxu0
  %v4341 = vadd.f32 0.0, %v4340
  %v4342 = vpop.f32.mrb[0].mxu0
  %4343 = vmatprep.mubr.bf16.mxu0 0
  %4344 = vmatmul.mubr.bf16.gmra.mrb[0].mxu0 %v3041
  %v4345 = vpop.f32.mrb[0].mxu0
  %v4346 = vadd.f32 0.0, %v4345
  %v4347 = vpop.f32.mrb[0].mxu0
  %v4348 = vpop.f32.mrb[0].mxu0
  %v4349 = vadd.f32 0.0, %v4348
  %v4350 = vpop.f32.mrb[0].mxu0
  %4351 = vmatprep.mubr.bf16.mxu0 0
  %4352 = vmatmul.mubr.bf16.gmra.mrb[0].mxu0 %v3042
  %v4353 = vpop.f32.mrb[0].mxu0
  %v4354 = vadd.f32 0.0, %v4353
  %v4355 = vpop.f32.mrb[0].mxu0
  %v4356 = vpop.f32.mrb[0].mxu0
  %v4357 = vadd.f32 0.0, %v4356
  %v4358 = vpop.f32.mrb[0].mxu0
  %4359 = vmatprep.mubr.bf16.mxu0 0
  %4360 = vmatmul.mubr.bf16.gmra.mrb[0].mxu0 %v3043
  %v4361 = vpop.f32.mrb[0].mxu0
  %v4362 = vadd.f32 0.0, %v4361
  %v4363 = vpop.f32.mrb[0].mxu0
  %v4364 = vpop.f32.mrb[0].mxu0
  %v4365 = vadd.f32 0.0, %v4364
  %v4366 = vpop.f32.mrb[0].mxu0
  %4367 = vmatprep.mubr.bf16.mxu0 0
  %4368 = vmatmul.mubr.bf16.gmra.mrb[0].mxu0 %v3044
  %v4369 = vpop.f32.mrb[0].mxu0
  %v4370 = vadd.f32 0.0, %v4369
  %v4371 = vpop.f32.mrb[0].mxu0
  %v4372 = vpop.f32.mrb[0].mxu0
  %v4373 = vadd.f32 0.0, %v4372
  %v4374 = vpop.f32.mrb[0].mxu0
  %4375 = vmatprep.mubr.bf16.mxu0 0
  %4376 = vmatmul.mubr.bf16.gmra.mrb[0].mxu0 %v3045
  %v4377 = vpop.f32.mrb[0].mxu0
  %v4378 = vadd.f32 0.0, %v4377
  %v4379 = vpop.f32.mrb[0].mxu0
  %v4380 = vpop.f32.mrb[0].mxu0
  %v4381 = vadd.f32 0.0, %v4380
  %v4382 = vpop.f32.mrb[0].mxu0
  %4383 = vmatprep.mubr.bf16.mxu0 0
  %4384 = vmatmul.mubr.bf16.gmra.mrb[0].mxu0 %v3046
  %v4385 = vpop.f32.mrb[0].mxu0
  %v4386 = vadd.f32 0.0, %v4385
  %v4387 = vpop.f32.mrb[0].mxu0
  %v4388 = vpop.f32.mrb[0].mxu0
  %v4389 = vadd.f32 0.0, %v4388
  %v4390 = vpop.f32.mrb[0].mxu0
  %4391 = vmatprep.mubr.bf16.mxu0 0
  %4392 = vmatmul.mubr.bf16.gmra.mrb[0].mxu0 %v3047
  %v4393 = vpop.f32.mrb[0].mxu0
  %v4394 = vadd.f32 0.0, %v4393
  %v4395 = vpop.f32.mrb[0].mxu0
  %v4396 = vpop.f32.mrb[0].mxu0
  %v4397 = vadd.f32 0.0, %v4396
  %v4398 = vpop.f32.mrb[0].mxu0
  %4399 = vmatprep.mubr.bf16.mxu0 0
  %4400 = vmatmul.mubr.bf16.gmra.mrb[0].mxu0 %v3048
  %v4401 = vpop.f32.mrb[0].mxu0
  %v4402 = vadd.f32 0.0, %v4401
  %v4403 = vpop.f32.mrb[0].mxu0
  %v4404 = vpop.f32.mrb[0].mxu0
  %v4405 = vadd.f32 0.0, %v4404
  %v4406 = vpop.f32.mrb[0].mxu0
  %4407 = vmatprep.mubr.bf16.mxu0 0
  %4408 = vmatmul.mubr.bf16.gmra.mrb[0].mxu0 %v3049
  %v4409 = vpop.f32.mrb[0].mxu0
  %v4410 = vadd.f32 0.0, %v4409
  %v4411 = vpop.f32.mrb[0].mxu0
  %v4412 = vpop.f32.mrb[0].mxu0
  %v4413 = vadd.f32 0.0, %v4412
  %v4414 = vpop.f32.mrb[0].mxu0
  %4415 = vmatprep.mubr.bf16.mxu0 0
  %4416 = vmatmul.mubr.bf16.gmra.mrb[0].mxu0 %v3050
  %v4417 = vpop.f32.mrb[0].mxu0
  %v4418 = vadd.f32 0.0, %v4417
  %v4419 = vpop.f32.mrb[0].mxu0
  %v4420 = vpop.f32.mrb[0].mxu0
  %v4421 = vadd.f32 0.0, %v4420
  %v4422 = vpop.f32.mrb[0].mxu0
  %4423 = vmatprep.mubr.bf16.mxu0 0
  %4424 = vmatmul.mubr.bf16.gmra.mrb[0].mxu0 %v3051
  %v4425 = vpop.f32.mrb[0].mxu0
  %v4426 = vadd.f32 0.0, %v4425
  %v4427 = vpop.f32.mrb[0].mxu0
  %v4428 = vpop.f32.mrb[0].mxu0
  %v4429 = vadd.f32 0.0, %v4428
  %v4430 = vpop.f32.mrb[0].mxu0
  %4431 = vdwg.mxu0
  %v4432 = vadd.f32 %v4015, %v4178
  %v4433 = vadd.f32 %v4016, %v4181
  %v4434 = vadd.f32 %v4017, %v4186
  %v4435 = vadd.f32 %v4018, %v4189
  %v4436 = vadd.f32 %v4019, %v4194
  %v4437 = vadd.f32 %v4020, %v4197
  %v4438 = vadd.f32 %v4021, %v4202
  %v4439 = vadd.f32 %v4022, %v4205
  %v4440 = vadd.f32 %v4023, %v4210
  %v4441 = vadd.f32 %v4024, %v4213
  %v4442 = vadd.f32 %v4025, %v4218
  %v4443 = vadd.f32 %v4026, %v4221
  %v4444 = vadd.f32 %v4027, %v4226
  %v4445 = vadd.f32 %v4028, %v4229
  %v4446 = vadd.f32 %v4029, %v4234
  %v4447 = vadd.f32 %v4030, %v4237
  %v4448 = vadd.f32 %v4031, %v4242
  %v4449 = vadd.f32 %v4032, %v4245
  %v4450 = vadd.f32 %v4033, %v4250
  %v4451 = vadd.f32 %v4034, %v4253
  %v4452 = vadd.f32 %v4035, %v4258
  %v4453 = vadd.f32 %v4036, %v4261
  %v4454 = vadd.f32 %v4037, %v4266
  %v4455 = vadd.f32 %v4038, %v4269
  %v4456 = vadd.f32 %v4039, %v4274
  %v4457 = vadd.f32 %v4040, %v4277
  %v4458 = vadd.f32 %v4041, %v4282
  %v4459 = vadd.f32 %v4042, %v4285
  %v4460 = vadd.f32 %v4043, %v4290
  %v4461 = vadd.f32 %v4044, %v4293
  %v4462 = vadd.f32 %v4045, %v4298
  %v4463 = vadd.f32 %v4046, %v4301
  %v4464 = vadd.f32 %v4047, %v4306
  %v4465 = vadd.f32 %v4048, %v4309
  %v4466 = vadd.f32 %v4049, %v4314
  %v4467 = vadd.f32 %v4050, %v4317
  %v4468 = vadd.f32 %v4051, %v4322
  %v4469 = vadd.f32 %v4052, %v4325
  %v4470 = vadd.f32 %v4053, %v4330
  %v4471 = vadd.f32 %v4054, %v4333
  %v4472 = vadd.f32 %v4055, %v4338
  %v4473 = vadd.f32 %v4056, %v4341
  %v4474 = vadd.f32 %v4057, %v4346
  %v4475 = vadd.f32 %v4058, %v4349
  %v4476 = vadd.f32 %v4059, %v4354
  %v4477 = vadd.f32 %v4060, %v4357
  %v4478 = vadd.f32 %v4061, %v4362
  %v4479 = vadd.f32 %v4062, %v4365
  %v4480 = vadd.f32 %v4063, %v4370
  %v4481 = vadd.f32 %v4064, %v4373
  %v4482 = vadd.f32 %v4065, %v4378
  %v4483 = vadd.f32 %v4066, %v4381
  %v4484 = vadd.f32 %v4067, %v4386
  %v4485 = vadd.f32 %v4068, %v4389
  %v4486 = vadd.f32 %v4069, %v4394
  %v4487 = vadd.f32 %v4070, %v4397
  %v4488 = vadd.f32 %v4071, %v4402
  %v4489 = vadd.f32 %v4072, %v4405
  %v4490 = vadd.f32 %v4073, %v4410
  %v4491 = vadd.f32 %v4074, %v4413
  %v4492 = vadd.f32 %v4075, %v4418
  %v4493 = vadd.f32 %v4076, %v4421
  %v4494 = vadd.f32 %v4077, %v4426
  %v4495 = vadd.f32 %v4078, %v4429
  %v4496 = vld [vmem:[%s7] sm:$0x1]
  %v4498 = vlaneseq
  %v4499 = vshrl.u32 %v4498, 7
  %v4500 = vsub.s32 0, %v4499
  %v4501 = vrot.slane %v4496, %v4500
  %v4503 = vadd.f32 %v4432, %v4501
  %v4504 = vadd.f32 %v4433, %v4501
  %v4505 = vadd.f32 %v4434, %v4501
  %v4506 = vadd.f32 %v4435, %v4501
  %v4507 = vadd.f32 %v4436, %v4501
  %v4508 = vadd.f32 %v4437, %v4501
  %v4509 = vadd.f32 %v4438, %v4501
  %v4510 = vadd.f32 %v4439, %v4501
  %v4511 = vadd.f32 %v4440, %v4501
  %v4512 = vadd.f32 %v4441, %v4501
  %v4513 = vadd.f32 %v4442, %v4501
  %v4514 = vadd.f32 %v4443, %v4501
  %v4515 = vadd.f32 %v4444, %v4501
  %v4516 = vadd.f32 %v4445, %v4501
  %v4517 = vadd.f32 %v4446, %v4501
  %v4518 = vadd.f32 %v4447, %v4501
  %v4519 = vadd.f32 %v4448, %v4501
  %v4520 = vadd.f32 %v4449, %v4501
  %v4521 = vadd.f32 %v4450, %v4501
  %v4522 = vadd.f32 %v4451, %v4501
  %v4523 = vadd.f32 %v4452, %v4501
  %v4524 = vadd.f32 %v4453, %v4501
  %v4525 = vadd.f32 %v4454, %v4501
  %v4526 = vadd.f32 %v4455, %v4501
  %v4527 = vadd.f32 %v4456, %v4501
  %v4528 = vadd.f32 %v4457, %v4501
  %v4529 = vadd.f32 %v4458, %v4501
  %v4530 = vadd.f32 %v4459, %v4501
  %v4531 = vadd.f32 %v4460, %v4501
  %v4532 = vadd.f32 %v4461, %v4501
  %v4533 = vadd.f32 %v4462, %v4501
  %v4534 = vadd.f32 %v4463, %v4501
  %v4535 = vadd.f32 %v4464, %v4501
  %v4536 = vadd.f32 %v4465, %v4501
  %v4537 = vadd.f32 %v4466, %v4501
  %v4538 = vadd.f32 %v4467, %v4501
  %v4539 = vadd.f32 %v4468, %v4501
  %v4540 = vadd.f32 %v4469, %v4501
  %v4541 = vadd.f32 %v4470, %v4501
  %v4542 = vadd.f32 %v4471, %v4501
  %v4543 = vadd.f32 %v4472, %v4501
  %v4544 = vadd.f32 %v4473, %v4501
  %v4545 = vadd.f32 %v4474, %v4501
  %v4546 = vadd.f32 %v4475, %v4501
  %v4547 = vadd.f32 %v4476, %v4501
  %v4548 = vadd.f32 %v4477, %v4501
  %v4549 = vadd.f32 %v4478, %v4501
  %v4550 = vadd.f32 %v4479, %v4501
  %v4551 = vadd.f32 %v4480, %v4501
  %v4552 = vadd.f32 %v4481, %v4501
  %v4553 = vadd.f32 %v4482, %v4501
  %v4554 = vadd.f32 %v4483, %v4501
  %v4555 = vadd.f32 %v4484, %v4501
  %v4556 = vadd.f32 %v4485, %v4501
  %v4557 = vadd.f32 %v4486, %v4501
  %v4558 = vadd.f32 %v4487, %v4501
  %v4559 = vadd.f32 %v4488, %v4501
  %v4560 = vadd.f32 %v4489, %v4501
  %v4561 = vadd.f32 %v4490, %v4501
  %v4562 = vadd.f32 %v4491, %v4501
  %v4563 = vadd.f32 %v4492, %v4501
  %v4564 = vadd.f32 %v4493, %v4501
  %v4565 = vadd.f32 %v4494, %v4501
  %v4566 = vadd.f32 %v4495, %v4501
  %4567 = vst [vmem:[%s9] sm:$0xff] %v4503
  %4568 = vst [vmem:[%s9 + $0x8] sm:$0xff] %v4504
  %4569 = vst [vmem:[%s9 + $0x10] sm:$0xff] %v4505
  %4570 = vst [vmem:[%s9 + $0x18] sm:$0xff] %v4506
  %4571 = vst [vmem:[%s9 + $0x20] sm:$0xff] %v4507
  %4572 = vst [vmem:[%s9 + $0x28] sm:$0xff] %v4508
  %4573 = vst [vmem:[%s9 + $0x30] sm:$0xff] %v4509
  %4574 = vst [vmem:[%s9 + $0x38] sm:$0xff] %v4510
  %4575 = vst [vmem:[%s9 + $0x40] sm:$0xff] %v4511
  %4576 = vst [vmem:[%s9 + $0x48] sm:$0xff] %v4512
  %4577 = vst [vmem:[%s9 + $0x50] sm:$0xff] %v4513
  %4578 = vst [vmem:[%s9 + $0x58] sm:$0xff] %v4514
  %4579 = vst [vmem:[%s9 + $0x60] sm:$0xff] %v4515
  %4580 = vst [vmem:[%s9 + $0x68] sm:$0xff] %v4516
  %4581 = vst [vmem:[%s9 + $0x70] sm:$0xff] %v4517
  %4582 = vst [vmem:[%s9 + $0x78] sm:$0xff] %v4518
  %4583 = vst [vmem:[%s9 + $0x80] sm:$0xff] %v4519
  %4584 = vst [vmem:[%s9 + $0x88] sm:$0xff] %v4520
  %4585 = vst [vmem:[%s9 + $0x90] sm:$0xff] %v4521
  %4586 = vst [vmem:[%s9 + $0x98] sm:$0xff] %v4522
  %4587 = vst [vmem:[%s9 + $0xa0] sm:$0xff] %v4523
  %4588 = vst [vmem:[%s9 + $0xa8] sm:$0xff] %v4524
  %4589 = vst [vmem:[%s9 + $0xb0] sm:$0xff] %v4525
  %4590 = vst [vmem:[%s9 + $0xb8] sm:$0xff] %v4526
  %4591 = vst [vmem:[%s9 + $0xc0] sm:$0xff] %v4527
  %4592 = vst [vmem:[%s9 + $0xc8] sm:$0xff] %v4528
  %4593 = vst [vmem:[%s9 + $0xd0] sm:$0xff] %v4529
  %4594 = vst [vmem:[%s9 + $0xd8] sm:$0xff] %v4530
  %4595 = vst [vmem:[%s9 + $0xe0] sm:$0xff] %v4531
  %4596 = vst [vmem:[%s9 + $0xe8] sm:$0xff] %v4532
  %4597 = vst [vmem:[%s9 + $0xf0] sm:$0xff] %v4533
  %4598 = vst [vmem:[%s9 + $0xf8] sm:$0xff] %v4534
  %4599 = vst [vmem:[%s9 + $0x100] sm:$0xff] %v4535
  %4600 = vst [vmem:[%s9 + $0x108] sm:$0xff] %v4536
  %4601 = vst [vmem:[%s9 + $0x110] sm:$0xff] %v4537
  %4602 = vst [vmem:[%s9 + $0x118] sm:$0xff] %v4538
  %4603 = vst [vmem:[%s9 + $0x120] sm:$0xff] %v4539
  %4604 = vst [vmem:[%s9 + $0x128] sm:$0xff] %v4540
  %4605 = vst [vmem:[%s9 + $0x130] sm:$0xff] %v4541
  %4606 = vst [vmem:[%s9 + $0x138] sm:$0xff] %v4542
  %4607 = vst [vmem:[%s9 + $0x140] sm:$0xff] %v4543
  %4608 = vst [vmem:[%s9 + $0x148] sm:$0xff] %v4544
  %4609 = vst [vmem:[%s9 + $0x150] sm:$0xff] %v4545
  %4610 = vst [vmem:[%s9 + $0x158] sm:$0xff] %v4546
  %4611 = vst [vmem:[%s9 + $0x160] sm:$0xff] %v4547
  %4612 = vst [vmem:[%s9 + $0x168] sm:$0xff] %v4548
  %4613 = vst [vmem:[%s9 + $0x170] sm:$0xff] %v4549
  %4614 = vst [vmem:[%s9 + $0x178] sm:$0xff] %v4550
  %4615 = vst [vmem:[%s9 + $0x180] sm:$0xff] %v4551
  %4616 = vst [vmem:[%s9 + $0x188] sm:$0xff] %v4552
  %4617 = vst [vmem:[%s9 + $0x190] sm:$0xff] %v4553
  %4618 = vst [vmem:[%s9 + $0x198] sm:$0xff] %v4554
  %4619 = vst [vmem:[%s9 + $0x1a0] sm:$0xff] %v4555
  %4620 = vst [vmem:[%s9 + $0x1a8] sm:$0xff] %v4556
  %4621 = vst [vmem:[%s9 + $0x1b0] sm:$0xff] %v4557
  %4622 = vst [vmem:[%s9 + $0x1b8] sm:$0xff] %v4558
  %4623 = vst [vmem:[%s9 + $0x1c0] sm:$0xff] %v4559
  %4624 = vst [vmem:[%s9 + $0x1c8] sm:$0xff] %v4560
  %4625 = vst [vmem:[%s9 + $0x1d0] sm:$0xff] %v4561
  %4626 = vst [vmem:[%s9 + $0x1d8] sm:$0xff] %v4562
  %4627 = vst [vmem:[%s9 + $0x1e0] sm:$0xff] %v4563
  %4628 = vst [vmem:[%s9 + $0x1e8] sm:$0xff] %v4564
  %4629 = vst [vmem:[%s9 + $0x1f0] sm:$0xff] %v4565
  %4630 = vst [vmem:[%s9 + $0x1f8] sm:$0xff] %v4566
  // Predicated region
  $region38: #{graphsage_forward.1} parent=0 // pred_check
    _
  $region39: #{graphsage_forward.1} parent=0 // pred_check_branch
    %4632 = sbr.rel (0) target = $region41
  $region40: #{graphsage_forward.1} parent=0 // pred_region
    _
  $region41: #{graphsage_forward.1} parent=0 // pred_fallthru
    _
  // Predicated region
  $region42: #{graphsage_forward.1} parent=0 // pred_check
    _
  $region43: #{graphsage_forward.1} parent=0 // pred_check_branch
    %4634 = sbr.rel (0) target = $region45
  $region44: #{graphsage_forward.1} parent=0 // pred_region
    _
  $region45: #{graphsage_forward.1} parent=0 // pred_fallthru
    _

</llo_original>
